<compile_context>
chip_gen: v7x
topology: tpu7x:2x2x1
jax: 0.10.0
libtpu: 0.0.40
codegen_flags: <defaults>
</compile_context>

<pallas_src>
import math
import functools

import jax
import jax.numpy as jnp
from jax import lax
from jax.experimental import pallas as pl
from jax.experimental.pallas import tpu as pltpu


# ----------------------------------------------------------------------------
# Small helpers
# ----------------------------------------------------------------------------

def _round_up(x, m):
    return ((x + m - 1) // m) * m


def _pad2d(x, mp, np_):
    M, N = x.shape
    if M == mp and N == np_:
        return x                      # structural no-op (no XLA copy emitted)
    return jnp.pad(x, ((0, mp - M), (0, np_ - N)))


def _pick_tile(dim, target, base):
    """Divisor-aware tile pick.

    Returns the full dim if it fits in `target`; otherwise the largest
    multiple of `base` <= target that divides `dim` (no padding needed).
    Falls back to (target//base)*base, which then requires padding.
    """
    if dim <= target:
        return dim
    t = (target // base) * base
    while t >= base:
        if dim % t == 0:
            return t
        t -= base
    return (target // base) * base


# ----------------------------------------------------------------------------
# Pallas kernels
# ----------------------------------------------------------------------------

def _linear_kernel(x_ref, w_ref, b_ref, o_ref, acc_ref, *, activation):
    """acc(f32) += x_tile(bf16) @ w_tile(bf16); bias/act fused on last K step."""
    k = pl.program_id(2)

    @pl.when(k == 0)
    def _():
        acc_ref[...] = jnp.zeros_like(acc_ref)

    acc_ref[...] += jnp.dot(x_ref[...], w_ref[...],
                            preferred_element_type=jnp.float32)

    @pl.when(k == pl.num_programs(2) - 1)
    def _():
        y = acc_ref[...] + b_ref[...]                 # bias is f32 (1, tn)
        if activation == "quickgelu":
            # CLIP QuickGELU: x * sigmoid(1.702 * x)  (f32 epilogue)
            y = y * jax.nn.sigmoid(1.702 * y)
        o_ref[...] = y.astype(o_ref.dtype)


def _linear_residual_kernel(x_ref, w_ref, b_ref, r_ref, o_ref, acc_ref):
    """Same as _linear_kernel but fuses the residual add: o = x@w + b + r."""
    k = pl.program_id(2)

    @pl.when(k == 0)
    def _():
        acc_ref[...] = jnp.zeros_like(acc_ref)

    acc_ref[...] += jnp.dot(x_ref[...], w_ref[...],
                            preferred_element_type=jnp.float32)

    @pl.when(k == pl.num_programs(2) - 1)
    def _():
        o_ref[...] = (acc_ref[...]
                      + b_ref[...]
                      + r_ref[...].astype(jnp.float32)).astype(o_ref.dtype)


def _layernorm_kernel(x_ref, g_ref, b_ref, o_ref):
    x = x_ref[...].astype(jnp.float32)
    mean = jnp.mean(x, axis=-1, keepdims=True)
    var = jnp.mean((x - mean) ** 2, axis=-1, keepdims=True)
    o_ref[...] = ((x - mean) * lax.rsqrt(var + 1e-5)
                  * g_ref[...] + b_ref[...]).astype(o_ref.dtype)


def _attention_kernel(q_ref, k_ref, v_ref, o_ref, *, heads, l_valid, scale):
    """Blocks: q/o (1, tq, W), k/v (1, Lk, W).  Heads split with static lane
    slices inside the kernel; lane-dense (W-wide) output store."""
    q = q_ref[0]                                    # (tq, W) bf16
    k = k_ref[0]                                    # (Lk, W) bf16
    v = v_ref[0]
    Lk = k.shape[0]
    dh = q.shape[-1] // heads

    if l_valid < Lk:
        key_ok = lax.broadcasted_iota(jnp.int32, (1, Lk), 1) < l_valid
        key_bias = jnp.where(key_ok, 0.0, -1e30).astype(jnp.float32)
    else:
        key_bias = None

    outs = []
    for h in range(heads):                          # static loop over heads
        lo, hi = h * dh, (h + 1) * dh
        qh, kh, vh = q[:, lo:hi], k[:, lo:hi], v[:, lo:hi]
        # contract over head_dim (no in-kernel k transpose)
        s = lax.dot_general(qh, kh, (((1,), (1,)), ((), ())),
                            preferred_element_type=jnp.float32) * scale
        if key_bias is not None:
            s = s + key_bias                        # mask padded keys
        s = s - jnp.max(s, axis=-1, keepdims=True)
        e = jnp.exp(s)
        p = e * pl.reciprocal(jnp.sum(e, axis=-1, keepdims=True), approx=True)
        outs.append(jnp.dot(p.astype(vh.dtype), vh,
                            preferred_element_type=jnp.float32))
    o_ref[0] = jnp.concatenate(outs, axis=-1).astype(o_ref.dtype)


# ----------------------------------------------------------------------------
# Wrappers around pallas_call
# ----------------------------------------------------------------------------

_TM, _TN, _TK = 1024, 512, 512      # divisor picker adapts these to real dims
_VMEM_LIMIT = 48 * 1024 * 1024      # double-buffered tiles ~9 MiB; < v7x 64 MiB


def pallas_linear(x, w, b=None, residual=None, activation=None,
                  out_dtype=jnp.bfloat16, tm=_TM, tn=_TN, tk=_TK):
    """y = act(x @ w + b) [+ residual].  x:[M,K] bf16, w:[K,N] bf16 (pre-T)."""
    M, K = x.shape
    Kw, N = w.shape
    assert K == Kw, (K, Kw)

    tm = _pick_tile(M, tm, 16)
    tn = _pick_tile(N, tn, 128)
    tk = _pick_tile(K, tk, 128)
    Mp, Np, Kp = _round_up(M, tm), _round_up(N, tn), _round_up(K, tk)

    xb = x if x.dtype == jnp.bfloat16 else x.astype(jnp.bfloat16)
    xb = _pad2d(xb, Mp, Kp)
    wb = w if w.dtype == jnp.bfloat16 else w.astype(jnp.bfloat16)
    wb = _pad2d(wb, Kp, Np)
    if b is None:
        b = jnp.zeros((1, N), jnp.float32)
    bb = _pad2d(b.astype(jnp.float32), 1, Np)

    grid = (Mp // tm, Np // tn, Kp // tk)
    x_spec = pl.BlockSpec((tm, tk), lambda i, j, k: (i, k))
    # TODO(synk): if DMA is still exposed on v6e after the traffic fixes,
    # bump this spec to pipeline_mode=pl.Buffered(3).
    w_spec = pl.BlockSpec((tk, tn), lambda i, j, k: (k, j))
    b_spec = pl.BlockSpec((1, tn), lambda i, j, k: (0, j))
    o_spec = pl.BlockSpec((tm, tn), lambda i, j, k: (i, j))

    cost = pl.CostEstimate(
        flops=2 * Mp * Np * Kp,
        transcendentals=Mp * Np if activation == "quickgelu" else 0,
        bytes_accessed=(2 * (Mp * Kp + Kp * Np + Mp * Np) + 4 * Np
                        + (2 * Mp * Np if residual is not None else 0)),
    )
    cparams = pltpu.CompilerParams(
        dimension_semantics=("parallel", "parallel", "arbitrary"),
        vmem_limit_bytes=_VMEM_LIMIT,
    )

    if residual is not None:
        rb = residual if residual.dtype == jnp.bfloat16 \
            else residual.astype(jnp.bfloat16)
        rb = _pad2d(rb, Mp, Np)
        out = pl.pallas_call(
            _linear_residual_kernel,
            grid=grid,
            in_specs=[x_spec, w_spec, b_spec, o_spec],
            out_specs=o_spec,
            out_shape=jax.ShapeDtypeStruct((Mp, Np), out_dtype),
            scratch_shapes=[pltpu.VMEM((tm, tn), jnp.float32)],
            compiler_params=cparams,
            cost_estimate=cost,
        )(xb, wb, bb, rb)
    else:
        out = pl.pallas_call(
            functools.partial(_linear_kernel, activation=activation),
            grid=grid,
            in_specs=[x_spec, w_spec, b_spec],
            out_specs=o_spec,
            out_shape=jax.ShapeDtypeStruct((Mp, Np), out_dtype),
            scratch_shapes=[pltpu.VMEM((tm, tn), jnp.float32)],
            compiler_params=cparams,
            cost_estimate=cost,
        )(xb, wb, bb)
    if Mp == M and Np == N:
        return out
    return out[:M, :N]


def pallas_layernorm(x, gamma, beta, out_dtype=jnp.bfloat16, tm=512):
    # TODO(synk): LN could be fused into the following matmul's M-tile to save
    # one activation round-trip; kept as a separate row-tiled bf16 kernel.
    M, D = x.shape
    tm = _pick_tile(M, tm, 8)
    if M // max(tm, 1) < 2 and M >= 32:
        tm = tm // 2                     # >=2 grid steps for v7x's 2 cores
    Mp = _round_up(M, tm)
    xp = _pad2d(x, Mp, D)
    out = pl.pallas_call(
        _layernorm_kernel,
        grid=(Mp // tm,),
        in_specs=[pl.BlockSpec((tm, D), lambda i: (i, 0)),
                  pl.BlockSpec((1, D), lambda i: (0, 0)),
                  pl.BlockSpec((1, D), lambda i: (0, 0))],
        out_specs=pl.BlockSpec((tm, D), lambda i: (i, 0)),
        out_shape=jax.ShapeDtypeStruct((Mp, D), out_dtype),
        compiler_params=pltpu.CompilerParams(
            dimension_semantics=("parallel",)),
    )(xp, gamma, beta)
    if Mp == M:
        return out
    return out[:M]


def pallas_attention(q, k, v, heads, l_valid):
    # q, k, v: [B, Lp, W] bf16; output [B, Lp, W] bf16 (lane-dense)
    B, Lp, W = q.shape
    tq = _pick_tile(Lp, 256, 16)
    if B * (Lp // tq) < 2 and Lp >= 32:
        tq = Lp // 2                     # keep both v7x cores busy when B small
    grid = (B, Lp // tq)
    q_spec = pl.BlockSpec((1, tq, W), lambda b, qi: (b, qi, 0))
    kv_spec = pl.BlockSpec((1, Lp, W), lambda b, qi: (b, 0, 0))
    return pl.pallas_call(
        functools.partial(_attention_kernel, heads=heads, l_valid=l_valid,
                          scale=1.0 / math.sqrt(W // heads)),
        grid=grid,
        in_specs=[q_spec, kv_spec, kv_spec],
        out_specs=q_spec,
        out_shape=jax.ShapeDtypeStruct((B, Lp, W), jnp.bfloat16),
        compiler_params=pltpu.CompilerParams(
            dimension_semantics=("parallel", "parallel"),
            vmem_limit_bytes=_VMEM_LIMIT),
    )(q, k, v)


# ----------------------------------------------------------------------------
# Parameters (weights pre-transposed [in, out] AND pre-cast to bf16 at init)
# ----------------------------------------------------------------------------

def init_params(key, input_resolution, patch_size, width, layers, heads, embed_dim):
    scale = width ** (-0.5)
    n_tokens = (input_resolution // patch_size) ** 2 + 1
    keys = jax.random.split(key, 4 + 4 * layers)
    ki = iter(range(len(keys)))

    def nrm(shape, s, dtype=jnp.bfloat16):
        return (s * jax.random.normal(keys[next(ki)], shape)).astype(dtype)

    params = {
        # conv1 weight kept directly as the unfolded-patch matmul weight
        # [3*p*p, width] (== conv_w.reshape(width, 3*p*p).T, done once at init)
        "conv_w_mat": nrm((3 * patch_size * patch_size, width), 0.02),
        "class_embedding": nrm((width,), scale, jnp.float32),
        "positional_embedding": nrm((n_tokens, width), scale, jnp.float32),
        "ln_pre_g": jnp.ones((1, width), jnp.float32),
        "ln_pre_b": jnp.zeros((1, width), jnp.float32),
        "ln_post_g": jnp.ones((1, width), jnp.float32),
        "ln_post_b": jnp.zeros((1, width), jnp.float32),
        "proj": nrm((width, embed_dim), scale),
        "blocks": [],
    }
    for _ in range(layers):
        blk = {
            "ln1_g": jnp.ones((1, width), jnp.float32),
            "ln1_b": jnp.zeros((1, width), jnp.float32),
            "ln2_g": jnp.ones((1, width), jnp.float32),
            "ln2_b": jnp.zeros((1, width), jnp.float32),
            # PyTorch MHA packed qkv (q, k, v stacked), stored transposed, bf16
            "in_proj_w": nrm((width, 3 * width), 0.02),
            "in_proj_b": jnp.zeros((1, 3 * width), jnp.float32),
            "out_proj_w": nrm((width, width), 0.02),
            "out_proj_b": jnp.zeros((1, width), jnp.float32),
            "fc_w": nrm((width, 4 * width), 0.02),       # mlp.c_fc
            "fc_b": jnp.zeros((1, 4 * width), jnp.float32),
            "cproj_w": nrm((4 * width, width), 0.02),    # mlp.c_proj
            "cproj_b": jnp.zeros((1, width), jnp.float32),
        }
        params["blocks"].append(blk)
    return params


# ----------------------------------------------------------------------------
# Forward pass ([B*Lp, W] bf16 layout end-to-end, no seq-first / head permute)
# ----------------------------------------------------------------------------

def residual_attention_block(x2d, blk, heads, B, Lp, l_valid):
    W = x2d.shape[-1]

    # --- attention branch: x + out_proj(attn(ln_1(x))) ---
    h = pallas_layernorm(x2d, blk["ln1_g"], blk["ln1_b"])            # bf16
    qkv = pallas_linear(h, blk["in_proj_w"], blk["in_proj_b"])       # [B*Lp, 3W]
    q, k, v = jnp.split(qkv, 3, axis=-1)
    attn = pallas_attention(q.reshape(B, Lp, W),
                            k.reshape(B, Lp, W),
                            v.reshape(B, Lp, W),
                            heads, l_valid)                          # [B, Lp, W]
    x2d = pallas_linear(attn.reshape(B * Lp, W),
                        blk["out_proj_w"], blk["out_proj_b"],
                        residual=x2d)                                # fused residual

    # --- MLP branch: x + c_proj(quickgelu(c_fc(ln_2(x)))) ---
    h2 = pallas_layernorm(x2d, blk["ln2_g"], blk["ln2_b"])
    h2 = pallas_linear(h2, blk["fc_w"], blk["fc_b"], activation="quickgelu")
    x2d = pallas_linear(h2, blk["cproj_w"], blk["cproj_b"], residual=x2d)
    return x2d


def img_vision_transformer_forward(x, params, *, patch_size, heads):
    # x: [B, 3, H, W] (NCHW, same as PyTorch)
    B, C, H, Wimg = x.shape
    p = patch_size
    gh, gw = H // p, Wimg // p
    n_patches = gh * gw
    width = params["positional_embedding"].shape[-1]

    # conv1 (kernel=stride=p, no bias) == patch unfold + tiled Pallas matmul
    xp = (x.reshape(B, C, gh, p, gw, p)
            .transpose(0, 2, 4, 1, 3, 5)               # [B, gh, gw, C, p, p]
            .reshape(B * n_patches, C * p * p)).astype(jnp.bfloat16)
    feat = pallas_linear(xp, params["conv_w_mat"], out_dtype=jnp.float32)
    feat = feat.reshape(B, n_patches, width)

    # prepend class token, add positional embedding (one-time f32 prologue)
    cls = jnp.broadcast_to(params["class_embedding"][None, None, :],
                           (B, 1, width))
    xs = jnp.concatenate([cls, feat], axis=1) + params["positional_embedding"][None]
    L = xs.shape[1]

    # pad token axis to a multiple of 16 (bf16 sublane pack); padded keys are
    # masked inside attention and padded rows never reach the readout.
    Lp = _round_up(L, 16)
    if Lp != L:
        xs = jnp.pad(xs, ((0, 0), (0, Lp - L), (0, 0)))

    # ln_pre (emits bf16; everything after is bf16 activations)
    x2d = pallas_layernorm(xs.reshape(B * Lp, width),
                           params["ln_pre_g"], params["ln_pre_b"])

    # transformer
    for blk in params["blocks"]:
        x2d = residual_attention_block(x2d, blk, heads, B, Lp, L)

    # ln_post on the class token, then projection
    xs = x2d.reshape(B, Lp, width)
    encoding = pallas_layernorm(xs[:, 0, :], params["ln_post_g"], params["ln_post_b"])
    out = pallas_linear(encoding, params["proj"], out_dtype=jnp.float32)
    return out                                           # [B, embed_dim]


if __name__ == "__main__":
    # small but consistent config
    input_resolution = 16
    patch_size = 4
    width = 32
    layers = 2
    heads = 2
    embed_dim = 32
    batch = 2

    key = jax.random.PRNGKey(0)
    pkey, xkey = jax.random.split(key)
    params = init_params(pkey, input_resolution, patch_size, width, layers,
                         heads, embed_dim)
    x = jax.random.normal(xkey, (batch, 3, input_resolution, input_resolution),
                          jnp.float32)

    fwd = jax.jit(functools.partial(img_vision_transformer_forward,
                                    patch_size=patch_size, heads=heads))
    out = fwd(x, params)
    jax.block_until_ready(out)
    assert out.shape == (batch, embed_dim), out.shape
    assert jnp.all(jnp.isfinite(out))
    print("KERNEL_OK")
</pallas_src>

<mosaic_0001>
module attributes {stable_mosaic.version = 11 : i64} {
  func.func @_linear_kernel(%arg0: i32, %arg1: i32, %arg2: i32, %arg3: memref<32x48xbf16, #tpu.memory_space<vmem>>, %arg4: memref<48x32xbf16, #tpu.memory_space<vmem>>, %arg5: memref<1x32xf32, #tpu.memory_space<vmem>>, %arg6: memref<32x32xf32, #tpu.memory_space<vmem>>, %arg7: memref<32x32xf32, #tpu.memory_space<vmem>>) attributes {dimension_semantics = [#tpu.dimension_semantics<parallel>, #tpu.dimension_semantics<parallel>, #tpu.dimension_semantics<arbitrary>], iteration_bounds = array<i64: 1, 1, 1>, scalar_prefetch = 0 : i64, scratch_operands = 1 : i64, tpu.core_type = #tpu.core_type<tc>, window_params = [{transform_indices = @transform_0, window_bounds = array<i64: 32, 48>}, {transform_indices = @transform_1, window_bounds = array<i64: 48, 32>}, {transform_indices = @transform_2, window_bounds = array<i64: 1, 32>}, {transform_indices = @transform_3, window_bounds = array<i64: 32, 32>}]} {
    %c0_i32 = arith.constant 0 : i32
    %0 = arith.cmpi eq, %arg2, %c0_i32 : i32
    %1 = arith.extui %0 : i1 to i32
    %c0_i32_0 = arith.constant 0 : i32
    %2 = arith.cmpi ne, %1, %c0_i32_0 : i32
    scf.if %2 {
      %cst_10 = arith.constant 0.000000e+00 : f32
      %12 = vector.broadcast %cst_10 : f32 to vector<32x32xf32>
      %c0_11 = arith.constant 0 : index
      %c0_12 = arith.constant 0 : index
      %13 = vector.load %arg7[%c0_11, %c0_12] : memref<32x32xf32, #tpu.memory_space<vmem>>, vector<32x32xf32>
      tpu.vector_store %arg7[%c0_11, %c0_12], %12 {strides = array<i32>} : memref<32x32xf32, #tpu.memory_space<vmem>>, vector<32x32xf32>,
    } else {
    }
    %c0 = arith.constant 0 : index
    %c0_1 = arith.constant 0 : index
    %3 = vector.load %arg7[%c0, %c0_1] : memref<32x32xf32, #tpu.memory_space<vmem>>, vector<32x32xf32>
    %c0_2 = arith.constant 0 : index
    %c0_3 = arith.constant 0 : index
    %4 = vector.load %arg3[%c0_2, %c0_3] : memref<32x48xbf16, #tpu.memory_space<vmem>>, vector<32x48xbf16>
    %c0_4 = arith.constant 0 : index
    %c0_5 = arith.constant 0 : index
    %5 = vector.load %arg4[%c0_4, %c0_5] : memref<48x32xbf16, #tpu.memory_space<vmem>>, vector<48x32xbf16>
    %cst = arith.constant dense<0.000000e+00> : vector<32x32xf32>
    %6 = tpu.matmul %4, %5, %cst {dimension_numbers = #tpu.dot_dimension_numbers<[1], [0], [0], [1], [0, 0, 1, 1], [], []>} : vector<32x48xbf16>, vector<48x32xbf16>, vector<32x32xf32> -> vector<32x32xf32>
    %7 = arith.addf %3, %6 : vector<32x32xf32>
    %c0_6 = arith.constant 0 : index
    %c0_7 = arith.constant 0 : index
    %8 = vector.load %arg7[%c0_6, %c0_7] : memref<32x32xf32, #tpu.memory_space<vmem>>, vector<32x32xf32>
    tpu.vector_store %arg7[%c0_6, %c0_7], %7 {strides = array<i32>} : memref<32x32xf32, #tpu.memory_space<vmem>>, vector<32x32xf32>,
    %c0_i32_8 = arith.constant 0 : i32
    %9 = arith.cmpi eq, %arg2, %c0_i32_8 : i32
    %10 = arith.extui %9 : i1 to i32
    %c0_i32_9 = arith.constant 0 : i32
    %11 = arith.cmpi ne, %10, %c0_i32_9 : i32
    scf.if %11 {
      %c0_10 = arith.constant 0 : index
      %c0_11 = arith.constant 0 : index
      %12 = vector.load %arg7[%c0_10, %c0_11] : memref<32x32xf32, #tpu.memory_space<vmem>>, vector<32x32xf32>
      %c0_12 = arith.constant 0 : index
      %c0_13 = arith.constant 0 : index
      %13 = vector.load %arg5[%c0_12, %c0_13] : memref<1x32xf32, #tpu.memory_space<vmem>>, vector<1x32xf32>
      %14 = vector.broadcast %13 : vector<1x32xf32> to vector<32x32xf32>
      %15 = arith.addf %12, %14 : vector<32x32xf32>
      %c0_14 = arith.constant 0 : index
      %c0_15 = arith.constant 0 : index
      %16 = vector.load %arg6[%c0_14, %c0_15] : memref<32x32xf32, #tpu.memory_space<vmem>>, vector<32x32xf32>
      tpu.vector_store %arg6[%c0_14, %c0_15], %15 {strides = array<i32>} : memref<32x32xf32, #tpu.memory_space<vmem>>, vector<32x32xf32>,
    } else {
    }
    return
  }
  func.func @transform_0(%arg0: i32, %arg1: i32, %arg2: i32) -> (i32, i32) {
    %c0_i32 = arith.constant 0 : i32
    return %arg0, %arg2 : i32, i32
  }
  func.func @transform_1(%arg0: i32, %arg1: i32, %arg2: i32) -> (i32, i32) {
    %c0_i32 = arith.constant 0 : i32
    return %arg2, %arg1 : i32, i32
  }
  func.func @transform_2(%arg0: i32, %arg1: i32, %arg2: i32) -> (i32, i32) {
    %c0_i32 = arith.constant 0 : i32
    %c0_i32_0 = arith.constant 0 : i32
    return %c0_i32, %arg1 : i32, i32
  }
  func.func @transform_3(%arg0: i32, %arg1: i32, %arg2: i32) -> (i32, i32) {
    %c0_i32 = arith.constant 0 : i32
    return %arg0, %arg1 : i32, i32
  }
}

module attributes {stable_mosaic.version = 11 : i64} {
  func.func @_layernorm_kernel(%arg0: i32, %arg1: memref<32x32xbf16, #tpu.memory_space<vmem>>, %arg2: memref<1x32xf32, #tpu.memory_space<vmem>>, %arg3: memref<1x32xf32, #tpu.memory_space<vmem>>, %arg4: memref<32x32xbf16, #tpu.memory_space<vmem>>) attributes {dimension_semantics = [#tpu.dimension_semantics<parallel>], iteration_bounds = array<i64: 2>, scalar_prefetch = 0 : i64, scratch_operands = 0 : i64, tpu.core_type = #tpu.core_type<tc>, window_params = [{transform_indices = @transform_0, window_bounds = array<i64: 32, 32>}, {pipeline_mode = #tpu.pipeline_mode<synchronous>, transform_indices = @transform_1, window_bounds = array<i64: 1, 32>}, {pipeline_mode = #tpu.pipeline_mode<synchronous>, transform_indices = @transform_2, window_bounds = array<i64: 1, 32>}, {transform_indices = @transform_3, window_bounds = array<i64: 32, 32>}]} {
    %c0 = arith.constant 0 : index
    %c0_0 = arith.constant 0 : index
    %0 = vector.load %arg1[%c0, %c0_0] : memref<32x32xbf16, #tpu.memory_space<vmem>>, vector<32x32xbf16>
    %1 = arith.extf %0 : vector<32x32xbf16> to vector<32x32xf32>
    %cst = arith.constant dense<0.000000e+00> : vector<32xf32>
    %2 = vector.multi_reduction <add>, %1, %cst [1] : vector<32x32xf32> to vector<32xf32>
    %3 = vector.shape_cast %2 : vector<32xf32> to vector<32x1xf32>
    %cst_1 = arith.constant 3.200000e+01 : f32
    %4 = vector.broadcast %cst_1 : f32 to vector<32x1xf32>
    %5 = arith.divf %3, %4 : vector<32x1xf32>
    %6 = vector.broadcast %5 : vector<32x1xf32> to vector<32x32xf32>
    %7 = arith.subf %1, %6 : vector<32x32xf32>
    %8 = arith.mulf %7, %7 : vector<32x32xf32>
    %cst_2 = arith.constant dense<0.000000e+00> : vector<32xf32>
    %9 = vector.multi_reduction <add>, %8, %cst_2 [1] : vector<32x32xf32> to vector<32xf32>
    %10 = vector.shape_cast %9 : vector<32xf32> to vector<32x1xf32>
    %cst_3 = arith.constant 3.200000e+01 : f32
    %11 = vector.broadcast %cst_3 : f32 to vector<32x1xf32>
    %12 = arith.divf %10, %11 : vector<32x1xf32>
    %13 = vector.broadcast %5 : vector<32x1xf32> to vector<32x32xf32>
    %14 = arith.subf %1, %13 : vector<32x32xf32>
    %cst_4 = arith.constant 9.99999974E-6 : f32
    %15 = vector.broadcast %cst_4 : f32 to vector<32x1xf32>
    %16 = arith.addf %12, %15 : vector<32x1xf32>
    %17 = math.rsqrt %16 : vector<32x1xf32>
    %18 = vector.broadcast %17 : vector<32x1xf32> to vector<32x32xf32>
    %19 = arith.mulf %14, %18 : vector<32x32xf32>
    %c0_5 = arith.constant 0 : index
    %c0_6 = arith.constant 0 : index
    %20 = vector.load %arg2[%c0_5, %c0_6] : memref<1x32xf32, #tpu.memory_space<vmem>>, vector<1x32xf32>
    %21 = vector.broadcast %20 : vector<1x32xf32> to vector<32x32xf32>
    %22 = arith.mulf %19, %21 : vector<32x32xf32>
    %c0_7 = arith.constant 0 : index
    %c0_8 = arith.constant 0 : index
    %23 = vector.load %arg3[%c0_7, %c0_8] : memref<1x32xf32, #tpu.memory_space<vmem>>, vector<1x32xf32>
    %24 = vector.broadcast %23 : vector<1x32xf32> to vector<32x32xf32>
    %25 = arith.addf %22, %24 : vector<32x32xf32>
    %26 = arith.truncf %25 : vector<32x32xf32> to vector<32x32xbf16>
    %c0_9 = arith.constant 0 : index
    %c0_10 = arith.constant 0 : index
    %27 = vector.load %arg4[%c0_9, %c0_10] : memref<32x32xbf16, #tpu.memory_space<vmem>>, vector<32x32xbf16>
    tpu.vector_store %arg4[%c0_9, %c0_10], %26 {strides = array<i32>} : memref<32x32xbf16, #tpu.memory_space<vmem>>, vector<32x32xbf16>,
    return
  }
  func.func @transform_0(%arg0: i32) -> (i32, i32) {
    %c0_i32 = arith.constant 0 : i32
    %c0_i32_0 = arith.constant 0 : i32
    return %arg0, %c0_i32 : i32, i32
  }
  func.func @transform_1(%arg0: i32) -> (i32, i32) {
    %c0_i32 = arith.constant 0 : i32
    %c0_i32_0 = arith.constant 0 : i32
    %c0_i32_1 = arith.constant 0 : i32
    return %c0_i32, %c0_i32_0 : i32, i32
  }
  func.func @transform_2(%arg0: i32) -> (i32, i32) {
    %c0_i32 = arith.constant 0 : i32
    %c0_i32_0 = arith.constant 0 : i32
    %c0_i32_1 = arith.constant 0 : i32
    return %c0_i32, %c0_i32_0 : i32, i32
  }
  func.func @transform_3(%arg0: i32) -> (i32, i32) {
    %c0_i32 = arith.constant 0 : i32
    %c0_i32_0 = arith.constant 0 : i32
    return %arg0, %c0_i32 : i32, i32
  }
}

module attributes {stable_mosaic.version = 11 : i64} {
  func.func @_layernorm_kernel(%arg0: i32, %arg1: memref<32x32xf32, #tpu.memory_space<vmem>>, %arg2: memref<1x32xf32, #tpu.memory_space<vmem>>, %arg3: memref<1x32xf32, #tpu.memory_space<vmem>>, %arg4: memref<32x32xbf16, #tpu.memory_space<vmem>>) attributes {dimension_semantics = [#tpu.dimension_semantics<parallel>], iteration_bounds = array<i64: 2>, scalar_prefetch = 0 : i64, scratch_operands = 0 : i64, tpu.core_type = #tpu.core_type<tc>, window_params = [{transform_indices = @transform_0, window_bounds = array<i64: 32, 32>}, {pipeline_mode = #tpu.pipeline_mode<synchronous>, transform_indices = @transform_1, window_bounds = array<i64: 1, 32>}, {pipeline_mode = #tpu.pipeline_mode<synchronous>, transform_indices = @transform_2, window_bounds = array<i64: 1, 32>}, {transform_indices = @transform_3, window_bounds = array<i64: 32, 32>}]} {
    %c0 = arith.constant 0 : index
    %c0_0 = arith.constant 0 : index
    %0 = vector.load %arg1[%c0, %c0_0] : memref<32x32xf32, #tpu.memory_space<vmem>>, vector<32x32xf32>
    %cst = arith.constant dense<0.000000e+00> : vector<32xf32>
    %1 = vector.multi_reduction <add>, %0, %cst [1] : vector<32x32xf32> to vector<32xf32>
    %2 = vector.shape_cast %1 : vector<32xf32> to vector<32x1xf32>
    %cst_1 = arith.constant 3.200000e+01 : f32
    %3 = vector.broadcast %cst_1 : f32 to vector<32x1xf32>
    %4 = arith.divf %2, %3 : vector<32x1xf32>
    %5 = vector.broadcast %4 : vector<32x1xf32> to vector<32x32xf32>
    %6 = arith.subf %0, %5 : vector<32x32xf32>
    %7 = arith.mulf %6, %6 : vector<32x32xf32>
    %cst_2 = arith.constant dense<0.000000e+00> : vector<32xf32>
    %8 = vector.multi_reduction <add>, %7, %cst_2 [1] : vector<32x32xf32> to vector<32xf32>
    %9 = vector.shape_cast %8 : vector<32xf32> to vector<32x1xf32>
    %cst_3 = arith.constant 3.200000e+01 : f32
    %10 = vector.broadcast %cst_3 : f32 to vector<32x1xf32>
    %11 = arith.divf %9, %10 : vector<32x1xf32>
    %12 = vector.broadcast %4 : vector<32x1xf32> to vector<32x32xf32>
    %13 = arith.subf %0, %12 : vector<32x32xf32>
    %cst_4 = arith.constant 9.99999974E-6 : f32
    %14 = vector.broadcast %cst_4 : f32 to vector<32x1xf32>
    %15 = arith.addf %11, %14 : vector<32x1xf32>
    %16 = math.rsqrt %15 : vector<32x1xf32>
    %17 = vector.broadcast %16 : vector<32x1xf32> to vector<32x32xf32>
    %18 = arith.mulf %13, %17 : vector<32x32xf32>
    %c0_5 = arith.constant 0 : index
    %c0_6 = arith.constant 0 : index
    %19 = vector.load %arg2[%c0_5, %c0_6] : memref<1x32xf32, #tpu.memory_space<vmem>>, vector<1x32xf32>
    %20 = vector.broadcast %19 : vector<1x32xf32> to vector<32x32xf32>
    %21 = arith.mulf %18, %20 : vector<32x32xf32>
    %c0_7 = arith.constant 0 : index
    %c0_8 = arith.constant 0 : index
    %22 = vector.load %arg3[%c0_7, %c0_8] : memref<1x32xf32, #tpu.memory_space<vmem>>, vector<1x32xf32>
    %23 = vector.broadcast %22 : vector<1x32xf32> to vector<32x32xf32>
    %24 = arith.addf %21, %23 : vector<32x32xf32>
    %25 = arith.truncf %24 : vector<32x32xf32> to vector<32x32xbf16>
    %c0_9 = arith.constant 0 : index
    %c0_10 = arith.constant 0 : index
    %26 = vector.load %arg4[%c0_9, %c0_10] : memref<32x32xbf16, #tpu.memory_space<vmem>>, vector<32x32xbf16>
    tpu.vector_store %arg4[%c0_9, %c0_10], %25 {strides = array<i32>} : memref<32x32xbf16, #tpu.memory_space<vmem>>, vector<32x32xbf16>,
    return
  }
  func.func @transform_0(%arg0: i32) -> (i32, i32) {
    %c0_i32 = arith.constant 0 : i32
    %c0_i32_0 = arith.constant 0 : i32
    return %arg0, %c0_i32 : i32, i32
  }
  func.func @transform_1(%arg0: i32) -> (i32, i32) {
    %c0_i32 = arith.constant 0 : i32
    %c0_i32_0 = arith.constant 0 : i32
    %c0_i32_1 = arith.constant 0 : i32
    return %c0_i32, %c0_i32_0 : i32, i32
  }
  func.func @transform_2(%arg0: i32) -> (i32, i32) {
    %c0_i32 = arith.constant 0 : i32
    %c0_i32_0 = arith.constant 0 : i32
    %c0_i32_1 = arith.constant 0 : i32
    return %c0_i32, %c0_i32_0 : i32, i32
  }
  func.func @transform_3(%arg0: i32) -> (i32, i32) {
    %c0_i32 = arith.constant 0 : i32
    %c0_i32_0 = arith.constant 0 : i32
    return %arg0, %c0_i32 : i32, i32
  }
}

module attributes {stable_mosaic.version = 11 : i64} {
  func.func @_linear_kernel(%arg0: i32, %arg1: i32, %arg2: i32, %arg3: memref<64x32xbf16, #tpu.memory_space<vmem>>, %arg4: memref<32x96xbf16, #tpu.memory_space<vmem>>, %arg5: memref<1x96xf32, #tpu.memory_space<vmem>>, %arg6: memref<64x96xbf16, #tpu.memory_space<vmem>>, %arg7: memref<64x96xf32, #tpu.memory_space<vmem>>) attributes {dimension_semantics = [#tpu.dimension_semantics<parallel>, #tpu.dimension_semantics<parallel>, #tpu.dimension_semantics<arbitrary>], iteration_bounds = array<i64: 1, 1, 1>, scalar_prefetch = 0 : i64, scratch_operands = 1 : i64, tpu.core_type = #tpu.core_type<tc>, window_params = [{transform_indices = @transform_0, window_bounds = array<i64: 64, 32>}, {transform_indices = @transform_1, window_bounds = array<i64: 32, 96>}, {transform_indices = @transform_2, window_bounds = array<i64: 1, 96>}, {transform_indices = @transform_3, window_bounds = array<i64: 64, 96>}]} {
    %c0_i32 = arith.constant 0 : i32
    %0 = arith.cmpi eq, %arg2, %c0_i32 : i32
    %1 = arith.extui %0 : i1 to i32
    %c0_i32_0 = arith.constant 0 : i32
    %2 = arith.cmpi ne, %1, %c0_i32_0 : i32
    scf.if %2 {
      %cst_10 = arith.constant 0.000000e+00 : f32
      %12 = vector.broadcast %cst_10 : f32 to vector<64x96xf32>
      %c0_11 = arith.constant 0 : index
      %c0_12 = arith.constant 0 : index
      %13 = vector.load %arg7[%c0_11, %c0_12] : memref<64x96xf32, #tpu.memory_space<vmem>>, vector<64x96xf32>
      tpu.vector_store %arg7[%c0_11, %c0_12], %12 {strides = array<i32>} : memref<64x96xf32, #tpu.memory_space<vmem>>, vector<64x96xf32>,
    } else {
    }
    %c0 = arith.constant 0 : index
    %c0_1 = arith.constant 0 : index
    %3 = vector.load %arg7[%c0, %c0_1] : memref<64x96xf32, #tpu.memory_space<vmem>>, vector<64x96xf32>
    %c0_2 = arith.constant 0 : index
    %c0_3 = arith.constant 0 : index
    %4 = vector.load %arg3[%c0_2, %c0_3] : memref<64x32xbf16, #tpu.memory_space<vmem>>, vector<64x32xbf16>
    %c0_4 = arith.constant 0 : index
    %c0_5 = arith.constant 0 : index
    %5 = vector.load %arg4[%c0_4, %c0_5] : memref<32x96xbf16, #tpu.memory_space<vmem>>, vector<32x96xbf16>
    %cst = arith.constant dense<0.000000e+00> : vector<64x96xf32>
    %6 = tpu.matmul %4, %5, %cst {dimension_numbers = #tpu.dot_dimension_numbers<[1], [0], [0], [1], [0, 0, 1, 1], [], []>} : vector<64x32xbf16>, vector<32x96xbf16>, vector<64x96xf32> -> vector<64x96xf32>
    %7 = arith.addf %3, %6 : vector<64x96xf32>
    %c0_6 = arith.constant 0 : index
    %c0_7 = arith.constant 0 : index
    %8 = vector.load %arg7[%c0_6, %c0_7] : memref<64x96xf32, #tpu.memory_space<vmem>>, vector<64x96xf32>
    tpu.vector_store %arg7[%c0_6, %c0_7], %7 {strides = array<i32>} : memref<64x96xf32, #tpu.memory_space<vmem>>, vector<64x96xf32>,
    %c0_i32_8 = arith.constant 0 : i32
    %9 = arith.cmpi eq, %arg2, %c0_i32_8 : i32
    %10 = arith.extui %9 : i1 to i32
    %c0_i32_9 = arith.constant 0 : i32
    %11 = arith.cmpi ne, %10, %c0_i32_9 : i32
    scf.if %11 {
      %c0_10 = arith.constant 0 : index
      %c0_11 = arith.constant 0 : index
      %12 = vector.load %arg7[%c0_10, %c0_11] : memref<64x96xf32, #tpu.memory_space<vmem>>, vector<64x96xf32>
      %c0_12 = arith.constant 0 : index
      %c0_13 = arith.constant 0 : index
      %13 = vector.load %arg5[%c0_12, %c0_13] : memref<1x96xf32, #tpu.memory_space<vmem>>, vector<1x96xf32>
      %14 = vector.broadcast %13 : vector<1x96xf32> to vector<64x96xf32>
      %15 = arith.addf %12, %14 : vector<64x96xf32>
      %16 = arith.truncf %15 : vector<64x96xf32> to vector<64x96xbf16>
      %c0_14 = arith.constant 0 : index
      %c0_15 = arith.constant 0 : index
      %17 = vector.load %arg6[%c0_14, %c0_15] : memref<64x96xbf16, #tpu.memory_space<vmem>>, vector<64x96xbf16>
      tpu.vector_store %arg6[%c0_14, %c0_15], %16 {strides = array<i32>} : memref<64x96xbf16, #tpu.memory_space<vmem>>, vector<64x96xbf16>,
    } else {
    }
    return
  }
  func.func @transform_0(%arg0: i32, %arg1: i32, %arg2: i32) -> (i32, i32) {
    %c0_i32 = arith.constant 0 : i32
    return %arg0, %arg2 : i32, i32
  }
  func.func @transform_1(%arg0: i32, %arg1: i32, %arg2: i32) -> (i32, i32) {
    %c0_i32 = arith.constant 0 : i32
    return %arg2, %arg1 : i32, i32
  }
  func.func @transform_2(%arg0: i32, %arg1: i32, %arg2: i32) -> (i32, i32) {
    %c0_i32 = arith.constant 0 : i32
    %c0_i32_0 = arith.constant 0 : i32
    return %c0_i32, %arg1 : i32, i32
  }
  func.func @transform_3(%arg0: i32, %arg1: i32, %arg2: i32) -> (i32, i32) {
    %c0_i32 = arith.constant 0 : i32
    return %arg0, %arg1 : i32, i32
  }
}

module attributes {stable_mosaic.version = 11 : i64} {
  func.func @_linear_residual_kernel(%arg0: i32, %arg1: i32, %arg2: i32, %arg3: memref<64x32xbf16, #tpu.memory_space<vmem>>, %arg4: memref<32x32xbf16, #tpu.memory_space<vmem>>, %arg5: memref<1x32xf32, #tpu.memory_space<vmem>>, %arg6: memref<64x32xbf16, #tpu.memory_space<vmem>>, %arg7: memref<64x32xbf16, #tpu.memory_space<vmem>>, %arg8: memref<64x32xf32, #tpu.memory_space<vmem>>) attributes {dimension_semantics = [#tpu.dimension_semantics<parallel>, #tpu.dimension_semantics<parallel>, #tpu.dimension_semantics<arbitrary>], iteration_bounds = array<i64: 1, 1, 1>, scalar_prefetch = 0 : i64, scratch_operands = 1 : i64, tpu.core_type = #tpu.core_type<tc>, window_params = [{transform_indices = @transform_0, window_bounds = array<i64: 64, 32>}, {transform_indices = @transform_1, window_bounds = array<i64: 32, 32>}, {transform_indices = @transform_2, window_bounds = array<i64: 1, 32>}, {transform_indices = @transform_3, window_bounds = array<i64: 64, 32>}, {transform_indices = @transform_4, window_bounds = array<i64: 64, 32>}]} {
    %c0_i32 = arith.constant 0 : i32
    %0 = arith.cmpi eq, %arg2, %c0_i32 : i32
    %1 = arith.extui %0 : i1 to i32
    %c0_i32_0 = arith.constant 0 : i32
    %2 = arith.cmpi ne, %1, %c0_i32_0 : i32
    scf.if %2 {
      %cst_10 = arith.constant 0.000000e+00 : f32
      %12 = vector.broadcast %cst_10 : f32 to vector<64x32xf32>
      %c0_11 = arith.constant 0 : index
      %c0_12 = arith.constant 0 : index
      %13 = vector.load %arg8[%c0_11, %c0_12] : memref<64x32xf32, #tpu.memory_space<vmem>>, vector<64x32xf32>
      tpu.vector_store %arg8[%c0_11, %c0_12], %12 {strides = array<i32>} : memref<64x32xf32, #tpu.memory_space<vmem>>, vector<64x32xf32>,
    } else {
    }
    %c0 = arith.constant 0 : index
    %c0_1 = arith.constant 0 : index
    %3 = vector.load %arg8[%c0, %c0_1] : memref<64x32xf32, #tpu.memory_space<vmem>>, vector<64x32xf32>
    %c0_2 = arith.constant 0 : index
    %c0_3 = arith.constant 0 : index
    %4 = vector.load %arg3[%c0_2, %c0_3] : memref<64x32xbf16, #tpu.memory_space<vmem>>, vector<64x32xbf16>
    %c0_4 = arith.constant 0 : index
    %c0_5 = arith.constant 0 : index
    %5 = vector.load %arg4[%c0_4, %c0_5] : memref<32x32xbf16, #tpu.memory_space<vmem>>, vector<32x32xbf16>
    %cst = arith.constant dense<0.000000e+00> : vector<64x32xf32>
    %6 = tpu.matmul %4, %5, %cst {dimension_numbers = #tpu.dot_dimension_numbers<[1], [0], [0], [1], [0, 0, 1, 1], [], []>} : vector<64x32xbf16>, vector<32x32xbf16>, vector<64x32xf32> -> vector<64x32xf32>
    %7 = arith.addf %3, %6 : vector<64x32xf32>
    %c0_6 = arith.constant 0 : index
    %c0_7 = arith.constant 0 : index
    %8 = vector.load %arg8[%c0_6, %c0_7] : memref<64x32xf32, #tpu.memory_space<vmem>>, vector<64x32xf32>
    tpu.vector_store %arg8[%c0_6, %c0_7], %7 {strides = array<i32>} : memref<64x32xf32, #tpu.memory_space<vmem>>, vector<64x32xf32>,
    %c0_i32_8 = arith.constant 0 : i32
    %9 = arith.cmpi eq, %arg2, %c0_i32_8 : i32
    %10 = arith.extui %9 : i1 to i32
    %c0_i32_9 = arith.constant 0 : i32
    %11 = arith.cmpi ne, %10, %c0_i32_9 : i32
    scf.if %11 {
      %c0_10 = arith.constant 0 : index
      %c0_11 = arith.constant 0 : index
      %12 = vector.load %arg8[%c0_10, %c0_11] : memref<64x32xf32, #tpu.memory_space<vmem>>, vector<64x32xf32>
      %c0_12 = arith.constant 0 : index
      %c0_13 = arith.constant 0 : index
      %13 = vector.load %arg5[%c0_12, %c0_13] : memref<1x32xf32, #tpu.memory_space<vmem>>, vector<1x32xf32>
      %14 = vector.broadcast %13 : vector<1x32xf32> to vector<64x32xf32>
      %15 = arith.addf %12, %14 : vector<64x32xf32>
      %c0_14 = arith.constant 0 : index
      %c0_15 = arith.constant 0 : index
      %16 = vector.load %arg6[%c0_14, %c0_15] : memref<64x32xbf16, #tpu.memory_space<vmem>>, vector<64x32xbf16>
      %17 = arith.extf %16 : vector<64x32xbf16> to vector<64x32xf32>
      %18 = arith.addf %15, %17 : vector<64x32xf32>
      %19 = arith.truncf %18 : vector<64x32xf32> to vector<64x32xbf16>
      %c0_16 = arith.constant 0 : index
      %c0_17 = arith.constant 0 : index
      %20 = vector.load %arg7[%c0_16, %c0_17] : memref<64x32xbf16, #tpu.memory_space<vmem>>, vector<64x32xbf16>
      tpu.vector_store %arg7[%c0_16, %c0_17], %19 {strides = array<i32>} : memref<64x32xbf16, #tpu.memory_space<vmem>>, vector<64x32xbf16>,
    } else {
    }
    return
  }
  func.func @transform_0(%arg0: i32, %arg1: i32, %arg2: i32) -> (i32, i32) {
    %c0_i32 = arith.constant 0 : i32
    return %arg0, %arg2 : i32, i32
  }
  func.func @transform_1(%arg0: i32, %arg1: i32, %arg2: i32) -> (i32, i32) {
    %c0_i32 = arith.constant 0 : i32
    return %arg2, %arg1 : i32, i32
  }
  func.func @transform_2(%arg0: i32, %arg1: i32, %arg2: i32) -> (i32, i32) {
    %c0_i32 = arith.constant 0 : i32
    %c0_i32_0 = arith.constant 0 : i32
    return %c0_i32, %arg1 : i32, i32
  }
  func.func @transform_3(%arg0: i32, %arg1: i32, %arg2: i32) -> (i32, i32) {
    %c0_i32 = arith.constant 0 : i32
    return %arg0, %arg1 : i32, i32
  }
  func.func @transform_4(%arg0: i32, %arg1: i32, %arg2: i32) -> (i32, i32) {
    %c0_i32 = arith.constant 0 : i32
    return %arg0, %arg1 : i32, i32
  }
}

module attributes {stable_mosaic.version = 11 : i64} {
  func.func @_attention_kernel(%arg0: i32, %arg1: i32, %arg2: memref<1x32x32xbf16, #tpu.memory_space<vmem>>, %arg3: memref<1x32x32xbf16, #tpu.memory_space<vmem>>, %arg4: memref<1x32x32xbf16, #tpu.memory_space<vmem>>, %arg5: memref<1x32x32xbf16, #tpu.memory_space<vmem>>) attributes {dimension_semantics = [#tpu.dimension_semantics<parallel>, #tpu.dimension_semantics<parallel>], iteration_bounds = array<i64: 2, 1>, scalar_prefetch = 0 : i64, scratch_operands = 0 : i64, tpu.core_type = #tpu.core_type<tc>, window_params = [{transform_indices = @transform_0, window_bounds = array<i64: 1, 32, 32>}, {transform_indices = @transform_1, window_bounds = array<i64: 1, 32, 32>}, {transform_indices = @transform_2, window_bounds = array<i64: 1, 32, 32>}, {transform_indices = @transform_3, window_bounds = array<i64: 1, 32, 32>}]} {
    %c0 = arith.constant 0 : index
    %c0_0 = arith.constant 0 : index
    %c0_1 = arith.constant 0 : index
    %0 = vector.load %arg2[%c0, %c0_0, %c0_1] : memref<1x32x32xbf16, #tpu.memory_space<vmem>>, vector<1x32x32xbf16>
    %1 = vector.shape_cast %0 : vector<1x32x32xbf16> to vector<32x32xbf16>
    %c0_2 = arith.constant 0 : index
    %c0_3 = arith.constant 0 : index
    %c0_4 = arith.constant 0 : index
    %2 = vector.load %arg3[%c0_2, %c0_3, %c0_4] : memref<1x32x32xbf16, #tpu.memory_space<vmem>>, vector<1x32x32xbf16>
    %3 = vector.shape_cast %2 : vector<1x32x32xbf16> to vector<32x32xbf16>
    %c0_5 = arith.constant 0 : index
    %c0_6 = arith.constant 0 : index
    %c0_7 = arith.constant 0 : index
    %4 = vector.load %arg4[%c0_5, %c0_6, %c0_7] : memref<1x32x32xbf16, #tpu.memory_space<vmem>>, vector<1x32x32xbf16>
    %5 = vector.shape_cast %4 : vector<1x32x32xbf16> to vector<32x32xbf16>
    %6 = tpu.iota {dimensions = array<i32: 1>} : vector<1x32xi32>
    %c17_i32 = arith.constant 17 : i32
    %7 = vector.broadcast %c17_i32 : i32 to vector<1x32xi32>
    %8 = arith.cmpi slt, %6, %7 : vector<1x32xi32>
    %cst = arith.constant 0.000000e+00 : f32
    %cst_8 = arith.constant -1.000000e+30 : f32
    %9 = vector.broadcast %cst : f32 to vector<1x32xf32>
    %10 = vector.broadcast %cst_8 : f32 to vector<1x32xf32>
    %11 = arith.select %8, %9, %10 : vector<1x32xi1>, vector<1x32xf32>
    %12 = vector.extract_strided_slice %1 {offsets = [0, 0], sizes = [32, 16], strides = [1, 1]} : vector<32x32xbf16> to vector<32x16xbf16>
    %13 = vector.extract_strided_slice %3 {offsets = [0, 0], sizes = [32, 16], strides = [1, 1]} : vector<32x32xbf16> to vector<32x16xbf16>
    %14 = vector.extract_strided_slice %5 {offsets = [0, 0], sizes = [32, 16], strides = [1, 1]} : vector<32x32xbf16> to vector<32x16xbf16>
    %cst_9 = arith.constant dense<0.000000e+00> : vector<32x32xf32>
    %15 = tpu.matmul %12, %13, %cst_9 {dimension_numbers = #tpu.dot_dimension_numbers<[1], [1], [0], [0], [0, 0, 1, 0], [], []>} : vector<32x16xbf16>, vector<32x16xbf16>, vector<32x32xf32> -> vector<32x32xf32>
    %cst_10 = arith.constant 2.500000e-01 : f32
    %16 = vector.broadcast %cst_10 : f32 to vector<32x32xf32>
    %17 = arith.mulf %15, %16 : vector<32x32xf32>
    %18 = vector.broadcast %11 : vector<1x32xf32> to vector<32x32xf32>
    %19 = arith.addf %17, %18 : vector<32x32xf32>
    %cst_11 = arith.constant dense<0xFF800000> : vector<32xf32>
    %20 = vector.multi_reduction <maximumf>, %19, %cst_11 [1] : vector<32x32xf32> to vector<32xf32>
    %21 = vector.shape_cast %20 : vector<32xf32> to vector<32x1xf32>
    %22 = vector.broadcast %21 : vector<32x1xf32> to vector<32x32xf32>
    %23 = arith.subf %19, %22 : vector<32x32xf32>
    %24 = math.exp %23 : vector<32x32xf32>
    %cst_12 = arith.constant dense<0.000000e+00> : vector<32xf32>
    %25 = vector.multi_reduction <add>, %24, %cst_12 [1] : vector<32x32xf32> to vector<32xf32>
    %26 = vector.shape_cast %25 : vector<32xf32> to vector<32x1xf32>
    %27 = tpu.reciprocal %26 {approx = true} : vector<32x1xf32> -> vector<32x1xf32>
    %28 = vector.broadcast %27 : vector<32x1xf32> to vector<32x32xf32>
    %29 = arith.mulf %24, %28 : vector<32x32xf32>
    %30 = arith.truncf %29 : vector<32x32xf32> to vector<32x32xbf16>
    %cst_13 = arith.constant dense<0.000000e+00> : vector<32x16xf32>
    %31 = tpu.matmul %30, %14, %cst_13 {dimension_numbers = #tpu.dot_dimension_numbers<[1], [0], [0], [1], [0, 0, 1, 1], [], []>} : vector<32x32xbf16>, vector<32x16xbf16>, vector<32x16xf32> -> vector<32x16xf32>
    %32 = vector.extract_strided_slice %1 {offsets = [0, 16], sizes = [32, 16], strides = [1, 1]} : vector<32x32xbf16> to vector<32x16xbf16>
    %33 = vector.extract_strided_slice %3 {offsets = [0, 16], sizes = [32, 16], strides = [1, 1]} : vector<32x32xbf16> to vector<32x16xbf16>
    %34 = vector.extract_strided_slice %5 {offsets = [0, 16], sizes = [32, 16], strides = [1, 1]} : vector<32x32xbf16> to vector<32x16xbf16>
    %cst_14 = arith.constant dense<0.000000e+00> : vector<32x32xf32>
    %35 = tpu.matmul %32, %33, %cst_14 {dimension_numbers = #tpu.dot_dimension_numbers<[1], [1], [0], [0], [0, 0, 1, 0], [], []>} : vector<32x16xbf16>, vector<32x16xbf16>, vector<32x32xf32> -> vector<32x32xf32>
    %cst_15 = arith.constant 2.500000e-01 : f32
    %36 = vector.broadcast %cst_15 : f32 to vector<32x32xf32>
    %37 = arith.mulf %35, %36 : vector<32x32xf32>
    %38 = vector.broadcast %11 : vector<1x32xf32> to vector<32x32xf32>
    %39 = arith.addf %37, %38 : vector<32x32xf32>
    %cst_16 = arith.constant dense<0xFF800000> : vector<32xf32>
    %40 = vector.multi_reduction <maximumf>, %39, %cst_16 [1] : vector<32x32xf32> to vector<32xf32>
    %41 = vector.shape_cast %40 : vector<32xf32> to vector<32x1xf32>
    %42 = vector.broadcast %41 : vector<32x1xf32> to vector<32x32xf32>
    %43 = arith.subf %39, %42 : vector<32x32xf32>
    %44 = math.exp %43 : vector<32x32xf32>
    %cst_17 = arith.constant dense<0.000000e+00> : vector<32xf32>
    %45 = vector.multi_reduction <add>, %44, %cst_17 [1] : vector<32x32xf32> to vector<32xf32>
    %46 = vector.shape_cast %45 : vector<32xf32> to vector<32x1xf32>
    %47 = tpu.reciprocal %46 {approx = true} : vector<32x1xf32> -> vector<32x1xf32>
    %48 = vector.broadcast %47 : vector<32x1xf32> to vector<32x32xf32>
    %49 = arith.mulf %44, %48 : vector<32x32xf32>
    %50 = arith.truncf %49 : vector<32x32xf32> to vector<32x32xbf16>
    %cst_18 = arith.constant dense<0.000000e+00> : vector<32x16xf32>
    %51 = tpu.matmul %50, %34, %cst_18 {dimension_numbers = #tpu.dot_dimension_numbers<[1], [0], [0], [1], [0, 0, 1, 1], [], []>} : vector<32x32xbf16>, vector<32x16xbf16>, vector<32x16xf32> -> vector<32x16xf32>
    %52 = tpu.concatenate %31, %51 in 1 : vector<32x16xf32>, vector<32x16xf32> -> vector<32x32xf32>
    %53 = arith.truncf %52 : vector<32x32xf32> to vector<32x32xbf16>
    %c0_19 = arith.constant 0 : index
    %c0_20 = arith.constant 0 : index
    %c0_21 = arith.constant 0 : index
    %54 = vector.load %arg5[%c0_19, %c0_20, %c0_21] : memref<1x32x32xbf16, #tpu.memory_space<vmem>>, vector<1x32x32xbf16>
    %55 = vector.shape_cast %54 : vector<1x32x32xbf16> to vector<32x32xbf16>
    %56 = vector.shape_cast %53 : vector<32x32xbf16> to vector<1x32x32xbf16>
    tpu.vector_store %arg5[%c0_19, %c0_20, %c0_21], %56 {strides = array<i32>} : memref<1x32x32xbf16, #tpu.memory_space<vmem>>, vector<1x32x32xbf16>,
    return
  }
  func.func @transform_0(%arg0: i32, %arg1: i32) -> (i32, i32, i32) {
    %c0_i32 = arith.constant 0 : i32
    %c0_i32_0 = arith.constant 0 : i32
    return %arg0, %arg1, %c0_i32 : i32, i32, i32
  }
  func.func @transform_1(%arg0: i32, %arg1: i32) -> (i32, i32, i32) {
    %c0_i32 = arith.constant 0 : i32
    %c0_i32_0 = arith.constant 0 : i32
    %c0_i32_1 = arith.constant 0 : i32
    return %arg0, %c0_i32, %c0_i32_0 : i32, i32, i32
  }
  func.func @transform_2(%arg0: i32, %arg1: i32) -> (i32, i32, i32) {
    %c0_i32 = arith.constant 0 : i32
    %c0_i32_0 = arith.constant 0 : i32
    %c0_i32_1 = arith.constant 0 : i32
    return %arg0, %c0_i32, %c0_i32_0 : i32, i32, i32
  }
  func.func @transform_3(%arg0: i32, %arg1: i32) -> (i32, i32, i32) {
    %c0_i32 = arith.constant 0 : i32
    %c0_i32_0 = arith.constant 0 : i32
    return %arg0, %arg1, %c0_i32 : i32, i32, i32
  }
}

module attributes {stable_mosaic.version = 11 : i64} {
  func.func @_linear_kernel(%arg0: i32, %arg1: i32, %arg2: i32, %arg3: memref<64x32xbf16, #tpu.memory_space<vmem>>, %arg4: memref<32x128xbf16, #tpu.memory_space<vmem>>, %arg5: memref<1x128xf32, #tpu.memory_space<vmem>>, %arg6: memref<64x128xbf16, #tpu.memory_space<vmem>>, %arg7: memref<64x128xf32, #tpu.memory_space<vmem>>) attributes {dimension_semantics = [#tpu.dimension_semantics<parallel>, #tpu.dimension_semantics<parallel>, #tpu.dimension_semantics<arbitrary>], iteration_bounds = array<i64: 1, 1, 1>, scalar_prefetch = 0 : i64, scratch_operands = 1 : i64, tpu.core_type = #tpu.core_type<tc>, window_params = [{transform_indices = @transform_0, window_bounds = array<i64: 64, 32>}, {transform_indices = @transform_1, window_bounds = array<i64: 32, 128>}, {transform_indices = @transform_2, window_bounds = array<i64: 1, 128>}, {transform_indices = @transform_3, window_bounds = array<i64: 64, 128>}]} {
    %c0_i32 = arith.constant 0 : i32
    %0 = arith.cmpi eq, %arg2, %c0_i32 : i32
    %1 = arith.extui %0 : i1 to i32
    %c0_i32_0 = arith.constant 0 : i32
    %2 = arith.cmpi ne, %1, %c0_i32_0 : i32
    scf.if %2 {
      %cst_10 = arith.constant 0.000000e+00 : f32
      %12 = vector.broadcast %cst_10 : f32 to vector<64x128xf32>
      %c0_11 = arith.constant 0 : index
      %c0_12 = arith.constant 0 : index
      %13 = vector.load %arg7[%c0_11, %c0_12] : memref<64x128xf32, #tpu.memory_space<vmem>>, vector<64x128xf32>
      tpu.vector_store %arg7[%c0_11, %c0_12], %12 {strides = array<i32>} : memref<64x128xf32, #tpu.memory_space<vmem>>, vector<64x128xf32>,
    } else {
    }
    %c0 = arith.constant 0 : index
    %c0_1 = arith.constant 0 : index
    %3 = vector.load %arg7[%c0, %c0_1] : memref<64x128xf32, #tpu.memory_space<vmem>>, vector<64x128xf32>
    %c0_2 = arith.constant 0 : index
    %c0_3 = arith.constant 0 : index
    %4 = vector.load %arg3[%c0_2, %c0_3] : memref<64x32xbf16, #tpu.memory_space<vmem>>, vector<64x32xbf16>
    %c0_4 = arith.constant 0 : index
    %c0_5 = arith.constant 0 : index
    %5 = vector.load %arg4[%c0_4, %c0_5] : memref<32x128xbf16, #tpu.memory_space<vmem>>, vector<32x128xbf16>
    %cst = arith.constant dense<0.000000e+00> : vector<64x128xf32>
    %6 = tpu.matmul %4, %5, %cst {dimension_numbers = #tpu.dot_dimension_numbers<[1], [0], [0], [1], [0, 0, 1, 1], [], []>} : vector<64x32xbf16>, vector<32x128xbf16>, vector<64x128xf32> -> vector<64x128xf32>
    %7 = arith.addf %3, %6 : vector<64x128xf32>
    %c0_6 = arith.constant 0 : index
    %c0_7 = arith.constant 0 : index
    %8 = vector.load %arg7[%c0_6, %c0_7] : memref<64x128xf32, #tpu.memory_space<vmem>>, vector<64x128xf32>
    tpu.vector_store %arg7[%c0_6, %c0_7], %7 {strides = array<i32>} : memref<64x128xf32, #tpu.memory_space<vmem>>, vector<64x128xf32>,
    %c0_i32_8 = arith.constant 0 : i32
    %9 = arith.cmpi eq, %arg2, %c0_i32_8 : i32
    %10 = arith.extui %9 : i1 to i32
    %c0_i32_9 = arith.constant 0 : i32
    %11 = arith.cmpi ne, %10, %c0_i32_9 : i32
    scf.if %11 {
      %c0_10 = arith.constant 0 : index
      %c0_11 = arith.constant 0 : index
      %12 = vector.load %arg7[%c0_10, %c0_11] : memref<64x128xf32, #tpu.memory_space<vmem>>, vector<64x128xf32>
      %c0_12 = arith.constant 0 : index
      %c0_13 = arith.constant 0 : index
      %13 = vector.load %arg5[%c0_12, %c0_13] : memref<1x128xf32, #tpu.memory_space<vmem>>, vector<1x128xf32>
      %14 = vector.broadcast %13 : vector<1x128xf32> to vector<64x128xf32>
      %15 = arith.addf %12, %14 : vector<64x128xf32>
      %cst_14 = arith.constant 1.702000e+00 : f32
      %16 = vector.broadcast %cst_14 : f32 to vector<64x128xf32>
      %17 = arith.mulf %16, %15 : vector<64x128xf32>
      %18 = arith.negf %17 : vector<64x128xf32>
      %19 = math.exp %18 : vector<64x128xf32>
      %cst_15 = arith.constant 1.000000e+00 : f32
      %20 = vector.broadcast %cst_15 : f32 to vector<64x128xf32>
      %21 = arith.addf %20, %19 : vector<64x128xf32>
      %22 = arith.divf %20, %21 : vector<64x128xf32>
      %23 = arith.mulf %15, %22 : vector<64x128xf32>
      %24 = arith.truncf %23 : vector<64x128xf32> to vector<64x128xbf16>
      %c0_16 = arith.constant 0 : index
      %c0_17 = arith.constant 0 : index
      %25 = vector.load %arg6[%c0_16, %c0_17] : memref<64x128xbf16, #tpu.memory_space<vmem>>, vector<64x128xbf16>
      tpu.vector_store %arg6[%c0_16, %c0_17], %24 {strides = array<i32>} : memref<64x128xbf16, #tpu.memory_space<vmem>>, vector<64x128xbf16>,
    } else {
    }
    return
  }
  func.func @transform_0(%arg0: i32, %arg1: i32, %arg2: i32) -> (i32, i32) {
    %c0_i32 = arith.constant 0 : i32
    return %arg0, %arg2 : i32, i32
  }
  func.func @transform_1(%arg0: i32, %arg1: i32, %arg2: i32) -> (i32, i32) {
    %c0_i32 = arith.constant 0 : i32
    return %arg2, %arg1 : i32, i32
  }
  func.func @transform_2(%arg0: i32, %arg1: i32, %arg2: i32) -> (i32, i32) {
    %c0_i32 = arith.constant 0 : i32
    %c0_i32_0 = arith.constant 0 : i32
    return %c0_i32, %arg1 : i32, i32
  }
  func.func @transform_3(%arg0: i32, %arg1: i32, %arg2: i32) -> (i32, i32) {
    %c0_i32 = arith.constant 0 : i32
    return %arg0, %arg1 : i32, i32
  }
}

module attributes {stable_mosaic.version = 11 : i64} {
  func.func @_linear_residual_kernel(%arg0: i32, %arg1: i32, %arg2: i32, %arg3: memref<64x128xbf16, #tpu.memory_space<vmem>>, %arg4: memref<128x32xbf16, #tpu.memory_space<vmem>>, %arg5: memref<1x32xf32, #tpu.memory_space<vmem>>, %arg6: memref<64x32xbf16, #tpu.memory_space<vmem>>, %arg7: memref<64x32xbf16, #tpu.memory_space<vmem>>, %arg8: memref<64x32xf32, #tpu.memory_space<vmem>>) attributes {dimension_semantics = [#tpu.dimension_semantics<parallel>, #tpu.dimension_semantics<parallel>, #tpu.dimension_semantics<arbitrary>], iteration_bounds = array<i64: 1, 1, 1>, scalar_prefetch = 0 : i64, scratch_operands = 1 : i64, tpu.core_type = #tpu.core_type<tc>, window_params = [{transform_indices = @transform_0, window_bounds = array<i64: 64, 128>}, {transform_indices = @transform_1, window_bounds = array<i64: 128, 32>}, {transform_indices = @transform_2, window_bounds = array<i64: 1, 32>}, {transform_indices = @transform_3, window_bounds = array<i64: 64, 32>}, {transform_indices = @transform_4, window_bounds = array<i64: 64, 32>}]} {
    %c0_i32 = arith.constant 0 : i32
    %0 = arith.cmpi eq, %arg2, %c0_i32 : i32
    %1 = arith.extui %0 : i1 to i32
    %c0_i32_0 = arith.constant 0 : i32
    %2 = arith.cmpi ne, %1, %c0_i32_0 : i32
    scf.if %2 {
      %cst_10 = arith.constant 0.000000e+00 : f32
      %12 = vector.broadcast %cst_10 : f32 to vector<64x32xf32>
      %c0_11 = arith.constant 0 : index
      %c0_12 = arith.constant 0 : index
      %13 = vector.load %arg8[%c0_11, %c0_12] : memref<64x32xf32, #tpu.memory_space<vmem>>, vector<64x32xf32>
      tpu.vector_store %arg8[%c0_11, %c0_12], %12 {strides = array<i32>} : memref<64x32xf32, #tpu.memory_space<vmem>>, vector<64x32xf32>,
    } else {
    }
    %c0 = arith.constant 0 : index
    %c0_1 = arith.constant 0 : index
    %3 = vector.load %arg8[%c0, %c0_1] : memref<64x32xf32, #tpu.memory_space<vmem>>, vector<64x32xf32>
    %c0_2 = arith.constant 0 : index
    %c0_3 = arith.constant 0 : index
    %4 = vector.load %arg3[%c0_2, %c0_3] : memref<64x128xbf16, #tpu.memory_space<vmem>>, vector<64x128xbf16>
    %c0_4 = arith.constant 0 : index
    %c0_5 = arith.constant 0 : index
    %5 = vector.load %arg4[%c0_4, %c0_5] : memref<128x32xbf16, #tpu.memory_space<vmem>>, vector<128x32xbf16>
    %cst = arith.constant dense<0.000000e+00> : vector<64x32xf32>
    %6 = tpu.matmul %4, %5, %cst {dimension_numbers = #tpu.dot_dimension_numbers<[1], [0], [0], [1], [0, 0, 1, 1], [], []>} : vector<64x128xbf16>, vector<128x32xbf16>, vector<64x32xf32> -> vector<64x32xf32>
    %7 = arith.addf %3, %6 : vector<64x32xf32>
    %c0_6 = arith.constant 0 : index
    %c0_7 = arith.constant 0 : index
    %8 = vector.load %arg8[%c0_6, %c0_7] : memref<64x32xf32, #tpu.memory_space<vmem>>, vector<64x32xf32>
    tpu.vector_store %arg8[%c0_6, %c0_7], %7 {strides = array<i32>} : memref<64x32xf32, #tpu.memory_space<vmem>>, vector<64x32xf32>,
    %c0_i32_8 = arith.constant 0 : i32
    %9 = arith.cmpi eq, %arg2, %c0_i32_8 : i32
    %10 = arith.extui %9 : i1 to i32
    %c0_i32_9 = arith.constant 0 : i32
    %11 = arith.cmpi ne, %10, %c0_i32_9 : i32
    scf.if %11 {
      %c0_10 = arith.constant 0 : index
      %c0_11 = arith.constant 0 : index
      %12 = vector.load %arg8[%c0_10, %c0_11] : memref<64x32xf32, #tpu.memory_space<vmem>>, vector<64x32xf32>
      %c0_12 = arith.constant 0 : index
      %c0_13 = arith.constant 0 : index
      %13 = vector.load %arg5[%c0_12, %c0_13] : memref<1x32xf32, #tpu.memory_space<vmem>>, vector<1x32xf32>
      %14 = vector.broadcast %13 : vector<1x32xf32> to vector<64x32xf32>
      %15 = arith.addf %12, %14 : vector<64x32xf32>
      %c0_14 = arith.constant 0 : index
      %c0_15 = arith.constant 0 : index
      %16 = vector.load %arg6[%c0_14, %c0_15] : memref<64x32xbf16, #tpu.memory_space<vmem>>, vector<64x32xbf16>
      %17 = arith.extf %16 : vector<64x32xbf16> to vector<64x32xf32>
      %18 = arith.addf %15, %17 : vector<64x32xf32>
      %19 = arith.truncf %18 : vector<64x32xf32> to vector<64x32xbf16>
      %c0_16 = arith.constant 0 : index
      %c0_17 = arith.constant 0 : index
      %20 = vector.load %arg7[%c0_16, %c0_17] : memref<64x32xbf16, #tpu.memory_space<vmem>>, vector<64x32xbf16>
      tpu.vector_store %arg7[%c0_16, %c0_17], %19 {strides = array<i32>} : memref<64x32xbf16, #tpu.memory_space<vmem>>, vector<64x32xbf16>,
    } else {
    }
    return
  }
  func.func @transform_0(%arg0: i32, %arg1: i32, %arg2: i32) -> (i32, i32) {
    %c0_i32 = arith.constant 0 : i32
    return %arg0, %arg2 : i32, i32
  }
  func.func @transform_1(%arg0: i32, %arg1: i32, %arg2: i32) -> (i32, i32) {
    %c0_i32 = arith.constant 0 : i32
    return %arg2, %arg1 : i32, i32
  }
  func.func @transform_2(%arg0: i32, %arg1: i32, %arg2: i32) -> (i32, i32) {
    %c0_i32 = arith.constant 0 : i32
    %c0_i32_0 = arith.constant 0 : i32
    return %c0_i32, %arg1 : i32, i32
  }
  func.func @transform_3(%arg0: i32, %arg1: i32, %arg2: i32) -> (i32, i32) {
    %c0_i32 = arith.constant 0 : i32
    return %arg0, %arg1 : i32, i32
  }
  func.func @transform_4(%arg0: i32, %arg1: i32, %arg2: i32) -> (i32, i32) {
    %c0_i32 = arith.constant 0 : i32
    return %arg0, %arg1 : i32, i32
  }
}

module attributes {stable_mosaic.version = 11 : i64} {
  func.func @_linear_kernel(%arg0: i32, %arg1: i32, %arg2: i32, %arg3: memref<2x32xbf16, #tpu.memory_space<vmem>>, %arg4: memref<32x32xbf16, #tpu.memory_space<vmem>>, %arg5: memref<1x32xf32, #tpu.memory_space<vmem>>, %arg6: memref<2x32xf32, #tpu.memory_space<vmem>>, %arg7: memref<2x32xf32, #tpu.memory_space<vmem>>) attributes {dimension_semantics = [#tpu.dimension_semantics<parallel>, #tpu.dimension_semantics<parallel>, #tpu.dimension_semantics<arbitrary>], iteration_bounds = array<i64: 1, 1, 1>, scalar_prefetch = 0 : i64, scratch_operands = 1 : i64, tpu.core_type = #tpu.core_type<tc>, window_params = [{transform_indices = @transform_0, window_bounds = array<i64: 2, 32>}, {transform_indices = @transform_1, window_bounds = array<i64: 32, 32>}, {transform_indices = @transform_2, window_bounds = array<i64: 1, 32>}, {transform_indices = @transform_3, window_bounds = array<i64: 2, 32>}]} {
    %c0_i32 = arith.constant 0 : i32
    %0 = arith.cmpi eq, %arg2, %c0_i32 : i32
    %1 = arith.extui %0 : i1 to i32
    %c0_i32_0 = arith.constant 0 : i32
    %2 = arith.cmpi ne, %1, %c0_i32_0 : i32
    scf.if %2 {
      %cst_10 = arith.constant 0.000000e+00 : f32
      %12 = vector.broadcast %cst_10 : f32 to vector<2x32xf32>
      %c0_11 = arith.constant 0 : index
      %c0_12 = arith.constant 0 : index
      %13 = vector.load %arg7[%c0_11, %c0_12] : memref<2x32xf32, #tpu.memory_space<vmem>>, vector<2x32xf32>
      tpu.vector_store %arg7[%c0_11, %c0_12], %12 {strides = array<i32>} : memref<2x32xf32, #tpu.memory_space<vmem>>, vector<2x32xf32>,
    } else {
    }
    %c0 = arith.constant 0 : index
    %c0_1 = arith.constant 0 : index
    %3 = vector.load %arg7[%c0, %c0_1] : memref<2x32xf32, #tpu.memory_space<vmem>>, vector<2x32xf32>
    %c0_2 = arith.constant 0 : index
    %c0_3 = arith.constant 0 : index
    %4 = vector.load %arg3[%c0_2, %c0_3] : memref<2x32xbf16, #tpu.memory_space<vmem>>, vector<2x32xbf16>
    %c0_4 = arith.constant 0 : index
    %c0_5 = arith.constant 0 : index
    %5 = vector.load %arg4[%c0_4, %c0_5] : memref<32x32xbf16, #tpu.memory_space<vmem>>, vector<32x32xbf16>
    %cst = arith.constant dense<0.000000e+00> : vector<2x32xf32>
    %6 = tpu.matmul %4, %5, %cst {dimension_numbers = #tpu.dot_dimension_numbers<[1], [0], [0], [1], [0, 0, 1, 1], [], []>} : vector<2x32xbf16>, vector<32x32xbf16>, vector<2x32xf32> -> vector<2x32xf32>
    %7 = arith.addf %3, %6 : vector<2x32xf32>
    %c0_6 = arith.constant 0 : index
    %c0_7 = arith.constant 0 : index
    %8 = vector.load %arg7[%c0_6, %c0_7] : memref<2x32xf32, #tpu.memory_space<vmem>>, vector<2x32xf32>
    tpu.vector_store %arg7[%c0_6, %c0_7], %7 {strides = array<i32>} : memref<2x32xf32, #tpu.memory_space<vmem>>, vector<2x32xf32>,
    %c0_i32_8 = arith.constant 0 : i32
    %9 = arith.cmpi eq, %arg2, %c0_i32_8 : i32
    %10 = arith.extui %9 : i1 to i32
    %c0_i32_9 = arith.constant 0 : i32
    %11 = arith.cmpi ne, %10, %c0_i32_9 : i32
    scf.if %11 {
      %c0_10 = arith.constant 0 : index
      %c0_11 = arith.constant 0 : index
      %12 = vector.load %arg7[%c0_10, %c0_11] : memref<2x32xf32, #tpu.memory_space<vmem>>, vector<2x32xf32>
      %c0_12 = arith.constant 0 : index
      %c0_13 = arith.constant 0 : index
      %13 = vector.load %arg5[%c0_12, %c0_13] : memref<1x32xf32, #tpu.memory_space<vmem>>, vector<1x32xf32>
      %14 = vector.broadcast %13 : vector<1x32xf32> to vector<2x32xf32>
      %15 = arith.addf %12, %14 : vector<2x32xf32>
      %c0_14 = arith.constant 0 : index
      %c0_15 = arith.constant 0 : index
      %16 = vector.load %arg6[%c0_14, %c0_15] : memref<2x32xf32, #tpu.memory_space<vmem>>, vector<2x32xf32>
      tpu.vector_store %arg6[%c0_14, %c0_15], %15 {strides = array<i32>} : memref<2x32xf32, #tpu.memory_space<vmem>>, vector<2x32xf32>,
    } else {
    }
    return
  }
  func.func @transform_0(%arg0: i32, %arg1: i32, %arg2: i32) -> (i32, i32) {
    %c0_i32 = arith.constant 0 : i32
    return %arg0, %arg2 : i32, i32
  }
  func.func @transform_1(%arg0: i32, %arg1: i32, %arg2: i32) -> (i32, i32) {
    %c0_i32 = arith.constant 0 : i32
    return %arg2, %arg1 : i32, i32
  }
  func.func @transform_2(%arg0: i32, %arg1: i32, %arg2: i32) -> (i32, i32) {
    %c0_i32 = arith.constant 0 : i32
    %c0_i32_0 = arith.constant 0 : i32
    return %c0_i32, %arg1 : i32, i32
  }
  func.func @transform_3(%arg0: i32, %arg1: i32, %arg2: i32) -> (i32, i32) {
    %c0_i32 = arith.constant 0 : i32
    return %arg0, %arg1 : i32, i32
  }
}

module attributes {stable_mosaic.version = 11 : i64} {
  func.func @_layernorm_kernel(%arg0: i32, %arg1: memref<2x32xbf16, #tpu.memory_space<vmem>>, %arg2: memref<1x32xf32, #tpu.memory_space<vmem>>, %arg3: memref<1x32xf32, #tpu.memory_space<vmem>>, %arg4: memref<2x32xbf16, #tpu.memory_space<vmem>>) attributes {dimension_semantics = [#tpu.dimension_semantics<parallel>], iteration_bounds = array<i64: 1>, scalar_prefetch = 0 : i64, scratch_operands = 0 : i64, tpu.core_type = #tpu.core_type<tc>, window_params = [{transform_indices = @transform_0, window_bounds = array<i64: 2, 32>}, {pipeline_mode = #tpu.pipeline_mode<synchronous>, transform_indices = @transform_1, window_bounds = array<i64: 1, 32>}, {pipeline_mode = #tpu.pipeline_mode<synchronous>, transform_indices = @transform_2, window_bounds = array<i64: 1, 32>}, {transform_indices = @transform_3, window_bounds = array<i64: 2, 32>}]} {
    %c0 = arith.constant 0 : index
    %c0_0 = arith.constant 0 : index
    %0 = vector.load %arg1[%c0, %c0_0] : memref<2x32xbf16, #tpu.memory_space<vmem>>, vector<2x32xbf16>
    %1 = arith.extf %0 : vector<2x32xbf16> to vector<2x32xf32>
    %cst = arith.constant dense<0.000000e+00> : vector<2xf32>
    %2 = vector.multi_reduction <add>, %1, %cst [1] : vector<2x32xf32> to vector<2xf32>
    %3 = vector.shape_cast %2 : vector<2xf32> to vector<2x1xf32>
    %cst_1 = arith.constant 3.200000e+01 : f32
    %4 = vector.broadcast %cst_1 : f32 to vector<2x1xf32>
    %5 = arith.divf %3, %4 : vector<2x1xf32>
    %6 = vector.broadcast %5 : vector<2x1xf32> to vector<2x32xf32>
    %7 = arith.subf %1, %6 : vector<2x32xf32>
    %8 = arith.mulf %7, %7 : vector<2x32xf32>
    %cst_2 = arith.constant dense<0.000000e+00> : vector<2xf32>
    %9 = vector.multi_reduction <add>, %8, %cst_2 [1] : vector<2x32xf32> to vector<2xf32>
    %10 = vector.shape_cast %9 : vector<2xf32> to vector<2x1xf32>
    %cst_3 = arith.constant 3.200000e+01 : f32
    %11 = vector.broadcast %cst_3 : f32 to vector<2x1xf32>
    %12 = arith.divf %10, %11 : vector<2x1xf32>
    %13 = vector.broadcast %5 : vector<2x1xf32> to vector<2x32xf32>
    %14 = arith.subf %1, %13 : vector<2x32xf32>
    %cst_4 = arith.constant 9.99999974E-6 : f32
    %15 = vector.broadcast %cst_4 : f32 to vector<2x1xf32>
    %16 = arith.addf %12, %15 : vector<2x1xf32>
    %17 = math.rsqrt %16 : vector<2x1xf32>
    %18 = vector.broadcast %17 : vector<2x1xf32> to vector<2x32xf32>
    %19 = arith.mulf %14, %18 : vector<2x32xf32>
    %c0_5 = arith.constant 0 : index
    %c0_6 = arith.constant 0 : index
    %20 = vector.load %arg2[%c0_5, %c0_6] : memref<1x32xf32, #tpu.memory_space<vmem>>, vector<1x32xf32>
    %21 = vector.broadcast %20 : vector<1x32xf32> to vector<2x32xf32>
    %22 = arith.mulf %19, %21 : vector<2x32xf32>
    %c0_7 = arith.constant 0 : index
    %c0_8 = arith.constant 0 : index
    %23 = vector.load %arg3[%c0_7, %c0_8] : memref<1x32xf32, #tpu.memory_space<vmem>>, vector<1x32xf32>
    %24 = vector.broadcast %23 : vector<1x32xf32> to vector<2x32xf32>
    %25 = arith.addf %22, %24 : vector<2x32xf32>
    %26 = arith.truncf %25 : vector<2x32xf32> to vector<2x32xbf16>
    %c0_9 = arith.constant 0 : index
    %c0_10 = arith.constant 0 : index
    %27 = vector.load %arg4[%c0_9, %c0_10] : memref<2x32xbf16, #tpu.memory_space<vmem>>, vector<2x32xbf16>
    tpu.vector_store %arg4[%c0_9, %c0_10], %26 {strides = array<i32>} : memref<2x32xbf16, #tpu.memory_space<vmem>>, vector<2x32xbf16>,
    return
  }
  func.func @transform_0(%arg0: i32) -> (i32, i32) {
    %c0_i32 = arith.constant 0 : i32
    %c0_i32_0 = arith.constant 0 : i32
    return %arg0, %c0_i32 : i32, i32
  }
  func.func @transform_1(%arg0: i32) -> (i32, i32) {
    %c0_i32 = arith.constant 0 : i32
    %c0_i32_0 = arith.constant 0 : i32
    %c0_i32_1 = arith.constant 0 : i32
    return %c0_i32, %c0_i32_0 : i32, i32
  }
  func.func @transform_2(%arg0: i32) -> (i32, i32) {
    %c0_i32 = arith.constant 0 : i32
    %c0_i32_0 = arith.constant 0 : i32
    %c0_i32_1 = arith.constant 0 : i32
    return %c0_i32, %c0_i32_0 : i32, i32
  }
  func.func @transform_3(%arg0: i32) -> (i32, i32) {
    %c0_i32 = arith.constant 0 : i32
    %c0_i32_0 = arith.constant 0 : i32
    return %arg0, %c0_i32 : i32, i32
  }
}

</mosaic_0001>

<llo_original>
// kernel: img_vision_transformer_forward.19
$region0: #{img_vision_transformer_forward.19}
  #allocation0 [shape = 'u32[]', space=smem, size = 0x4, offset = 0x4, fixed_abs, tag = 'smem constant byte address 0x4 - core index']
  #allocation1 [shape = 'u32[144,128]{1,0:T(1,128)}', space=vmem, size = 0x12000, scoped, tag = 'internal scratch']
  %s0 = inlined_call_operand.vmem [shape: f32[64,32], index: 0, kind: input, shape index: {}]
  %s1 = inlined_call_operand.vmem [shape: f32[1,32], index: 1, kind: input, shape index: {}]
  %s2 = inlined_call_operand.vmem [shape: f32[1,32], index: 2, kind: input, shape index: {}]
  %s3 = inlined_call_operand.vmem [shape: bf16[64,32], index: 3, kind: output, shape index: {}]
  %s4 = sld [smem:[#allocation0]]
  $region45: #{img_vision_transformer_forward.19} parent=0
    _
  %s6 = ssub.s32 1, %s4
  %s7 = scalar_select 0, %s6, %s4
  loop: start=0, step=1, limit=4
  $region2: #{img_vision_transformer_forward.19} parent=0 // loop_pre_header
    _
  $region3: #{img_vision_transformer_forward.19} parent=0 // loop_header
    %s9 = sphi 0, %s13
    %p10 = scmp.ge.s32.totalorder %s9, 4
    %s19 = sphi 0, %s21
    %s22 = sphi 0, %s19
    %s23 = sphi 0, %s22
    %s39 = sphi 0, %s23
    %s43 = sphi 0, %s43
    %s45 = sphi 0, %s43
    %s46 = sphi 0, %s45
    %s60 = sphi 0, %s46
    %s64 = sphi 0, %s64
    %s66 = sphi 0, %s64
    %s67 = sphi 0, %s66
    %s81 = sphi 0, %s67
    %s87 = sphi 0, %s89
    %s90 = sphi 0, %s87
    %s91 = sphi 0, %s90
    %s107 = sphi 0, %s91
  $region4: #{img_vision_transformer_forward.19} parent=0 // loop_header_branch
    %12 = sbr.rel (%p10) target = $region8
  $region5: #{img_vision_transformer_forward.19} parent=0 // loop_body
    %s14 = ssub.s32 %s9, 1
    %s15 = ssub.s32 %s9, 2
    %s16 = sadd.s32 %s9, 1
    %s17 = ssub.s32 %s9, %s16
    %p18 = scmp.eq.s32.totalorder %s17, 0
    %s20 = sadd.s32 %s19, 1
    %s21 = scalar_select %p18, %s19, %s20
    %p24 = pneg %p18
    %p25 = scmp.eq.s32.totalorder %s9, 1
    %p26 = por %p24, %p25
    %p27 = scmp.ne.s32.totalorder %s19, %s22
    %p28 = scmp.eq.s32.totalorder %s9, 0
    %p29 = por %p27, %p28
    %p30 = scmp.ne.s32.totalorder %s19, %s22
    %p31 = scmp.eq.s32.totalorder %s14, 1
    %p32 = por %p30, %p31
    %p33 = scmp.ne.s32.totalorder %s22, %s23
    %p34 = scmp.eq.s32.totalorder %s14, 0
    %p35 = por %p33, %p34
    %p36 = scmp.ne.s32.totalorder %s22, %s23
    %p37 = scmp.eq.s32.totalorder %s15, 1
    %p38 = por %p36, %p37
    %p40 = scmp.ne.s32.totalorder %s23, %s39
    %p41 = scmp.eq.s32.totalorder %s15, 0
    %p42 = por %p40, %p41
    %s44 = sadd.s32 %s43, 1
    %p47 = scmp.eq.s32.totalorder %s9, 1
    %p48 = scmp.ne.s32.totalorder %s43, %s45
    %p49 = scmp.eq.s32.totalorder %s9, 0
    %p50 = por %p48, %p49
    %p51 = scmp.ne.s32.totalorder %s43, %s45
    %p52 = scmp.eq.s32.totalorder %s14, 1
    %p53 = por %p51, %p52
    %p54 = scmp.ne.s32.totalorder %s45, %s46
    %p55 = scmp.eq.s32.totalorder %s14, 0
    %p56 = por %p54, %p55
    %p57 = scmp.ne.s32.totalorder %s45, %s46
    %p58 = scmp.eq.s32.totalorder %s15, 1
    %p59 = por %p57, %p58
    %p61 = scmp.ne.s32.totalorder %s46, %s60
    %p62 = scmp.eq.s32.totalorder %s15, 0
    %p63 = por %p61, %p62
    %s65 = sadd.s32 %s64, 1
    %p68 = scmp.eq.s32.totalorder %s9, 1
    %p69 = scmp.ne.s32.totalorder %s64, %s66
    %p70 = scmp.eq.s32.totalorder %s9, 0
    %p71 = por %p69, %p70
    %p72 = scmp.ne.s32.totalorder %s64, %s66
    %p73 = scmp.eq.s32.totalorder %s14, 1
    %p74 = por %p72, %p73
    %p75 = scmp.ne.s32.totalorder %s66, %s67
    %p76 = scmp.eq.s32.totalorder %s14, 0
    %p77 = por %p75, %p76
    %p78 = scmp.ne.s32.totalorder %s66, %s67
    %p79 = scmp.eq.s32.totalorder %s15, 1
    %p80 = por %p78, %p79
    %p82 = scmp.ne.s32.totalorder %s67, %s81
    %p83 = scmp.eq.s32.totalorder %s15, 0
    %p84 = por %p82, %p83
    %s85 = ssub.s32 %s9, %s16
    %p86 = scmp.eq.s32.totalorder %s85, 0
    %s88 = sadd.s32 %s87, 1
    %s89 = scalar_select %p86, %s87, %s88
    %p92 = pneg %p86
    %p93 = scmp.eq.s32.totalorder %s9, 1
    %p94 = por %p92, %p93
    %p95 = scmp.ne.s32.totalorder %s87, %s90
    %p96 = scmp.eq.s32.totalorder %s9, 0
    %p97 = por %p95, %p96
    %p98 = scmp.ne.s32.totalorder %s87, %s90
    %p99 = scmp.eq.s32.totalorder %s14, 1
    %p100 = por %p98, %p99
    %p101 = scmp.ne.s32.totalorder %s90, %s91
    %p102 = scmp.eq.s32.totalorder %s14, 0
    %p103 = por %p101, %p102
    %p104 = scmp.ne.s32.totalorder %s90, %s91
    %p105 = scmp.eq.s32.totalorder %s15, 1
    %p106 = por %p104, %p105
    %p108 = scmp.ne.s32.totalorder %s91, %s107
    %p109 = scmp.eq.s32.totalorder %s15, 0
    %p110 = por %p108, %p109
    %p111 = scmp.le.s32.totalorder 1, %s9
    %p112 = scmp.lt.s32.totalorder %s9, 3
    %p113 = pnand %p111, %p112
    %p114 = pneg %p113
    // Predicated region
    $region9: #{img_vision_transformer_forward.19} parent=5 // pred_check
      _
    $region10: #{img_vision_transformer_forward.19} parent=5 // pred_check_branch
      %116 = sbr.rel (%p113) target = $region12
    $region11: #{img_vision_transformer_forward.19} parent=5 // pred_region
      %s117 = ssub.s32 %s9, 1
      // Predicated region
      $region13: #{img_vision_transformer_forward.19} parent=11 // pred_check
        %p118 = pneg %p56
      $region14: #{img_vision_transformer_forward.19} parent=11 // pred_check_branch
        %120 = sbr.rel (%p118) target = $region16
      $region15: #{img_vision_transformer_forward.19} parent=11 // pred_region
        _
      $region16: #{img_vision_transformer_forward.19} parent=11 // pred_fallthru
        _
      // Predicated region
      $region17: #{img_vision_transformer_forward.19} parent=11 // pred_check
        %p121 = pneg %p77
      $region18: #{img_vision_transformer_forward.19} parent=11 // pred_check_branch
        %123 = sbr.rel (%p121) target = $region20
      $region19: #{img_vision_transformer_forward.19} parent=11 // pred_region
        _
      $region20: #{img_vision_transformer_forward.19} parent=11 // pred_fallthru
        _
    $region12: #{img_vision_transformer_forward.19} parent=5 // pred_fallthru
      _
    %p124 = scmp.lt.s32.totalorder %s9, 2
    // Predicated region
    $region21: #{img_vision_transformer_forward.19} parent=5 // pred_check
      %p125 = pneg %p124
    $region22: #{img_vision_transformer_forward.19} parent=5 // pred_check_branch
      %127 = sbr.rel (%p125) target = $region24
    $region23: #{img_vision_transformer_forward.19} parent=5 // pred_region
      // Predicated region
      $region25: #{img_vision_transformer_forward.19} parent=23 // pred_check
        %p128 = pneg %p29
      $region26: #{img_vision_transformer_forward.19} parent=23 // pred_check_branch
        %130 = sbr.rel (%p128) target = $region28
      $region27: #{img_vision_transformer_forward.19} parent=23 // pred_region
        %s131 = smul.u32 4, %s9
        %p132 = scmp.lt.s32.totalorder %s131, 7
        %s133 = scalar_select %p132, %s131, 7
        %s134 = smul.addr %s133, 8
        %s135 = scalar_lea.vmem %s0, %s134
        %s136 = smul.u32 4, %s9
      $region28: #{img_vision_transformer_forward.19} parent=23 // pred_fallthru
        _
    $region24: #{img_vision_transformer_forward.19} parent=5 // pred_fallthru
      _
    %p137 = scmp.le.s32.totalorder 1, %s9
    %p138 = scmp.lt.s32.totalorder %s9, 3
    %p139 = pnand %p137, %p138
    %p140 = pneg %p139
    // Predicated region
    $region29: #{img_vision_transformer_forward.19} parent=5 // pred_check
      _
    $region30: #{img_vision_transformer_forward.19} parent=5 // pred_check_branch
      %142 = sbr.rel (%p139) target = $region32
    $region31: #{img_vision_transformer_forward.19} parent=5 // pred_region
      %s143 = ssub.s32 %s9, 1
      %s144 = smul.u32 4, %s14
      %p145 = scmp.lt.s32.totalorder %s144, 7
      %s146 = scalar_select %p145, %s144, 7
      %s147 = smul.addr %s146, 8
      %s148 = scalar_lea.vmem %s0, %s147
      %p149 = pneg %p35
      %p150 = pneg %p32
      %p151 = pneg %p56
      %p152 = pneg %p53
      %p153 = pneg %p77
      %p154 = pneg %p74
      %p155 = pneg %p103
      %p156 = pneg %p100
      %s157 = smul.u32 4, %s14
      %p158 = scmp.lt.s32.totalorder %s157, 7
      %s159 = scalar_select %p158, %s157, 7
      %s160 = smul.addr %s159, 4
      %s161 = scalar_lea.vmem %s3, %s160
      %s162 = smul.u32 4, %s14
      %p163 = scmp.lt.s32.totalorder %s162, 7
      %s164 = scalar_select %p163, %s162, 7
      %s165 = smul.addr %s164, 8
      %s166 = scalar_lea.vmem %s0, %s165
      %s167 = smul.u32 4, %s14
      %s168 = smul.u32 4, %s14
      %p169 = scmp.lt.s32.totalorder %s168, 7
      %s170 = scalar_select %p169, %s168, 7
      %s171 = smul.addr %s170, 4
      %s172 = scalar_lea.vmem %s3, %s171
      %s173 = smul.u32 4, %s14
      %v174 = vld [vmem:[%s166] sm:$0xff]
      %v175 = vld [vmem:[%s166 + $0x8] sm:$0xff]
      %v176 = vld [vmem:[%s166 + $0x10] sm:$0xff]
      %v177 = vld [vmem:[%s166 + $0x18] sm:$0xff]
      %vm178 = vcmask 261120
      %v179 = vsel %vm178, %v174, 0.0
      %180 = vadd.xlane.f32.xlu0 %v179
      %v181 = vpop.xlane.xlu0 %180
      %v182 = vsel %vm178, %v175, 0.0
      %183 = vadd.xlane.f32.xlu0 %v182
      %v184 = vpop.xlane.xlu0 %183
      %v185 = vsel %vm178, %v176, 0.0
      %186 = vadd.xlane.f32.xlu0 %v185
      %v187 = vpop.xlane.xlu0 %186
      %v188 = vsel %vm178, %v177, 0.0
      %189 = vadd.xlane.f32.xlu0 %v188
      %v190 = vpop.xlane.xlu0 %189
      %v191 = vrcp.pop 32.0
      %v192 = vmul.f32 %v181, %v191
      %v193 = vmul.f32 %v184, %v191
      %v194 = vmul.f32 %v187, %v191
      %v195 = vmul.f32 %v190, %v191
      %v196 = vsub.f32 %v174, %v192
      %v197 = vsub.f32 %v175, %v193
      %v198 = vsub.f32 %v176, %v194
      %v199 = vsub.f32 %v177, %v195
      %v200 = vmul.f32 %v196, %v196
      %v201 = vmul.f32 %v197, %v197
      %v202 = vmul.f32 %v198, %v198
      %v203 = vmul.f32 %v199, %v199
      %v204 = vsel %vm178, %v200, 0.0
      %205 = vadd.xlane.f32.xlu0 %v204
      %v206 = vpop.xlane.xlu0 %205
      %v207 = vsel %vm178, %v201, 0.0
      %208 = vadd.xlane.f32.xlu0 %v207
      %v209 = vpop.xlane.xlu0 %208
      %v210 = vsel %vm178, %v202, 0.0
      %211 = vadd.xlane.f32.xlu0 %v210
      %v212 = vpop.xlane.xlu0 %211
      %v213 = vsel %vm178, %v203, 0.0
      %214 = vadd.xlane.f32.xlu0 %v213
      %v215 = vpop.xlane.xlu0 %214
      %v216 = vmul.f32 %v206, %v191
      %v217 = vmul.f32 %v209, %v191
      %v218 = vmul.f32 %v212, %v191
      %v219 = vmul.f32 %v215, %v191
      %v220 = vadd.f32 %v216, 1e-05
      %v221 = vadd.f32 %v217, 1e-05
      %v222 = vadd.f32 %v218, 1e-05
      %v223 = vadd.f32 %v219, 1e-05
      %v224 = vrsqrt.pop %v220
      %v225 = vrsqrt.pop %v221
      %v226 = vrsqrt.pop %v222
      %v227 = vrsqrt.pop %v223
      %v228 = vmul.f32 %v196, %v224
      %v229 = vmul.f32 %v197, %v225
      %v230 = vmul.f32 %v198, %v226
      %v231 = vmul.f32 %v199, %v227
      %v232 = vld [vmem:[%s1] sm:$0x1]
      %v234 = vlaneseq
      %v235 = vshrl.u32 %v234, 7
      %v236 = vsub.s32 0, %v235
      %v237 = vrot.slane %v232, %v236
      %v239 = vmul.f32 %v228, %v237
      %v240 = vmul.f32 %v229, %v237
      %v241 = vmul.f32 %v230, %v237
      %v242 = vmul.f32 %v231, %v237
      %v243 = vld [vmem:[%s2] sm:$0x1]
      %v245 = vlaneseq
      %v246 = vshrl.u32 %v245, 7
      %v247 = vsub.s32 0, %v246
      %v248 = vrot.slane %v243, %v247
      %v250 = vadd.f32 %v239, %v248
      %v251 = vadd.f32 %v240, %v248
      %v252 = vadd.f32 %v241, %v248
      %v253 = vadd.f32 %v242, %v248
      %v254 = vpack.c.bf16 %v251, %v250
      %v255 = vpack.c.bf16 %v253, %v252
      %v258 = vunpack.c.l.b16 %v254
      %v259 = vunpack.c.h.b16 %v254
      %v260 = vunpack.c.l.b16 %v255
      %v261 = vunpack.c.h.b16 %v255
      %v262 = vpack.c.b16 %v258, %v258
      %v263 = vpack.c.b16 %v259, %v259
      %v264 = vpack.c.b16 %v260, %v260
      %v265 = vpack.c.b16 %v261, %v261
      %vm270 = vcmask 257024
      %271 = vst.msk [vmem:[%s172] sm:$0xf] %vm270, %v262
      %272 = vst.msk [vmem:[%s172 + $0x4] sm:$0xf] %vm270, %v263
      %273 = vst.msk [vmem:[%s172 + $0x8] sm:$0xf] %vm270, %v264
      %274 = vst.msk [vmem:[%s172 + $0xc] sm:$0xf] %vm270, %v265
      %s275 = smul.u32 4, %s14
      %p276 = scmp.lt.s32.totalorder %s275, 7
      %s277 = scalar_select %p276, %s275, 7
      %s278 = smul.addr %s277, 4
      %s279 = scalar_lea.vmem %s3, %s278
      // Predicated region
      $region33: #{img_vision_transformer_forward.19} parent=31 // pred_check
        %p280 = pneg %p100
      $region34: #{img_vision_transformer_forward.19} parent=31 // pred_check_branch
        %282 = sbr.rel (%p280) target = $region36
      $region35: #{img_vision_transformer_forward.19} parent=31 // pred_region
        %s283 = smul.u32 4, %s14
      $region36: #{img_vision_transformer_forward.19} parent=31 // pred_fallthru
        _
    $region32: #{img_vision_transformer_forward.19} parent=5 // pred_fallthru
      _
    %p284 = scmp.le.s32.totalorder 2, %s9
    // Predicated region
    $region37: #{img_vision_transformer_forward.19} parent=5 // pred_check
      %p285 = pneg %p284
    $region38: #{img_vision_transformer_forward.19} parent=5 // pred_check_branch
      %287 = sbr.rel (%p285) target = $region40
    $region39: #{img_vision_transformer_forward.19} parent=5 // pred_region
      %s288 = ssub.s32 %s9, 2
      // Predicated region
      $region41: #{img_vision_transformer_forward.19} parent=39 // pred_check
        %p289 = pneg %p106
      $region42: #{img_vision_transformer_forward.19} parent=39 // pred_check_branch
        %291 = sbr.rel (%p289) target = $region44
      $region43: #{img_vision_transformer_forward.19} parent=39 // pred_region
        %s292 = smul.u32 4, %s15
        %p293 = scmp.lt.s32.totalorder %s292, 7
        %s294 = scalar_select %p293, %s292, 7
        %s295 = smul.addr %s294, 4
        %s296 = scalar_lea.vmem %s3, %s295
      $region44: #{img_vision_transformer_forward.19} parent=39 // pred_fallthru
        _
    $region40: #{img_vision_transformer_forward.19} parent=5 // pred_fallthru
      _
  $region6: #{img_vision_transformer_forward.19} parent=0 // loop_footer
    %s13 = sadd.s32 1, %s9
  $region7: #{img_vision_transformer_forward.19} parent=0 // loop_footer_branch
    %8 = sbr.rel target = $region3
  $region8: #{img_vision_transformer_forward.19} parent=0 // loop_exit
    _

// kernel: img_vision_transformer_forward.20
$region0: #{img_vision_transformer_forward.20}
  #allocation0 [shape = 'u32[]', space=smem, size = 0x4, offset = 0x4, fixed_abs, tag = 'smem constant byte address 0x4 - core index']
  #allocation1 [shape = 'u32[144,128]{1,0:T(1,128)}', space=vmem, size = 0x12000, scoped, tag = 'internal scratch']
  %s0 = inlined_call_operand.vmem [shape: bf16[64,32], index: 0, kind: input, shape index: {}]
  %s1 = inlined_call_operand.vmem [shape: f32[1,32], index: 1, kind: input, shape index: {}]
  %s2 = inlined_call_operand.vmem [shape: f32[1,32], index: 2, kind: input, shape index: {}]
  %s3 = inlined_call_operand.vmem [shape: bf16[64,32], index: 3, kind: output, shape index: {}]
  %s4 = sld [smem:[#allocation0]]
  $region45: #{img_vision_transformer_forward.20} parent=0
    _
  %s6 = ssub.s32 1, %s4
  %s7 = scalar_select 0, %s6, %s4
  loop: start=0, step=1, limit=4
  $region2: #{img_vision_transformer_forward.20} parent=0 // loop_pre_header
    _
  $region3: #{img_vision_transformer_forward.20} parent=0 // loop_header
    %s9 = sphi 0, %s13
    %p10 = scmp.ge.s32.totalorder %s9, 4
    %s19 = sphi 0, %s21
    %s22 = sphi 0, %s19
    %s23 = sphi 0, %s22
    %s39 = sphi 0, %s23
    %s43 = sphi 0, %s43
    %s45 = sphi 0, %s43
    %s46 = sphi 0, %s45
    %s60 = sphi 0, %s46
    %s64 = sphi 0, %s64
    %s66 = sphi 0, %s64
    %s67 = sphi 0, %s66
    %s81 = sphi 0, %s67
    %s87 = sphi 0, %s89
    %s90 = sphi 0, %s87
    %s91 = sphi 0, %s90
    %s107 = sphi 0, %s91
  $region4: #{img_vision_transformer_forward.20} parent=0 // loop_header_branch
    %12 = sbr.rel (%p10) target = $region8
  $region5: #{img_vision_transformer_forward.20} parent=0 // loop_body
    %s14 = ssub.s32 %s9, 1
    %s15 = ssub.s32 %s9, 2
    %s16 = sadd.s32 %s9, 1
    %s17 = ssub.s32 %s9, %s16
    %p18 = scmp.eq.s32.totalorder %s17, 0
    %s20 = sadd.s32 %s19, 1
    %s21 = scalar_select %p18, %s19, %s20
    %p24 = pneg %p18
    %p25 = scmp.eq.s32.totalorder %s9, 1
    %p26 = por %p24, %p25
    %p27 = scmp.ne.s32.totalorder %s19, %s22
    %p28 = scmp.eq.s32.totalorder %s9, 0
    %p29 = por %p27, %p28
    %p30 = scmp.ne.s32.totalorder %s19, %s22
    %p31 = scmp.eq.s32.totalorder %s14, 1
    %p32 = por %p30, %p31
    %p33 = scmp.ne.s32.totalorder %s22, %s23
    %p34 = scmp.eq.s32.totalorder %s14, 0
    %p35 = por %p33, %p34
    %p36 = scmp.ne.s32.totalorder %s22, %s23
    %p37 = scmp.eq.s32.totalorder %s15, 1
    %p38 = por %p36, %p37
    %p40 = scmp.ne.s32.totalorder %s23, %s39
    %p41 = scmp.eq.s32.totalorder %s15, 0
    %p42 = por %p40, %p41
    %s44 = sadd.s32 %s43, 1
    %p47 = scmp.eq.s32.totalorder %s9, 1
    %p48 = scmp.ne.s32.totalorder %s43, %s45
    %p49 = scmp.eq.s32.totalorder %s9, 0
    %p50 = por %p48, %p49
    %p51 = scmp.ne.s32.totalorder %s43, %s45
    %p52 = scmp.eq.s32.totalorder %s14, 1
    %p53 = por %p51, %p52
    %p54 = scmp.ne.s32.totalorder %s45, %s46
    %p55 = scmp.eq.s32.totalorder %s14, 0
    %p56 = por %p54, %p55
    %p57 = scmp.ne.s32.totalorder %s45, %s46
    %p58 = scmp.eq.s32.totalorder %s15, 1
    %p59 = por %p57, %p58
    %p61 = scmp.ne.s32.totalorder %s46, %s60
    %p62 = scmp.eq.s32.totalorder %s15, 0
    %p63 = por %p61, %p62
    %s65 = sadd.s32 %s64, 1
    %p68 = scmp.eq.s32.totalorder %s9, 1
    %p69 = scmp.ne.s32.totalorder %s64, %s66
    %p70 = scmp.eq.s32.totalorder %s9, 0
    %p71 = por %p69, %p70
    %p72 = scmp.ne.s32.totalorder %s64, %s66
    %p73 = scmp.eq.s32.totalorder %s14, 1
    %p74 = por %p72, %p73
    %p75 = scmp.ne.s32.totalorder %s66, %s67
    %p76 = scmp.eq.s32.totalorder %s14, 0
    %p77 = por %p75, %p76
    %p78 = scmp.ne.s32.totalorder %s66, %s67
    %p79 = scmp.eq.s32.totalorder %s15, 1
    %p80 = por %p78, %p79
    %p82 = scmp.ne.s32.totalorder %s67, %s81
    %p83 = scmp.eq.s32.totalorder %s15, 0
    %p84 = por %p82, %p83
    %s85 = ssub.s32 %s9, %s16
    %p86 = scmp.eq.s32.totalorder %s85, 0
    %s88 = sadd.s32 %s87, 1
    %s89 = scalar_select %p86, %s87, %s88
    %p92 = pneg %p86
    %p93 = scmp.eq.s32.totalorder %s9, 1
    %p94 = por %p92, %p93
    %p95 = scmp.ne.s32.totalorder %s87, %s90
    %p96 = scmp.eq.s32.totalorder %s9, 0
    %p97 = por %p95, %p96
    %p98 = scmp.ne.s32.totalorder %s87, %s90
    %p99 = scmp.eq.s32.totalorder %s14, 1
    %p100 = por %p98, %p99
    %p101 = scmp.ne.s32.totalorder %s90, %s91
    %p102 = scmp.eq.s32.totalorder %s14, 0
    %p103 = por %p101, %p102
    %p104 = scmp.ne.s32.totalorder %s90, %s91
    %p105 = scmp.eq.s32.totalorder %s15, 1
    %p106 = por %p104, %p105
    %p108 = scmp.ne.s32.totalorder %s91, %s107
    %p109 = scmp.eq.s32.totalorder %s15, 0
    %p110 = por %p108, %p109
    %p111 = scmp.le.s32.totalorder 1, %s9
    %p112 = scmp.lt.s32.totalorder %s9, 3
    %p113 = pnand %p111, %p112
    %p114 = pneg %p113
    // Predicated region
    $region9: #{img_vision_transformer_forward.20} parent=5 // pred_check
      _
    $region10: #{img_vision_transformer_forward.20} parent=5 // pred_check_branch
      %116 = sbr.rel (%p113) target = $region12
    $region11: #{img_vision_transformer_forward.20} parent=5 // pred_region
      %s117 = ssub.s32 %s9, 1
      // Predicated region
      $region13: #{img_vision_transformer_forward.20} parent=11 // pred_check
        %p118 = pneg %p56
      $region14: #{img_vision_transformer_forward.20} parent=11 // pred_check_branch
        %120 = sbr.rel (%p118) target = $region16
      $region15: #{img_vision_transformer_forward.20} parent=11 // pred_region
        _
      $region16: #{img_vision_transformer_forward.20} parent=11 // pred_fallthru
        _
      // Predicated region
      $region17: #{img_vision_transformer_forward.20} parent=11 // pred_check
        %p121 = pneg %p77
      $region18: #{img_vision_transformer_forward.20} parent=11 // pred_check_branch
        %123 = sbr.rel (%p121) target = $region20
      $region19: #{img_vision_transformer_forward.20} parent=11 // pred_region
        _
      $region20: #{img_vision_transformer_forward.20} parent=11 // pred_fallthru
        _
    $region12: #{img_vision_transformer_forward.20} parent=5 // pred_fallthru
      _
    %p124 = scmp.lt.s32.totalorder %s9, 2
    // Predicated region
    $region21: #{img_vision_transformer_forward.20} parent=5 // pred_check
      %p125 = pneg %p124
    $region22: #{img_vision_transformer_forward.20} parent=5 // pred_check_branch
      %127 = sbr.rel (%p125) target = $region24
    $region23: #{img_vision_transformer_forward.20} parent=5 // pred_region
      // Predicated region
      $region25: #{img_vision_transformer_forward.20} parent=23 // pred_check
        %p128 = pneg %p29
      $region26: #{img_vision_transformer_forward.20} parent=23 // pred_check_branch
        %130 = sbr.rel (%p128) target = $region28
      $region27: #{img_vision_transformer_forward.20} parent=23 // pred_region
        %s131 = smul.u32 4, %s9
        %p132 = scmp.lt.s32.totalorder %s131, 7
        %s133 = scalar_select %p132, %s131, 7
        %s134 = smul.addr %s133, 4
        %s135 = scalar_lea.vmem %s0, %s134
        %s136 = smul.u32 4, %s9
      $region28: #{img_vision_transformer_forward.20} parent=23 // pred_fallthru
        _
    $region24: #{img_vision_transformer_forward.20} parent=5 // pred_fallthru
      _
    %p137 = scmp.le.s32.totalorder 1, %s9
    %p138 = scmp.lt.s32.totalorder %s9, 3
    %p139 = pnand %p137, %p138
    %p140 = pneg %p139
    // Predicated region
    $region29: #{img_vision_transformer_forward.20} parent=5 // pred_check
      _
    $region30: #{img_vision_transformer_forward.20} parent=5 // pred_check_branch
      %142 = sbr.rel (%p139) target = $region32
    $region31: #{img_vision_transformer_forward.20} parent=5 // pred_region
      %s143 = ssub.s32 %s9, 1
      %s144 = smul.u32 4, %s14
      %p145 = scmp.lt.s32.totalorder %s144, 7
      %s146 = scalar_select %p145, %s144, 7
      %s147 = smul.addr %s146, 4
      %s148 = scalar_lea.vmem %s0, %s147
      %p149 = pneg %p35
      %p150 = pneg %p32
      %p151 = pneg %p56
      %p152 = pneg %p53
      %p153 = pneg %p77
      %p154 = pneg %p74
      %p155 = pneg %p103
      %p156 = pneg %p100
      %s157 = smul.u32 4, %s14
      %p158 = scmp.lt.s32.totalorder %s157, 7
      %s159 = scalar_select %p158, %s157, 7
      %s160 = smul.addr %s159, 4
      %s161 = scalar_lea.vmem %s3, %s160
      %s162 = smul.u32 4, %s14
      %p163 = scmp.lt.s32.totalorder %s162, 7
      %s164 = scalar_select %p163, %s162, 7
      %s165 = smul.addr %s164, 4
      %s166 = scalar_lea.vmem %s0, %s165
      %s167 = smul.u32 4, %s14
      %s168 = smul.u32 4, %s14
      %p169 = scmp.lt.s32.totalorder %s168, 7
      %s170 = scalar_select %p169, %s168, 7
      %s171 = smul.addr %s170, 4
      %s172 = scalar_lea.vmem %s3, %s171
      %s173 = smul.u32 4, %s14
      %v174 = vld [vmem:[%s166] sm:$0xf]
      %v175 = vld [vmem:[%s166 + $0x4] sm:$0xf]
      %v176 = vld [vmem:[%s166 + $0x8] sm:$0xf]
      %v177 = vld [vmem:[%s166 + $0xc] sm:$0xf]
      %v178 = vunpack.c.l.bf16 %v174
      %v179 = vunpack.c.l.bf16 %v175
      %v180 = vunpack.c.l.bf16 %v176
      %v181 = vunpack.c.l.bf16 %v177
      %vm182 = vcmask 261120
      %v183 = vsel %vm182, %v178, 0.0
      %184 = vadd.xlane.f32.xlu0 %v183
      %v185 = vpop.xlane.xlu0 %184
      %v186 = vsel %vm182, %v179, 0.0
      %187 = vadd.xlane.f32.xlu0 %v186
      %v188 = vpop.xlane.xlu0 %187
      %v189 = vsel %vm182, %v180, 0.0
      %190 = vadd.xlane.f32.xlu0 %v189
      %v191 = vpop.xlane.xlu0 %190
      %v192 = vsel %vm182, %v181, 0.0
      %193 = vadd.xlane.f32.xlu0 %v192
      %v194 = vpop.xlane.xlu0 %193
      %v195 = vrcp.pop 32.0
      %v196 = vmul.f32 %v185, %v195
      %v197 = vmul.f32 %v188, %v195
      %v198 = vmul.f32 %v191, %v195
      %v199 = vmul.f32 %v194, %v195
      %v200 = vsub.f32 %v178, %v196
      %v201 = vsub.f32 %v179, %v197
      %v202 = vsub.f32 %v180, %v198
      %v203 = vsub.f32 %v181, %v199
      %v204 = vmul.f32 %v200, %v200
      %v205 = vmul.f32 %v201, %v201
      %v206 = vmul.f32 %v202, %v202
      %v207 = vmul.f32 %v203, %v203
      %v208 = vsel %vm182, %v204, 0.0
      %209 = vadd.xlane.f32.xlu0 %v208
      %v210 = vpop.xlane.xlu0 %209
      %v211 = vsel %vm182, %v205, 0.0
      %212 = vadd.xlane.f32.xlu0 %v211
      %v213 = vpop.xlane.xlu0 %212
      %v214 = vsel %vm182, %v206, 0.0
      %215 = vadd.xlane.f32.xlu0 %v214
      %v216 = vpop.xlane.xlu0 %215
      %v217 = vsel %vm182, %v207, 0.0
      %218 = vadd.xlane.f32.xlu0 %v217
      %v219 = vpop.xlane.xlu0 %218
      %v220 = vmul.f32 %v210, %v195
      %v221 = vmul.f32 %v213, %v195
      %v222 = vmul.f32 %v216, %v195
      %v223 = vmul.f32 %v219, %v195
      %v224 = vadd.f32 %v220, 1e-05
      %v225 = vadd.f32 %v221, 1e-05
      %v226 = vadd.f32 %v222, 1e-05
      %v227 = vadd.f32 %v223, 1e-05
      %v228 = vrsqrt.pop %v224
      %v229 = vrsqrt.pop %v225
      %v230 = vrsqrt.pop %v226
      %v231 = vrsqrt.pop %v227
      %v232 = vmul.f32 %v200, %v228
      %v233 = vmul.f32 %v201, %v229
      %v234 = vmul.f32 %v202, %v230
      %v235 = vmul.f32 %v203, %v231
      %v236 = vld [vmem:[%s1] sm:$0x1]
      %v238 = vlaneseq
      %v239 = vshrl.u32 %v238, 7
      %v240 = vsub.s32 0, %v239
      %v241 = vrot.slane %v236, %v240
      %v243 = vmul.f32 %v232, %v241
      %v244 = vmul.f32 %v233, %v241
      %v245 = vmul.f32 %v234, %v241
      %v246 = vmul.f32 %v235, %v241
      %v247 = vld [vmem:[%s2] sm:$0x1]
      %v249 = vlaneseq
      %v250 = vshrl.u32 %v249, 7
      %v251 = vsub.s32 0, %v250
      %v252 = vrot.slane %v247, %v251
      %v254 = vadd.f32 %v243, %v252
      %v255 = vadd.f32 %v244, %v252
      %v256 = vadd.f32 %v245, %v252
      %v257 = vadd.f32 %v246, %v252
      %v258 = vpack.c.bf16 %v255, %v254
      %v259 = vpack.c.bf16 %v257, %v256
      %v262 = vunpack.c.l.b16 %v258
      %v263 = vunpack.c.h.b16 %v258
      %v264 = vunpack.c.l.b16 %v259
      %v265 = vunpack.c.h.b16 %v259
      %v266 = vpack.c.b16 %v262, %v262
      %v267 = vpack.c.b16 %v263, %v263
      %v268 = vpack.c.b16 %v264, %v264
      %v269 = vpack.c.b16 %v265, %v265
      %vm274 = vcmask 257024
      %275 = vst.msk [vmem:[%s172] sm:$0xf] %vm274, %v266
      %276 = vst.msk [vmem:[%s172 + $0x4] sm:$0xf] %vm274, %v267
      %277 = vst.msk [vmem:[%s172 + $0x8] sm:$0xf] %vm274, %v268
      %278 = vst.msk [vmem:[%s172 + $0xc] sm:$0xf] %vm274, %v269
      %s279 = smul.u32 4, %s14
      %p280 = scmp.lt.s32.totalorder %s279, 7
      %s281 = scalar_select %p280, %s279, 7
      %s282 = smul.addr %s281, 4
      %s283 = scalar_lea.vmem %s3, %s282
      // Predicated region
      $region33: #{img_vision_transformer_forward.20} parent=31 // pred_check
        %p284 = pneg %p100
      $region34: #{img_vision_transformer_forward.20} parent=31 // pred_check_branch
        %286 = sbr.rel (%p284) target = $region36
      $region35: #{img_vision_transformer_forward.20} parent=31 // pred_region
        %s287 = smul.u32 4, %s14
      $region36: #{img_vision_transformer_forward.20} parent=31 // pred_fallthru
        _
    $region32: #{img_vision_transformer_forward.20} parent=5 // pred_fallthru
      _
    %p288 = scmp.le.s32.totalorder 2, %s9
    // Predicated region
    $region37: #{img_vision_transformer_forward.20} parent=5 // pred_check
      %p289 = pneg %p288
    $region38: #{img_vision_transformer_forward.20} parent=5 // pred_check_branch
      %291 = sbr.rel (%p289) target = $region40
    $region39: #{img_vision_transformer_forward.20} parent=5 // pred_region
      %s292 = ssub.s32 %s9, 2
      // Predicated region
      $region41: #{img_vision_transformer_forward.20} parent=39 // pred_check
        %p293 = pneg %p106
      $region42: #{img_vision_transformer_forward.20} parent=39 // pred_check_branch
        %295 = sbr.rel (%p293) target = $region44
      $region43: #{img_vision_transformer_forward.20} parent=39 // pred_region
        %s296 = smul.u32 4, %s15
        %p297 = scmp.lt.s32.totalorder %s296, 7
        %s298 = scalar_select %p297, %s296, 7
        %s299 = smul.addr %s298, 4
        %s300 = scalar_lea.vmem %s3, %s299
      $region44: #{img_vision_transformer_forward.20} parent=39 // pred_fallthru
        _
    $region40: #{img_vision_transformer_forward.20} parent=5 // pred_fallthru
      _
  $region6: #{img_vision_transformer_forward.20} parent=0 // loop_footer
    %s13 = sadd.s32 1, %s9
  $region7: #{img_vision_transformer_forward.20} parent=0 // loop_footer_branch
    %8 = sbr.rel target = $region3
  $region8: #{img_vision_transformer_forward.20} parent=0 // loop_exit
    _

// kernel: img_vision_transformer_forward.18
$region0: #{img_vision_transformer_forward.18}
  #allocation0 [shape = 'u32[]', space=smem, size = 0x4, offset = 0x4, fixed_abs, tag = 'smem constant byte address 0x4 - core index']
  #allocation1 [shape = 'u32[144,128]{1,0:T(1,128)}', space=vmem, size = 0x12000, scoped, tag = 'internal scratch']
  #allocation2 [shape = 'f32[32,32]{1,0:T(8,128)}', space=vmem, size = 0x4000, scoped, tag = 'scratch operand']
  %s0 = inlined_call_operand.vmem [shape: bf16[32,48], index: 0, kind: input, shape index: {}]
  %s1 = inlined_call_operand.vmem [shape: bf16[48,32], index: 1, kind: input, shape index: {}]
  %s2 = inlined_call_operand.vmem [shape: f32[1,32], index: 2, kind: input, shape index: {}]
  %s3 = inlined_call_operand.vmem [shape: f32[32,32], index: 3, kind: output, shape index: {}]
  %s4 = sld [smem:[#allocation0]]
  $region30: #{img_vision_transformer_forward.18} parent=0
    _
  %s6 = ssub.s32 1, %s4
  %s7 = scalar_select 0, %s6, %s4
  // Predicated region
  $region2: #{img_vision_transformer_forward.18} parent=0 // pred_check
    _
  $region3: #{img_vision_transformer_forward.18} parent=0 // pred_check_branch
    %9 = sbr.rel (0) target = $region5
  $region4: #{img_vision_transformer_forward.18} parent=0 // pred_region
    _
  $region5: #{img_vision_transformer_forward.18} parent=0 // pred_fallthru
    _
  // Predicated region
  $region6: #{img_vision_transformer_forward.18} parent=0 // pred_check
    _
  $region7: #{img_vision_transformer_forward.18} parent=0 // pred_check_branch
    %11 = sbr.rel (0) target = $region9
  $region8: #{img_vision_transformer_forward.18} parent=0 // pred_region
    _
  $region9: #{img_vision_transformer_forward.18} parent=0 // pred_fallthru
    _
  // Predicated region
  $region10: #{img_vision_transformer_forward.18} parent=0 // pred_check
    _
  $region11: #{img_vision_transformer_forward.18} parent=0 // pred_check_branch
    %13 = sbr.rel (0) target = $region13
  $region12: #{img_vision_transformer_forward.18} parent=0 // pred_region
    _
  $region13: #{img_vision_transformer_forward.18} parent=0 // pred_fallthru
    _
  %p15 = scmp.eq.s32.totalorder 0, 0
  // Predicated region
  $region14: #{img_vision_transformer_forward.18} parent=0 // pred_check
    %p16 = pneg %p15
  $region15: #{img_vision_transformer_forward.18} parent=0 // pred_check_branch
    %18 = sbr.rel (%p16) target = $region17
  $region16: #{img_vision_transformer_forward.18} parent=0 // pred_region
    %vm19 = vcmask 261120
    %20 = vst.msk [vmem:[#allocation2] sm:$0xff] %vm19, 0.0
    %21 = vst.msk [vmem:[#allocation2 + $0x8] sm:$0xff] %vm19, 0.0
    %22 = vst.msk [vmem:[#allocation2 + $0x10] sm:$0xff] %vm19, 0.0
    %23 = vst.msk [vmem:[#allocation2 + $0x18] sm:$0xff] %vm19, 0.0
  $region17: #{img_vision_transformer_forward.18} parent=0 // pred_fallthru
    _
  %v24 = vld [vmem:[#allocation2] sm:$0xff]
  %v25 = vld [vmem:[#allocation2 + $0x8] sm:$0xff]
  %v26 = vld [vmem:[#allocation2 + $0x10] sm:$0xff]
  %v27 = vld [vmem:[#allocation2 + $0x18] sm:$0xff]
  %v28 = vld [vmem:[%s0] sm:$0xf]
  %v29 = vld [vmem:[%s0 + $0x4] sm:$0xf]
  %v30 = vld [vmem:[%s0 + $0x8] sm:$0xf]
  %v31 = vld [vmem:[%s0 + $0xc] sm:$0xf]
  %v32 = vld [vmem:[%s1] sm:$0xf]
  %v33 = vld [vmem:[%s1 + $0x4] sm:$0xf]
  %v34 = vld [vmem:[%s1 + $0x8] sm:$0xf]
  %v35 = vld [vmem:[%s1 + $0xc] sm:$0xf]
  %v36 = vld [vmem:[%s1 + $0x10] sm:$0xf]
  %v37 = vld [vmem:[%s1 + $0x14] sm:$0xf]
  %v42 = vunpack.c.l.b16 %v28
  %v43 = vunpack.c.l.b16 %v29
  %v44 = vunpack.c.l.b16 %v30
  %v45 = vunpack.c.l.b16 %v31
  %v46 = vpack.c.b16 %v43, %v42
  %v47 = vpack.c.b16 %v45, %v44
  %v54 = vunpack.c.l.b16 %v32
  %v55 = vunpack.c.l.b16 %v33
  %v56 = vunpack.c.l.b16 %v34
  %v57 = vunpack.c.l.b16 %v35
  %v58 = vunpack.c.l.b16 %v36
  %v59 = vunpack.c.l.b16 %v37
  %v60 = vpack.c.b16 %v55, %v54
  %v61 = vpack.c.b16 %v57, %v56
  %v62 = vpack.c.b16 %v59, %v58
  %vm66 = vcmask 392192
  %v68 = vsel %vm66, %v46, 0
  %v71 = vsel %vm66, %v47, 0
  %73 = vmatprep.subr.bf16.mxu0 0
  %74 = vmatpush1.bf16.msra.mxu0 %v60
  %75 = vmatprep.subr.bf16.mxu0 0
  %76 = vmatpush1.bf16.msra.mxu0 %v61
  %77 = vmatprep.subr.bf16.mxu0 0
  %78 = vmatpush1.bf16.msra.mxu0 %v62
  %79 = vmatprep.subr.bf16.mxu0 0
  %80 = vmatpush1.bf16.msra.mxu0 0
  %81 = vmatprep.subr.bf16.mxu0 0
  %82 = vmatpush1.bf16.msra.mxu0 0
  %83 = vmatprep.subr.bf16.mxu0 0
  %84 = vmatpush1.bf16.msra.mxu0 0
  %85 = vmatprep.subr.bf16.mxu0 0
  %86 = vmatpush1.bf16.msra.mxu0 0
  %87 = vmatprep.subr.bf16.mxu0 0
  %88 = vmatpush1.bf16.msra.mxu0 0
  %89 = vmatprep.subr.bf16.mxu0 0
  %90 = vmatpush1.bf16.msra.mxu0 0
  %91 = vmatprep.subr.bf16.mxu0 0
  %92 = vmatpush1.bf16.msra.mxu0 0
  %93 = vmatprep.subr.bf16.mxu0 0
  %94 = vmatpush1.bf16.msra.mxu0 0
  %95 = vmatprep.subr.bf16.mxu0 0
  %96 = vmatpush1.bf16.msra.mxu0 0
  %97 = vmatprep.subr.bf16.mxu0 0
  %98 = vmatpush1.bf16.msra.mxu0 0
  %99 = vmatprep.subr.bf16.mxu0 0
  %100 = vmatpush1.bf16.msra.mxu0 0
  %101 = vmatprep.subr.bf16.mxu0 0
  %102 = vmatpush1.bf16.msra.mxu0 0
  %103 = vmatprep.subr.bf16.mxu0 0
  %104 = vmatpush1.bf16.msra.mxu0 0
  %105 = vmatprep.mubr.bf16.mxu0 0
  %106 = vmatmul.mubr.bf16.gmra.mrb[0].mxu0 %v68
  %v107 = vpop.f32.mrb[0].mxu0
  %v108 = vadd.f32 0.0, %v107
  %v109 = vpop.f32.mrb[0].mxu0
  %v110 = vpop.f32.mrb[0].mxu0
  %v111 = vadd.f32 0.0, %v110
  %v112 = vpop.f32.mrb[0].mxu0
  %113 = vmatprep.mubr.bf16.mxu0 0
  %114 = vmatmul.mubr.bf16.gmra.mrb[0].mxu0 %v71
  %v115 = vpop.f32.mrb[0].mxu0
  %v116 = vadd.f32 0.0, %v115
  %v117 = vpop.f32.mrb[0].mxu0
  %v118 = vpop.f32.mrb[0].mxu0
  %v119 = vadd.f32 0.0, %v118
  %v120 = vpop.f32.mrb[0].mxu0
  %121 = vdwg.mxu0
  %v122 = vadd.f32 %v24, %v108
  %v123 = vadd.f32 %v25, %v111
  %v124 = vadd.f32 %v26, %v116
  %v125 = vadd.f32 %v27, %v119
  %vm126 = vcmask 261120
  %127 = vst.msk [vmem:[#allocation2] sm:$0xff] %vm126, %v122
  %128 = vst.msk [vmem:[#allocation2 + $0x8] sm:$0xff] %vm126, %v123
  %129 = vst.msk [vmem:[#allocation2 + $0x10] sm:$0xff] %vm126, %v124
  %130 = vst.msk [vmem:[#allocation2 + $0x18] sm:$0xff] %vm126, %v125
  // Predicated region
  $region18: #{img_vision_transformer_forward.18} parent=0 // pred_check
    %p131 = pneg %p15
  $region19: #{img_vision_transformer_forward.18} parent=0 // pred_check_branch
    %133 = sbr.rel (%p131) target = $region21
  $region20: #{img_vision_transformer_forward.18} parent=0 // pred_region
    %v134 = vld [vmem:[#allocation2] sm:$0xff]
    %v135 = vld [vmem:[#allocation2 + $0x8] sm:$0xff]
    %v136 = vld [vmem:[#allocation2 + $0x10] sm:$0xff]
    %v137 = vld [vmem:[#allocation2 + $0x18] sm:$0xff]
    %v138 = vld [vmem:[%s2] sm:$0x1]
    %v140 = vlaneseq
    %v141 = vshrl.u32 %v140, 7
    %v142 = vsub.s32 0, %v141
    %v143 = vrot.slane %v138, %v142
    %v145 = vadd.f32 %v134, %v143
    %v146 = vadd.f32 %v135, %v143
    %v147 = vadd.f32 %v136, %v143
    %v148 = vadd.f32 %v137, %v143
    %149 = vst.msk [vmem:[%s3] sm:$0xff] %vm126, %v145
    %150 = vst.msk [vmem:[%s3 + $0x8] sm:$0xff] %vm126, %v146
    %151 = vst.msk [vmem:[%s3 + $0x10] sm:$0xff] %vm126, %v147
    %152 = vst.msk [vmem:[%s3 + $0x18] sm:$0xff] %vm126, %v148
  $region21: #{img_vision_transformer_forward.18} parent=0 // pred_fallthru
    _
  // Predicated region
  $region22: #{img_vision_transformer_forward.18} parent=0 // pred_check
    _
  $region23: #{img_vision_transformer_forward.18} parent=0 // pred_check_branch
    %154 = sbr.rel (0) target = $region25
  $region24: #{img_vision_transformer_forward.18} parent=0 // pred_region
    _
  $region25: #{img_vision_transformer_forward.18} parent=0 // pred_fallthru
    _
  // Predicated region
  $region26: #{img_vision_transformer_forward.18} parent=0 // pred_check
    _
  $region27: #{img_vision_transformer_forward.18} parent=0 // pred_check_branch
    %156 = sbr.rel (0) target = $region29
  $region28: #{img_vision_transformer_forward.18} parent=0 // pred_region
    _
  $region29: #{img_vision_transformer_forward.18} parent=0 // pred_fallthru
    _

// kernel: img_vision_transformer_forward.21
$region0: #{img_vision_transformer_forward.21}
  #allocation0 [shape = 'u32[]', space=smem, size = 0x4, offset = 0x4, fixed_abs, tag = 'smem constant byte address 0x4 - core index']
  #allocation1 [shape = 'u32[144,128]{1,0:T(1,128)}', space=vmem, size = 0x12000, scoped, tag = 'internal scratch']
  #allocation2 [shape = 'f32[64,96]{1,0:T(8,128)}', space=vmem, size = 0x8000, scoped, tag = 'scratch operand']
  %s0 = inlined_call_operand.vmem [shape: bf16[64,32], index: 0, kind: input, shape index: {}]
  %s1 = inlined_call_operand.vmem [shape: bf16[32,96], index: 1, kind: input, shape index: {}]
  %s2 = inlined_call_operand.vmem [shape: f32[1,96], index: 2, kind: input, shape index: {}]
  %s3 = inlined_call_operand.vmem [shape: bf16[64,96], index: 3, kind: output, shape index: {}]
  %s4 = sld [smem:[#allocation0]]
  $region30: #{img_vision_transformer_forward.21} parent=0
    _
  %s6 = ssub.s32 1, %s4
  %s7 = scalar_select 0, %s6, %s4
  // Predicated region
  $region2: #{img_vision_transformer_forward.21} parent=0 // pred_check
    _
  $region3: #{img_vision_transformer_forward.21} parent=0 // pred_check_branch
    %9 = sbr.rel (0) target = $region5
  $region4: #{img_vision_transformer_forward.21} parent=0 // pred_region
    _
  $region5: #{img_vision_transformer_forward.21} parent=0 // pred_fallthru
    _
  // Predicated region
  $region6: #{img_vision_transformer_forward.21} parent=0 // pred_check
    _
  $region7: #{img_vision_transformer_forward.21} parent=0 // pred_check_branch
    %11 = sbr.rel (0) target = $region9
  $region8: #{img_vision_transformer_forward.21} parent=0 // pred_region
    _
  $region9: #{img_vision_transformer_forward.21} parent=0 // pred_fallthru
    _
  // Predicated region
  $region10: #{img_vision_transformer_forward.21} parent=0 // pred_check
    _
  $region11: #{img_vision_transformer_forward.21} parent=0 // pred_check_branch
    %13 = sbr.rel (0) target = $region13
  $region12: #{img_vision_transformer_forward.21} parent=0 // pred_region
    _
  $region13: #{img_vision_transformer_forward.21} parent=0 // pred_fallthru
    _
  %p15 = scmp.eq.s32.totalorder 0, 0
  // Predicated region
  $region14: #{img_vision_transformer_forward.21} parent=0 // pred_check
    %p16 = pneg %p15
  $region15: #{img_vision_transformer_forward.21} parent=0 // pred_check_branch
    %18 = sbr.rel (%p16) target = $region17
  $region16: #{img_vision_transformer_forward.21} parent=0 // pred_region
    %vm19 = vcmask 785408
    %20 = vst.msk [vmem:[#allocation2] sm:$0xff] %vm19, 0.0
    %21 = vst.msk [vmem:[#allocation2 + $0x8] sm:$0xff] %vm19, 0.0
    %22 = vst.msk [vmem:[#allocation2 + $0x10] sm:$0xff] %vm19, 0.0
    %23 = vst.msk [vmem:[#allocation2 + $0x18] sm:$0xff] %vm19, 0.0
    %24 = vst.msk [vmem:[#allocation2 + $0x20] sm:$0xff] %vm19, 0.0
    %25 = vst.msk [vmem:[#allocation2 + $0x28] sm:$0xff] %vm19, 0.0
    %26 = vst.msk [vmem:[#allocation2 + $0x30] sm:$0xff] %vm19, 0.0
    %27 = vst.msk [vmem:[#allocation2 + $0x38] sm:$0xff] %vm19, 0.0
  $region17: #{img_vision_transformer_forward.21} parent=0 // pred_fallthru
    _
  %v28 = vld [vmem:[#allocation2] sm:$0xff]
  %v29 = vld [vmem:[#allocation2 + $0x8] sm:$0xff]
  %v30 = vld [vmem:[#allocation2 + $0x10] sm:$0xff]
  %v31 = vld [vmem:[#allocation2 + $0x18] sm:$0xff]
  %v32 = vld [vmem:[#allocation2 + $0x20] sm:$0xff]
  %v33 = vld [vmem:[#allocation2 + $0x28] sm:$0xff]
  %v34 = vld [vmem:[#allocation2 + $0x30] sm:$0xff]
  %v35 = vld [vmem:[#allocation2 + $0x38] sm:$0xff]
  %v36 = vld [vmem:[%s0] sm:$0xf]
  %v37 = vld [vmem:[%s0 + $0x4] sm:$0xf]
  %v38 = vld [vmem:[%s0 + $0x8] sm:$0xf]
  %v39 = vld [vmem:[%s0 + $0xc] sm:$0xf]
  %v40 = vld [vmem:[%s0 + $0x10] sm:$0xf]
  %v41 = vld [vmem:[%s0 + $0x14] sm:$0xf]
  %v42 = vld [vmem:[%s0 + $0x18] sm:$0xf]
  %v43 = vld [vmem:[%s0 + $0x1c] sm:$0xf]
  %v44 = vld [vmem:[%s1] sm:$0xf]
  %v45 = vld [vmem:[%s1 + $0x4] sm:$0xf]
  %v46 = vld [vmem:[%s1 + $0x8] sm:$0xf]
  %v47 = vld [vmem:[%s1 + $0xc] sm:$0xf]
  %v56 = vunpack.c.l.b16 %v36
  %v57 = vunpack.c.l.b16 %v37
  %v58 = vunpack.c.l.b16 %v38
  %v59 = vunpack.c.l.b16 %v39
  %v60 = vunpack.c.l.b16 %v40
  %v61 = vunpack.c.l.b16 %v41
  %v62 = vunpack.c.l.b16 %v42
  %v63 = vunpack.c.l.b16 %v43
  %v64 = vpack.c.b16 %v57, %v56
  %v65 = vpack.c.b16 %v59, %v58
  %v66 = vpack.c.b16 %v61, %v60
  %v67 = vpack.c.b16 %v63, %v62
  %v72 = vunpack.c.l.b16 %v44
  %v73 = vunpack.c.l.b16 %v45
  %v74 = vunpack.c.l.b16 %v46
  %v75 = vunpack.c.l.b16 %v47
  %v76 = vpack.c.b16 %v73, %v72
  %v77 = vpack.c.b16 %v75, %v74
  %vm80 = vcmask 261120
  %v82 = vsel %vm80, %v64, 0
  %v85 = vsel %vm80, %v65, 0
  %v88 = vsel %vm80, %v66, 0
  %v91 = vsel %vm80, %v67, 0
  %93 = vmatprep.subr.bf16.mxu0 0
  %94 = vmatpush1.bf16.msra.mxu0 %v76
  %95 = vmatprep.subr.bf16.mxu0 0
  %96 = vmatpush1.bf16.msra.mxu0 %v77
  %97 = vmatprep.subr.bf16.mxu0 0
  %98 = vmatpush1.bf16.msra.mxu0 0
  %99 = vmatprep.subr.bf16.mxu0 0
  %100 = vmatpush1.bf16.msra.mxu0 0
  %101 = vmatprep.subr.bf16.mxu0 0
  %102 = vmatpush1.bf16.msra.mxu0 0
  %103 = vmatprep.subr.bf16.mxu0 0
  %104 = vmatpush1.bf16.msra.mxu0 0
  %105 = vmatprep.subr.bf16.mxu0 0
  %106 = vmatpush1.bf16.msra.mxu0 0
  %107 = vmatprep.subr.bf16.mxu0 0
  %108 = vmatpush1.bf16.msra.mxu0 0
  %109 = vmatprep.subr.bf16.mxu0 0
  %110 = vmatpush1.bf16.msra.mxu0 0
  %111 = vmatprep.subr.bf16.mxu0 0
  %112 = vmatpush1.bf16.msra.mxu0 0
  %113 = vmatprep.subr.bf16.mxu0 0
  %114 = vmatpush1.bf16.msra.mxu0 0
  %115 = vmatprep.subr.bf16.mxu0 0
  %116 = vmatpush1.bf16.msra.mxu0 0
  %117 = vmatprep.subr.bf16.mxu0 0
  %118 = vmatpush1.bf16.msra.mxu0 0
  %119 = vmatprep.subr.bf16.mxu0 0
  %120 = vmatpush1.bf16.msra.mxu0 0
  %121 = vmatprep.subr.bf16.mxu0 0
  %122 = vmatpush1.bf16.msra.mxu0 0
  %123 = vmatprep.subr.bf16.mxu0 0
  %124 = vmatpush1.bf16.msra.mxu0 0
  %125 = vmatprep.mubr.bf16.mxu0 0
  %126 = vmatmul.mubr.bf16.gmra.mrb[0].mxu0 %v82
  %v127 = vpop.f32.mrb[0].mxu0
  %v128 = vadd.f32 0.0, %v127
  %v129 = vpop.f32.mrb[0].mxu0
  %v130 = vpop.f32.mrb[0].mxu0
  %v131 = vadd.f32 0.0, %v130
  %v132 = vpop.f32.mrb[0].mxu0
  %133 = vmatprep.mubr.bf16.mxu0 0
  %134 = vmatmul.mubr.bf16.gmra.mrb[0].mxu0 %v85
  %v135 = vpop.f32.mrb[0].mxu0
  %v136 = vadd.f32 0.0, %v135
  %v137 = vpop.f32.mrb[0].mxu0
  %v138 = vpop.f32.mrb[0].mxu0
  %v139 = vadd.f32 0.0, %v138
  %v140 = vpop.f32.mrb[0].mxu0
  %141 = vmatprep.mubr.bf16.mxu0 0
  %142 = vmatmul.mubr.bf16.gmra.mrb[0].mxu0 %v88
  %v143 = vpop.f32.mrb[0].mxu0
  %v144 = vadd.f32 0.0, %v143
  %v145 = vpop.f32.mrb[0].mxu0
  %v146 = vpop.f32.mrb[0].mxu0
  %v147 = vadd.f32 0.0, %v146
  %v148 = vpop.f32.mrb[0].mxu0
  %149 = vmatprep.mubr.bf16.mxu0 0
  %150 = vmatmul.mubr.bf16.gmra.mrb[0].mxu0 %v91
  %v151 = vpop.f32.mrb[0].mxu0
  %v152 = vadd.f32 0.0, %v151
  %v153 = vpop.f32.mrb[0].mxu0
  %v154 = vpop.f32.mrb[0].mxu0
  %v155 = vadd.f32 0.0, %v154
  %v156 = vpop.f32.mrb[0].mxu0
  %157 = vdwg.mxu0
  %v158 = vadd.f32 %v28, %v128
  %v159 = vadd.f32 %v29, %v131
  %v160 = vadd.f32 %v30, %v136
  %v161 = vadd.f32 %v31, %v139
  %v162 = vadd.f32 %v32, %v144
  %v163 = vadd.f32 %v33, %v147
  %v164 = vadd.f32 %v34, %v152
  %v165 = vadd.f32 %v35, %v155
  %vm166 = vcmask 785408
  %167 = vst.msk [vmem:[#allocation2] sm:$0xff] %vm166, %v158
  %168 = vst.msk [vmem:[#allocation2 + $0x8] sm:$0xff] %vm166, %v159
  %169 = vst.msk [vmem:[#allocation2 + $0x10] sm:$0xff] %vm166, %v160
  %170 = vst.msk [vmem:[#allocation2 + $0x18] sm:$0xff] %vm166, %v161
  %171 = vst.msk [vmem:[#allocation2 + $0x20] sm:$0xff] %vm166, %v162
  %172 = vst.msk [vmem:[#allocation2 + $0x28] sm:$0xff] %vm166, %v163
  %173 = vst.msk [vmem:[#allocation2 + $0x30] sm:$0xff] %vm166, %v164
  %174 = vst.msk [vmem:[#allocation2 + $0x38] sm:$0xff] %vm166, %v165
  // Predicated region
  $region18: #{img_vision_transformer_forward.21} parent=0 // pred_check
    %p175 = pneg %p15
  $region19: #{img_vision_transformer_forward.21} parent=0 // pred_check_branch
    %177 = sbr.rel (%p175) target = $region21
  $region20: #{img_vision_transformer_forward.21} parent=0 // pred_region
    %v178 = vld [vmem:[#allocation2] sm:$0xff]
    %v179 = vld [vmem:[#allocation2 + $0x8] sm:$0xff]
    %v180 = vld [vmem:[#allocation2 + $0x10] sm:$0xff]
    %v181 = vld [vmem:[#allocation2 + $0x18] sm:$0xff]
    %v182 = vld [vmem:[#allocation2 + $0x20] sm:$0xff]
    %v183 = vld [vmem:[#allocation2 + $0x28] sm:$0xff]
    %v184 = vld [vmem:[#allocation2 + $0x30] sm:$0xff]
    %v185 = vld [vmem:[#allocation2 + $0x38] sm:$0xff]
    %v186 = vld [vmem:[%s2] sm:$0x1]
    %v188 = vlaneseq
    %v189 = vshrl.u32 %v188, 7
    %v190 = vsub.s32 0, %v189
    %v191 = vrot.slane %v186, %v190
    %v193 = vadd.f32 %v178, %v191
    %v194 = vadd.f32 %v179, %v191
    %v195 = vadd.f32 %v180, %v191
    %v196 = vadd.f32 %v181, %v191
    %v197 = vadd.f32 %v182, %v191
    %v198 = vadd.f32 %v183, %v191
    %v199 = vadd.f32 %v184, %v191
    %v200 = vadd.f32 %v185, %v191
    %v201 = vpack.c.bf16 %v194, %v193
    %v202 = vpack.c.bf16 %v196, %v195
    %v203 = vpack.c.bf16 %v198, %v197
    %v204 = vpack.c.bf16 %v200, %v199
    %v209 = vunpack.c.l.b16 %v201
    %v210 = vunpack.c.h.b16 %v201
    %v211 = vunpack.c.l.b16 %v202
    %v212 = vunpack.c.h.b16 %v202
    %v213 = vunpack.c.l.b16 %v203
    %v214 = vunpack.c.h.b16 %v203
    %v215 = vunpack.c.l.b16 %v204
    %v216 = vunpack.c.h.b16 %v204
    %v217 = vpack.c.b16 %v209, %v209
    %v218 = vpack.c.b16 %v210, %v210
    %v219 = vpack.c.b16 %v211, %v211
    %v220 = vpack.c.b16 %v212, %v212
    %v221 = vpack.c.b16 %v213, %v213
    %v222 = vpack.c.b16 %v214, %v214
    %v223 = vpack.c.b16 %v215, %v215
    %v224 = vpack.c.b16 %v216, %v216
    %vm233 = vcmask 781312
    %234 = vst.msk [vmem:[%s3] sm:$0xf] %vm233, %v217
    %235 = vst.msk [vmem:[%s3 + $0x4] sm:$0xf] %vm233, %v218
    %236 = vst.msk [vmem:[%s3 + $0x8] sm:$0xf] %vm233, %v219
    %237 = vst.msk [vmem:[%s3 + $0xc] sm:$0xf] %vm233, %v220
    %238 = vst.msk [vmem:[%s3 + $0x10] sm:$0xf] %vm233, %v221
    %239 = vst.msk [vmem:[%s3 + $0x14] sm:$0xf] %vm233, %v222
    %240 = vst.msk [vmem:[%s3 + $0x18] sm:$0xf] %vm233, %v223
    %241 = vst.msk [vmem:[%s3 + $0x1c] sm:$0xf] %vm233, %v224
  $region21: #{img_vision_transformer_forward.21} parent=0 // pred_fallthru
    _
  // Predicated region
  $region22: #{img_vision_transformer_forward.21} parent=0 // pred_check
    _
  $region23: #{img_vision_transformer_forward.21} parent=0 // pred_check_branch
    %243 = sbr.rel (0) target = $region25
  $region24: #{img_vision_transformer_forward.21} parent=0 // pred_region
    _
  $region25: #{img_vision_transformer_forward.21} parent=0 // pred_fallthru
    _
  // Predicated region
  $region26: #{img_vision_transformer_forward.21} parent=0 // pred_check
    _
  $region27: #{img_vision_transformer_forward.21} parent=0 // pred_check_branch
    %245 = sbr.rel (0) target = $region29
  $region28: #{img_vision_transformer_forward.21} parent=0 // pred_region
    _
  $region29: #{img_vision_transformer_forward.21} parent=0 // pred_fallthru
    _

// kernel: img_vision_transformer_forward.23
$region0: #{img_vision_transformer_forward.23}
  #allocation0 [shape = 'u32[]', space=smem, size = 0x4, offset = 0x4, fixed_abs, tag = 'smem constant byte address 0x4 - core index']
  #allocation1 [shape = 'u32[144,128]{1,0:T(1,128)}', space=vmem, size = 0x12000, scoped, tag = 'internal scratch']
  #allocation2 [shape = 'f32[64,32]{1,0:T(8,128)}', space=vmem, size = 0x8000, scoped, tag = 'scratch operand']
  %s0 = inlined_call_operand.vmem [shape: bf16[64,32], index: 0, kind: input, shape index: {}]
  %s1 = inlined_call_operand.vmem [shape: bf16[32,32], index: 1, kind: input, shape index: {}]
  %s2 = inlined_call_operand.vmem [shape: f32[1,32], index: 2, kind: input, shape index: {}]
  %s3 = inlined_call_operand.vmem [shape: bf16[64,32], index: 3, kind: input, shape index: {}]
  %s4 = inlined_call_operand.vmem [shape: bf16[64,32], index: 4, kind: output, shape index: {}]
  %s5 = sld [smem:[#allocation0]]
  $region34: #{img_vision_transformer_forward.23} parent=0
    _
  %s7 = ssub.s32 1, %s5
  %s8 = scalar_select 0, %s7, %s5
  // Predicated region
  $region2: #{img_vision_transformer_forward.23} parent=0 // pred_check
    _
  $region3: #{img_vision_transformer_forward.23} parent=0 // pred_check_branch
    %10 = sbr.rel (0) target = $region5
  $region4: #{img_vision_transformer_forward.23} parent=0 // pred_region
    _
  $region5: #{img_vision_transformer_forward.23} parent=0 // pred_fallthru
    _
  // Predicated region
  $region6: #{img_vision_transformer_forward.23} parent=0 // pred_check
    _
  $region7: #{img_vision_transformer_forward.23} parent=0 // pred_check_branch
    %12 = sbr.rel (0) target = $region9
  $region8: #{img_vision_transformer_forward.23} parent=0 // pred_region
    _
  $region9: #{img_vision_transformer_forward.23} parent=0 // pred_fallthru
    _
  // Predicated region
  $region10: #{img_vision_transformer_forward.23} parent=0 // pred_check
    _
  $region11: #{img_vision_transformer_forward.23} parent=0 // pred_check_branch
    %14 = sbr.rel (0) target = $region13
  $region12: #{img_vision_transformer_forward.23} parent=0 // pred_region
    _
  $region13: #{img_vision_transformer_forward.23} parent=0 // pred_fallthru
    _
  // Predicated region
  $region14: #{img_vision_transformer_forward.23} parent=0 // pred_check
    _
  $region15: #{img_vision_transformer_forward.23} parent=0 // pred_check_branch
    %16 = sbr.rel (0) target = $region17
  $region16: #{img_vision_transformer_forward.23} parent=0 // pred_region
    _
  $region17: #{img_vision_transformer_forward.23} parent=0 // pred_fallthru
    _
  %p18 = scmp.eq.s32.totalorder 0, 0
  // Predicated region
  $region18: #{img_vision_transformer_forward.23} parent=0 // pred_check
    %p19 = pneg %p18
  $region19: #{img_vision_transformer_forward.23} parent=0 // pred_check_branch
    %21 = sbr.rel (%p19) target = $region21
  $region20: #{img_vision_transformer_forward.23} parent=0 // pred_region
    %vm22 = vcmask 261120
    %23 = vst.msk [vmem:[#allocation2] sm:$0xff] %vm22, 0.0
    %24 = vst.msk [vmem:[#allocation2 + $0x8] sm:$0xff] %vm22, 0.0
    %25 = vst.msk [vmem:[#allocation2 + $0x10] sm:$0xff] %vm22, 0.0
    %26 = vst.msk [vmem:[#allocation2 + $0x18] sm:$0xff] %vm22, 0.0
    %27 = vst.msk [vmem:[#allocation2 + $0x20] sm:$0xff] %vm22, 0.0
    %28 = vst.msk [vmem:[#allocation2 + $0x28] sm:$0xff] %vm22, 0.0
    %29 = vst.msk [vmem:[#allocation2 + $0x30] sm:$0xff] %vm22, 0.0
    %30 = vst.msk [vmem:[#allocation2 + $0x38] sm:$0xff] %vm22, 0.0
  $region21: #{img_vision_transformer_forward.23} parent=0 // pred_fallthru
    _
  %v31 = vld [vmem:[#allocation2] sm:$0xff]
  %v32 = vld [vmem:[#allocation2 + $0x8] sm:$0xff]
  %v33 = vld [vmem:[#allocation2 + $0x10] sm:$0xff]
  %v34 = vld [vmem:[#allocation2 + $0x18] sm:$0xff]
  %v35 = vld [vmem:[#allocation2 + $0x20] sm:$0xff]
  %v36 = vld [vmem:[#allocation2 + $0x28] sm:$0xff]
  %v37 = vld [vmem:[#allocation2 + $0x30] sm:$0xff]
  %v38 = vld [vmem:[#allocation2 + $0x38] sm:$0xff]
  %v39 = vld [vmem:[%s0] sm:$0xf]
  %v40 = vld [vmem:[%s0 + $0x4] sm:$0xf]
  %v41 = vld [vmem:[%s0 + $0x8] sm:$0xf]
  %v42 = vld [vmem:[%s0 + $0xc] sm:$0xf]
  %v43 = vld [vmem:[%s0 + $0x10] sm:$0xf]
  %v44 = vld [vmem:[%s0 + $0x14] sm:$0xf]
  %v45 = vld [vmem:[%s0 + $0x18] sm:$0xf]
  %v46 = vld [vmem:[%s0 + $0x1c] sm:$0xf]
  %v47 = vld [vmem:[%s1] sm:$0xf]
  %v48 = vld [vmem:[%s1 + $0x4] sm:$0xf]
  %v49 = vld [vmem:[%s1 + $0x8] sm:$0xf]
  %v50 = vld [vmem:[%s1 + $0xc] sm:$0xf]
  %v59 = vunpack.c.l.b16 %v39
  %v60 = vunpack.c.l.b16 %v40
  %v61 = vunpack.c.l.b16 %v41
  %v62 = vunpack.c.l.b16 %v42
  %v63 = vunpack.c.l.b16 %v43
  %v64 = vunpack.c.l.b16 %v44
  %v65 = vunpack.c.l.b16 %v45
  %v66 = vunpack.c.l.b16 %v46
  %v67 = vpack.c.b16 %v60, %v59
  %v68 = vpack.c.b16 %v62, %v61
  %v69 = vpack.c.b16 %v64, %v63
  %v70 = vpack.c.b16 %v66, %v65
  %v75 = vunpack.c.l.b16 %v47
  %v76 = vunpack.c.l.b16 %v48
  %v77 = vunpack.c.l.b16 %v49
  %v78 = vunpack.c.l.b16 %v50
  %v79 = vpack.c.b16 %v76, %v75
  %v80 = vpack.c.b16 %v78, %v77
  %vm83 = vcmask 261120
  %v85 = vsel %vm83, %v67, 0
  %v88 = vsel %vm83, %v68, 0
  %v91 = vsel %vm83, %v69, 0
  %v94 = vsel %vm83, %v70, 0
  %96 = vmatprep.subr.bf16.mxu0 0
  %97 = vmatpush1.bf16.msra.mxu0 %v79
  %98 = vmatprep.subr.bf16.mxu0 0
  %99 = vmatpush1.bf16.msra.mxu0 %v80
  %100 = vmatprep.subr.bf16.mxu0 0
  %101 = vmatpush1.bf16.msra.mxu0 0
  %102 = vmatprep.subr.bf16.mxu0 0
  %103 = vmatpush1.bf16.msra.mxu0 0
  %104 = vmatprep.subr.bf16.mxu0 0
  %105 = vmatpush1.bf16.msra.mxu0 0
  %106 = vmatprep.subr.bf16.mxu0 0
  %107 = vmatpush1.bf16.msra.mxu0 0
  %108 = vmatprep.subr.bf16.mxu0 0
  %109 = vmatpush1.bf16.msra.mxu0 0
  %110 = vmatprep.subr.bf16.mxu0 0
  %111 = vmatpush1.bf16.msra.mxu0 0
  %112 = vmatprep.subr.bf16.mxu0 0
  %113 = vmatpush1.bf16.msra.mxu0 0
  %114 = vmatprep.subr.bf16.mxu0 0
  %115 = vmatpush1.bf16.msra.mxu0 0
  %116 = vmatprep.subr.bf16.mxu0 0
  %117 = vmatpush1.bf16.msra.mxu0 0
  %118 = vmatprep.subr.bf16.mxu0 0
  %119 = vmatpush1.bf16.msra.mxu0 0
  %120 = vmatprep.subr.bf16.mxu0 0
  %121 = vmatpush1.bf16.msra.mxu0 0
  %122 = vmatprep.subr.bf16.mxu0 0
  %123 = vmatpush1.bf16.msra.mxu0 0
  %124 = vmatprep.subr.bf16.mxu0 0
  %125 = vmatpush1.bf16.msra.mxu0 0
  %126 = vmatprep.subr.bf16.mxu0 0
  %127 = vmatpush1.bf16.msra.mxu0 0
  %128 = vmatprep.mubr.bf16.mxu0 0
  %129 = vmatmul.mubr.bf16.gmra.mrb[0].mxu0 %v85
  %v130 = vpop.f32.mrb[0].mxu0
  %v131 = vadd.f32 0.0, %v130
  %v132 = vpop.f32.mrb[0].mxu0
  %v133 = vpop.f32.mrb[0].mxu0
  %v134 = vadd.f32 0.0, %v133
  %v135 = vpop.f32.mrb[0].mxu0
  %136 = vmatprep.mubr.bf16.mxu0 0
  %137 = vmatmul.mubr.bf16.gmra.mrb[0].mxu0 %v88
  %v138 = vpop.f32.mrb[0].mxu0
  %v139 = vadd.f32 0.0, %v138
  %v140 = vpop.f32.mrb[0].mxu0
  %v141 = vpop.f32.mrb[0].mxu0
  %v142 = vadd.f32 0.0, %v141
  %v143 = vpop.f32.mrb[0].mxu0
  %144 = vmatprep.mubr.bf16.mxu0 0
  %145 = vmatmul.mubr.bf16.gmra.mrb[0].mxu0 %v91
  %v146 = vpop.f32.mrb[0].mxu0
  %v147 = vadd.f32 0.0, %v146
  %v148 = vpop.f32.mrb[0].mxu0
  %v149 = vpop.f32.mrb[0].mxu0
  %v150 = vadd.f32 0.0, %v149
  %v151 = vpop.f32.mrb[0].mxu0
  %152 = vmatprep.mubr.bf16.mxu0 0
  %153 = vmatmul.mubr.bf16.gmra.mrb[0].mxu0 %v94
  %v154 = vpop.f32.mrb[0].mxu0
  %v155 = vadd.f32 0.0, %v154
  %v156 = vpop.f32.mrb[0].mxu0
  %v157 = vpop.f32.mrb[0].mxu0
  %v158 = vadd.f32 0.0, %v157
  %v159 = vpop.f32.mrb[0].mxu0
  %160 = vdwg.mxu0
  %v161 = vadd.f32 %v31, %v131
  %v162 = vadd.f32 %v32, %v134
  %v163 = vadd.f32 %v33, %v139
  %v164 = vadd.f32 %v34, %v142
  %v165 = vadd.f32 %v35, %v147
  %v166 = vadd.f32 %v36, %v150
  %v167 = vadd.f32 %v37, %v155
  %v168 = vadd.f32 %v38, %v158
  %169 = vst.msk [vmem:[#allocation2] sm:$0xff] %vm83, %v161
  %170 = vst.msk [vmem:[#allocation2 + $0x8] sm:$0xff] %vm83, %v162
  %171 = vst.msk [vmem:[#allocation2 + $0x10] sm:$0xff] %vm83, %v163
  %172 = vst.msk [vmem:[#allocation2 + $0x18] sm:$0xff] %vm83, %v164
  %173 = vst.msk [vmem:[#allocation2 + $0x20] sm:$0xff] %vm83, %v165
  %174 = vst.msk [vmem:[#allocation2 + $0x28] sm:$0xff] %vm83, %v166
  %175 = vst.msk [vmem:[#allocation2 + $0x30] sm:$0xff] %vm83, %v167
  %176 = vst.msk [vmem:[#allocation2 + $0x38] sm:$0xff] %vm83, %v168
  // Predicated region
  $region22: #{img_vision_transformer_forward.23} parent=0 // pred_check
    %p177 = pneg %p18
  $region23: #{img_vision_transformer_forward.23} parent=0 // pred_check_branch
    %179 = sbr.rel (%p177) target = $region25
  $region24: #{img_vision_transformer_forward.23} parent=0 // pred_region
    %v180 = vld [vmem:[#allocation2] sm:$0xff]
    %v181 = vld [vmem:[#allocation2 + $0x8] sm:$0xff]
    %v182 = vld [vmem:[#allocation2 + $0x10] sm:$0xff]
    %v183 = vld [vmem:[#allocation2 + $0x18] sm:$0xff]
    %v184 = vld [vmem:[#allocation2 + $0x20] sm:$0xff]
    %v185 = vld [vmem:[#allocation2 + $0x28] sm:$0xff]
    %v186 = vld [vmem:[#allocation2 + $0x30] sm:$0xff]
    %v187 = vld [vmem:[#allocation2 + $0x38] sm:$0xff]
    %v188 = vld [vmem:[%s2] sm:$0x1]
    %v190 = vlaneseq
    %v191 = vshrl.u32 %v190, 7
    %v192 = vsub.s32 0, %v191
    %v193 = vrot.slane %v188, %v192
    %v195 = vadd.f32 %v180, %v193
    %v196 = vadd.f32 %v181, %v193
    %v197 = vadd.f32 %v182, %v193
    %v198 = vadd.f32 %v183, %v193
    %v199 = vadd.f32 %v184, %v193
    %v200 = vadd.f32 %v185, %v193
    %v201 = vadd.f32 %v186, %v193
    %v202 = vadd.f32 %v187, %v193
    %v203 = vld [vmem:[%s3] sm:$0xf]
    %v204 = vld [vmem:[%s3 + $0x4] sm:$0xf]
    %v205 = vld [vmem:[%s3 + $0x8] sm:$0xf]
    %v206 = vld [vmem:[%s3 + $0xc] sm:$0xf]
    %v207 = vld [vmem:[%s3 + $0x10] sm:$0xf]
    %v208 = vld [vmem:[%s3 + $0x14] sm:$0xf]
    %v209 = vld [vmem:[%s3 + $0x18] sm:$0xf]
    %v210 = vld [vmem:[%s3 + $0x1c] sm:$0xf]
    %v211 = vunpack.c.l.bf16 %v203
    %v212 = vunpack.c.l.bf16 %v204
    %v213 = vunpack.c.l.bf16 %v205
    %v214 = vunpack.c.l.bf16 %v206
    %v215 = vunpack.c.l.bf16 %v207
    %v216 = vunpack.c.l.bf16 %v208
    %v217 = vunpack.c.l.bf16 %v209
    %v218 = vunpack.c.l.bf16 %v210
    %v219 = vadd.f32 %v195, %v211
    %v220 = vadd.f32 %v196, %v212
    %v221 = vadd.f32 %v197, %v213
    %v222 = vadd.f32 %v198, %v214
    %v223 = vadd.f32 %v199, %v215
    %v224 = vadd.f32 %v200, %v216
    %v225 = vadd.f32 %v201, %v217
    %v226 = vadd.f32 %v202, %v218
    %v227 = vpack.c.bf16 %v220, %v219
    %v228 = vpack.c.bf16 %v222, %v221
    %v229 = vpack.c.bf16 %v224, %v223
    %v230 = vpack.c.bf16 %v226, %v225
    %v235 = vunpack.c.l.b16 %v227
    %v236 = vunpack.c.h.b16 %v227
    %v237 = vunpack.c.l.b16 %v228
    %v238 = vunpack.c.h.b16 %v228
    %v239 = vunpack.c.l.b16 %v229
    %v240 = vunpack.c.h.b16 %v229
    %v241 = vunpack.c.l.b16 %v230
    %v242 = vunpack.c.h.b16 %v230
    %v243 = vpack.c.b16 %v235, %v235
    %v244 = vpack.c.b16 %v236, %v236
    %v245 = vpack.c.b16 %v237, %v237
    %v246 = vpack.c.b16 %v238, %v238
    %v247 = vpack.c.b16 %v239, %v239
    %v248 = vpack.c.b16 %v240, %v240
    %v249 = vpack.c.b16 %v241, %v241
    %v250 = vpack.c.b16 %v242, %v242
    %vm259 = vcmask 257024
    %260 = vst.msk [vmem:[%s4] sm:$0xf] %vm259, %v243
    %261 = vst.msk [vmem:[%s4 + $0x4] sm:$0xf] %vm259, %v244
    %262 = vst.msk [vmem:[%s4 + $0x8] sm:$0xf] %vm259, %v245
    %263 = vst.msk [vmem:[%s4 + $0xc] sm:$0xf] %vm259, %v246
    %264 = vst.msk [vmem:[%s4 + $0x10] sm:$0xf] %vm259, %v247
    %265 = vst.msk [vmem:[%s4 + $0x14] sm:$0xf] %vm259, %v248
    %266 = vst.msk [vmem:[%s4 + $0x18] sm:$0xf] %vm259, %v249
    %267 = vst.msk [vmem:[%s4 + $0x1c] sm:$0xf] %vm259, %v250
  $region25: #{img_vision_transformer_forward.23} parent=0 // pred_fallthru
    _
  // Predicated region
  $region26: #{img_vision_transformer_forward.23} parent=0 // pred_check
    _
  $region27: #{img_vision_transformer_forward.23} parent=0 // pred_check_branch
    %269 = sbr.rel (0) target = $region29
  $region28: #{img_vision_transformer_forward.23} parent=0 // pred_region
    _
  $region29: #{img_vision_transformer_forward.23} parent=0 // pred_fallthru
    _
  // Predicated region
  $region30: #{img_vision_transformer_forward.23} parent=0 // pred_check
    _
  $region31: #{img_vision_transformer_forward.23} parent=0 // pred_check_branch
    %271 = sbr.rel (0) target = $region33
  $region32: #{img_vision_transformer_forward.23} parent=0 // pred_region
    _
  $region33: #{img_vision_transformer_forward.23} parent=0 // pred_fallthru
    _

// kernel: img_vision_transformer_forward.22
$region0: #{img_vision_transformer_forward.22}
  #allocation0 [shape = 'u32[]', space=smem, size = 0x4, offset = 0x4, fixed_abs, tag = 'smem constant byte address 0x4 - core index']
  #allocation1 [shape = 'u32[144,128]{1,0:T(1,128)}', space=vmem, size = 0x12000, scoped, tag = 'internal scratch']
  %s0 = inlined_call_operand.vmem [shape: bf16[2,32,32], index: 0, kind: input, shape index: {}]
  %s1 = inlined_call_operand.vmem [shape: bf16[2,32,32], index: 1, kind: input, shape index: {}]
  %s2 = inlined_call_operand.vmem [shape: bf16[2,32,32], index: 2, kind: input, shape index: {}]
  %s3 = inlined_call_operand.vmem [shape: bf16[2,32,32], index: 3, kind: output, shape index: {}]
  %s4 = sld [smem:[#allocation0]]
  $region45: #{img_vision_transformer_forward.22} parent=0
    _
  %s6 = ssub.s32 1, %s4
  %s7 = scalar_select 0, %s6, %s4
  loop: start=0, step=1, limit=4
  $region2: #{img_vision_transformer_forward.22} parent=0 // loop_pre_header
    _
  $region3: #{img_vision_transformer_forward.22} parent=0 // loop_header
    %s9 = sphi 0, %s13
    %p10 = scmp.ge.s32.totalorder %s9, 4
    %s16 = sphi 0, %s28
    %s17 = sphi 0, %s24
    %s18 = sphi 0, %s16
    %s19 = sphi 0, %s17
    %s20 = sphi 0, %s18
    %s21 = sphi 0, %s19
    %s33 = sphi 0, %s35
    %s36 = sphi 0, %s33
    %s37 = sphi 0, %s36
    %s53 = sphi 0, %s37
    %s59 = sphi 0, %s61
    %s62 = sphi 0, %s59
    %s63 = sphi 0, %s62
    %s79 = sphi 0, %s63
    %s85 = sphi 0, %s87
    %s88 = sphi 0, %s85
    %s89 = sphi 0, %s88
    %s105 = sphi 0, %s89
    %s113 = sphi 0, %s115
    %s116 = sphi 0, %s113
    %s117 = sphi 0, %s116
    %s133 = sphi 0, %s117
  $region4: #{img_vision_transformer_forward.22} parent=0 // loop_header_branch
    %12 = sbr.rel (%p10) target = $region8
  $region5: #{img_vision_transformer_forward.22} parent=0 // loop_body
    %s14 = ssub.s32 %s9, 1
    %s15 = ssub.s32 %s9, 2
    %s22 = sadd.s32 1, %s17
    %p23 = scmp.ge.s32.totalorder %s22, 1
    %s24 = scalar_select %p23, 0, %s22
    %s25 = sadd.s32 1, %s16
    %s26 = scalar_select %p23, %s25, %s16
    %p27 = scmp.ge.s32.totalorder %s26, 2
    %s28 = scalar_select %p27, 0, %s26
    %s29 = ssub.s32 %s16, %s28
    %s30 = ssub.s32 %s17, %s24
    %s31 = sor.u32 %s29, %s30
    %p32 = scmp.eq.s32.totalorder %s31, 0
    %s34 = sadd.s32 %s33, 1
    %s35 = scalar_select %p32, %s33, %s34
    %p38 = pneg %p32
    %p39 = scmp.eq.s32.totalorder %s9, 1
    %p40 = por %p38, %p39
    %p41 = scmp.ne.s32.totalorder %s33, %s36
    %p42 = scmp.eq.s32.totalorder %s9, 0
    %p43 = por %p41, %p42
    %p44 = scmp.ne.s32.totalorder %s33, %s36
    %p45 = scmp.eq.s32.totalorder %s14, 1
    %p46 = por %p44, %p45
    %p47 = scmp.ne.s32.totalorder %s36, %s37
    %p48 = scmp.eq.s32.totalorder %s14, 0
    %p49 = por %p47, %p48
    %p50 = scmp.ne.s32.totalorder %s36, %s37
    %p51 = scmp.eq.s32.totalorder %s15, 1
    %p52 = por %p50, %p51
    %p54 = scmp.ne.s32.totalorder %s37, %s53
    %p55 = scmp.eq.s32.totalorder %s15, 0
    %p56 = por %p54, %p55
    %s57 = ssub.s32 %s16, %s28
    %p58 = scmp.eq.s32.totalorder %s57, 0
    %s60 = sadd.s32 %s59, 1
    %s61 = scalar_select %p58, %s59, %s60
    %p64 = pneg %p58
    %p65 = scmp.eq.s32.totalorder %s9, 1
    %p66 = por %p64, %p65
    %p67 = scmp.ne.s32.totalorder %s59, %s62
    %p68 = scmp.eq.s32.totalorder %s9, 0
    %p69 = por %p67, %p68
    %p70 = scmp.ne.s32.totalorder %s59, %s62
    %p71 = scmp.eq.s32.totalorder %s14, 1
    %p72 = por %p70, %p71
    %p73 = scmp.ne.s32.totalorder %s62, %s63
    %p74 = scmp.eq.s32.totalorder %s14, 0
    %p75 = por %p73, %p74
    %p76 = scmp.ne.s32.totalorder %s62, %s63
    %p77 = scmp.eq.s32.totalorder %s15, 1
    %p78 = por %p76, %p77
    %p80 = scmp.ne.s32.totalorder %s63, %s79
    %p81 = scmp.eq.s32.totalorder %s15, 0
    %p82 = por %p80, %p81
    %s83 = ssub.s32 %s16, %s28
    %p84 = scmp.eq.s32.totalorder %s83, 0
    %s86 = sadd.s32 %s85, 1
    %s87 = scalar_select %p84, %s85, %s86
    %p90 = pneg %p84
    %p91 = scmp.eq.s32.totalorder %s9, 1
    %p92 = por %p90, %p91
    %p93 = scmp.ne.s32.totalorder %s85, %s88
    %p94 = scmp.eq.s32.totalorder %s9, 0
    %p95 = por %p93, %p94
    %p96 = scmp.ne.s32.totalorder %s85, %s88
    %p97 = scmp.eq.s32.totalorder %s14, 1
    %p98 = por %p96, %p97
    %p99 = scmp.ne.s32.totalorder %s88, %s89
    %p100 = scmp.eq.s32.totalorder %s14, 0
    %p101 = por %p99, %p100
    %p102 = scmp.ne.s32.totalorder %s88, %s89
    %p103 = scmp.eq.s32.totalorder %s15, 1
    %p104 = por %p102, %p103
    %p106 = scmp.ne.s32.totalorder %s89, %s105
    %p107 = scmp.eq.s32.totalorder %s15, 0
    %p108 = por %p106, %p107
    %s109 = ssub.s32 %s16, %s28
    %s110 = ssub.s32 %s17, %s24
    %s111 = sor.u32 %s109, %s110
    %p112 = scmp.eq.s32.totalorder %s111, 0
    %s114 = sadd.s32 %s113, 1
    %s115 = scalar_select %p112, %s113, %s114
    %p118 = pneg %p112
    %p119 = scmp.eq.s32.totalorder %s9, 1
    %p120 = por %p118, %p119
    %p121 = scmp.ne.s32.totalorder %s113, %s116
    %p122 = scmp.eq.s32.totalorder %s9, 0
    %p123 = por %p121, %p122
    %p124 = scmp.ne.s32.totalorder %s113, %s116
    %p125 = scmp.eq.s32.totalorder %s14, 1
    %p126 = por %p124, %p125
    %p127 = scmp.ne.s32.totalorder %s116, %s117
    %p128 = scmp.eq.s32.totalorder %s14, 0
    %p129 = por %p127, %p128
    %p130 = scmp.ne.s32.totalorder %s116, %s117
    %p131 = scmp.eq.s32.totalorder %s15, 1
    %p132 = por %p130, %p131
    %p134 = scmp.ne.s32.totalorder %s117, %s133
    %p135 = scmp.eq.s32.totalorder %s15, 0
    %p136 = por %p134, %p135
    %p137 = scmp.le.s32.totalorder 1, %s9
    %p138 = scmp.lt.s32.totalorder %s9, 3
    %p139 = pnand %p137, %p138
    %p140 = pneg %p139
    // Predicated region
    $region9: #{img_vision_transformer_forward.22} parent=5 // pred_check
      _
    $region10: #{img_vision_transformer_forward.22} parent=5 // pred_check_branch
      %142 = sbr.rel (%p139) target = $region12
    $region11: #{img_vision_transformer_forward.22} parent=5 // pred_region
      %s143 = ssub.s32 %s9, 1
    $region12: #{img_vision_transformer_forward.22} parent=5 // pred_fallthru
      _
    %p144 = scmp.lt.s32.totalorder %s9, 2
    // Predicated region
    $region13: #{img_vision_transformer_forward.22} parent=5 // pred_check
      %p145 = pneg %p144
    $region14: #{img_vision_transformer_forward.22} parent=5 // pred_check_branch
      %147 = sbr.rel (%p145) target = $region16
    $region15: #{img_vision_transformer_forward.22} parent=5 // pred_region
      // Predicated region
      $region17: #{img_vision_transformer_forward.22} parent=15 // pred_check
        %p148 = pneg %p43
      $region18: #{img_vision_transformer_forward.22} parent=15 // pred_check_branch
        %150 = sbr.rel (%p148) target = $region20
      $region19: #{img_vision_transformer_forward.22} parent=15 // pred_region
        %s151 = smul.u32 4, %s17
        %p152 = scmp.lt.s32.totalorder %s16, 1
        %s153 = scalar_select %p152, %s16, 1
        %p154 = scmp.lt.s32.totalorder %s151, 3
        %s155 = scalar_select %p154, %s151, 3
        %s156 = smul.addr %s153, 4
        %s157 = sadd.s32 %s155, %s156
        %s158 = smul.addr %s157, 4
        %s159 = scalar_lea.vmem %s0, %s158
        %s160 = smul.u32 4, %s17
      $region20: #{img_vision_transformer_forward.22} parent=15 // pred_fallthru
        _
      // Predicated region
      $region21: #{img_vision_transformer_forward.22} parent=15 // pred_check
        %p161 = pneg %p69
      $region22: #{img_vision_transformer_forward.22} parent=15 // pred_check_branch
        %163 = sbr.rel (%p161) target = $region24
      $region23: #{img_vision_transformer_forward.22} parent=15 // pred_region
        %p164 = scmp.lt.s32.totalorder %s16, 1
        %s165 = scalar_select %p164, %s16, 1
        %s166 = smul.addr %s165, 4
        %s167 = smul.addr %s166, 4
        %s168 = scalar_lea.vmem %s1, %s167
      $region24: #{img_vision_transformer_forward.22} parent=15 // pred_fallthru
        _
      // Predicated region
      $region25: #{img_vision_transformer_forward.22} parent=15 // pred_check
        %p169 = pneg %p95
      $region26: #{img_vision_transformer_forward.22} parent=15 // pred_check_branch
        %171 = sbr.rel (%p169) target = $region28
      $region27: #{img_vision_transformer_forward.22} parent=15 // pred_region
        %p172 = scmp.lt.s32.totalorder %s16, 1
        %s173 = scalar_select %p172, %s16, 1
        %s174 = smul.addr %s173, 4
        %s175 = smul.addr %s174, 4
        %s176 = scalar_lea.vmem %s2, %s175
      $region28: #{img_vision_transformer_forward.22} parent=15 // pred_fallthru
        _
    $region16: #{img_vision_transformer_forward.22} parent=5 // pred_fallthru
      _
    %p177 = scmp.le.s32.totalorder 1, %s9
    %p178 = scmp.lt.s32.totalorder %s9, 3
    %p179 = pnand %p177, %p178
    %p180 = pneg %p179
    // Predicated region
    $region29: #{img_vision_transformer_forward.22} parent=5 // pred_check
      _
    $region30: #{img_vision_transformer_forward.22} parent=5 // pred_check_branch
      %182 = sbr.rel (%p179) target = $region32
    $region31: #{img_vision_transformer_forward.22} parent=5 // pred_region
      %s183 = ssub.s32 %s9, 1
      %s184 = smul.u32 4, %s19
      %p185 = scmp.lt.s32.totalorder %s18, 1
      %s186 = scalar_select %p185, %s18, 1
      %p187 = scmp.lt.s32.totalorder %s184, 3
      %s188 = scalar_select %p187, %s184, 3
      %s189 = smul.addr %s186, 4
      %s190 = sadd.s32 %s188, %s189
      %s191 = smul.addr %s190, 4
      %s192 = scalar_lea.vmem %s0, %s191
      %p193 = pneg %p49
      %p194 = pneg %p46
      %p195 = scmp.lt.s32.totalorder %s18, 1
      %s196 = scalar_select %p195, %s18, 1
      %s197 = smul.addr %s196, 4
      %s198 = smul.addr %s197, 4
      %s199 = scalar_lea.vmem %s1, %s198
      %p200 = pneg %p75
      %p201 = pneg %p72
      %p202 = scmp.lt.s32.totalorder %s18, 1
      %s203 = scalar_select %p202, %s18, 1
      %s204 = smul.addr %s203, 4
      %s205 = smul.addr %s204, 4
      %s206 = scalar_lea.vmem %s2, %s205
      %p207 = pneg %p101
      %p208 = pneg %p98
      %p209 = pneg %p129
      %p210 = pneg %p126
      %s211 = smul.u32 4, %s19
      %p212 = scmp.lt.s32.totalorder %s18, 1
      %s213 = scalar_select %p212, %s18, 1
      %p214 = scmp.lt.s32.totalorder %s211, 3
      %s215 = scalar_select %p214, %s211, 3
      %s216 = smul.addr %s213, 4
      %s217 = sadd.s32 %s215, %s216
      %s218 = smul.addr %s217, 4
      %s219 = scalar_lea.vmem %s3, %s218
      %s220 = smul.u32 4, %s19
      %p221 = scmp.lt.s32.totalorder %s18, 1
      %s222 = scalar_select %p221, %s18, 1
      %p223 = scmp.lt.s32.totalorder %s220, 3
      %s224 = scalar_select %p223, %s220, 3
      %s225 = smul.addr %s222, 4
      %s226 = sadd.s32 %s224, %s225
      %s227 = smul.addr %s226, 4
      %s228 = scalar_lea.vmem %s0, %s227
      %s229 = smul.u32 4, %s19
      %p230 = scmp.lt.s32.totalorder %s18, 1
      %s231 = scalar_select %p230, %s18, 1
      %s232 = smul.addr %s231, 4
      %s233 = smul.addr %s232, 4
      %s234 = scalar_lea.vmem %s1, %s233
      %p235 = scmp.lt.s32.totalorder %s18, 1
      %s236 = scalar_select %p235, %s18, 1
      %s237 = smul.addr %s236, 4
      %s238 = smul.addr %s237, 4
      %s239 = scalar_lea.vmem %s2, %s238
      %s240 = smul.u32 4, %s19
      %p241 = scmp.lt.s32.totalorder %s18, 1
      %s242 = scalar_select %p241, %s18, 1
      %p243 = scmp.lt.s32.totalorder %s240, 3
      %s244 = scalar_select %p243, %s240, 3
      %s245 = smul.addr %s242, 4
      %s246 = sadd.s32 %s244, %s245
      %s247 = smul.addr %s246, 4
      %s248 = scalar_lea.vmem %s3, %s247
      %s249 = smul.u32 4, %s19
      %v251 = vld [vmem:[%s228] sm:$0xf]
      %v252 = vld [vmem:[%s228 + $0x4] sm:$0xf]
      %v253 = vld [vmem:[%s228 + $0x8] sm:$0xf]
      %v254 = vld [vmem:[%s228 + $0xc] sm:$0xf]
      %v255 = vld [vmem:[%s234] sm:$0xf]
      %v256 = vld [vmem:[%s234 + $0x4] sm:$0xf]
      %v257 = vld [vmem:[%s234 + $0x8] sm:$0xf]
      %v258 = vld [vmem:[%s234 + $0xc] sm:$0xf]
      %v259 = vld [vmem:[%s239] sm:$0xf]
      %v260 = vld [vmem:[%s239 + $0x4] sm:$0xf]
      %v261 = vld [vmem:[%s239 + $0x8] sm:$0xf]
      %v262 = vld [vmem:[%s239 + $0xc] sm:$0xf]
      %v263 = vlaneseq
      %v264 = vand.u32 %v263, 127
      %vm265 = vcmp.lt.s32.totalorder %v264, 17
      %v266 = vsel %vm265, 0.0, -1e+30
      %v271 = vunpack.c.l.b16 %v251
      %v272 = vunpack.c.l.b16 %v252
      %v273 = vunpack.c.l.b16 %v253
      %v274 = vunpack.c.l.b16 %v254
      %v275 = vpack.c.b16 %v272, %v271
      %v276 = vpack.c.b16 %v274, %v273
      %v281 = vunpack.c.l.b16 %v255
      %v282 = vunpack.c.l.b16 %v256
      %v283 = vunpack.c.l.b16 %v257
      %v284 = vunpack.c.l.b16 %v258
      %v285 = vpack.c.b16 %v282, %v281
      %v286 = vpack.c.b16 %v284, %v283
      %vm287 = vcmask 130048
      %v289 = vsel %vm287, %v275, 0
      %v292 = vsel %vm287, %v276, 0
      %v295 = vsel %vm287, %v285, 0
      %v298 = vsel %vm287, %v286, 0
      %300 = vmatprep.subr.bf16.mxu0 0
      %301 = vmatpush1.bf16.xpose.msra.mxu0 %v295
      %302 = vmatprep.subr.bf16.mxu0 0
      %303 = vmatpush1.bf16.xpose.msra.mxu0 %v298
      %304 = vmatprep.subr.bf16.mxu0 0
      %305 = vmatpush1.bf16.xpose.msra.mxu0 0
      %306 = vmatprep.subr.bf16.mxu0 0
      %307 = vmatpush1.bf16.xpose.msra.mxu0 0
      %308 = vmatprep.subr.bf16.mxu0 0
      %309 = vmatpush1.bf16.xpose.msra.mxu0 0
      %310 = vmatprep.subr.bf16.mxu0 0
      %311 = vmatpush1.bf16.xpose.msra.mxu0 0
      %312 = vmatprep.subr.bf16.mxu0 0
      %313 = vmatpush1.bf16.xpose.msra.mxu0 0
      %314 = vmatprep.subr.bf16.mxu0 0
      %315 = vmatpush1.bf16.xpose.msra.mxu0 0
      %316 = vmatprep.subr.bf16.mxu0 0
      %317 = vmatpush1.bf16.xpose.msra.mxu0 0
      %318 = vmatprep.subr.bf16.mxu0 0
      %319 = vmatpush1.bf16.xpose.msra.mxu0 0
      %320 = vmatprep.subr.bf16.mxu0 0
      %321 = vmatpush1.bf16.xpose.msra.mxu0 0
      %322 = vmatprep.subr.bf16.mxu0 0
      %323 = vmatpush1.bf16.xpose.msra.mxu0 0
      %324 = vmatprep.subr.bf16.mxu0 0
      %325 = vmatpush1.bf16.xpose.msra.mxu0 0
      %326 = vmatprep.subr.bf16.mxu0 0
      %327 = vmatpush1.bf16.xpose.msra.mxu0 0
      %328 = vmatprep.subr.bf16.mxu0 0
      %329 = vmatpush1.bf16.xpose.msra.mxu0 0
      %330 = vmatprep.subr.bf16.mxu0 0
      %331 = vmatpush1.bf16.xpose.msra.mxu0 0
      %332 = vmatprep.mubr.bf16.mxu0 0
      %333 = vmatmul.mubr.bf16.gmra.mrb[0].mxu0 %v289
      %v334 = vpop.f32.mrb[0].mxu0
      %v335 = vadd.f32 0.0, %v334
      %v336 = vpop.f32.mrb[0].mxu0
      %v337 = vpop.f32.mrb[0].mxu0
      %v338 = vadd.f32 0.0, %v337
      %v339 = vpop.f32.mrb[0].mxu0
      %340 = vmatprep.mubr.bf16.mxu0 0
      %341 = vmatmul.mubr.bf16.gmra.mrb[0].mxu0 %v292
      %v342 = vpop.f32.mrb[0].mxu0
      %v343 = vadd.f32 0.0, %v342
      %v344 = vpop.f32.mrb[0].mxu0
      %v345 = vpop.f32.mrb[0].mxu0
      %v346 = vadd.f32 0.0, %v345
      %v347 = vpop.f32.mrb[0].mxu0
      %348 = vdwg.mxu0
      %v349 = vmul.f32 %v335, 0.25
      %v350 = vmul.f32 %v338, 0.25
      %v351 = vmul.f32 %v343, 0.25
      %v352 = vmul.f32 %v346, 0.25
      %v353 = vadd.f32 %v349, %v266
      %v354 = vadd.f32 %v350, %v266
      %v355 = vadd.f32 %v351, %v266
      %v356 = vadd.f32 %v352, %v266
      %vm357 = vcmask 261120
      %v358 = vsel %vm357, %v353, -inf
      %359 = vmax.xlane.f32.xlu0 %v358
      %v360 = vpop.xlane.xlu0 %359
      %v361 = vsel %vm357, %v354, -inf
      %362 = vmax.xlane.f32.xlu0 %v361
      %v363 = vpop.xlane.xlu0 %362
      %v364 = vsel %vm357, %v355, -inf
      %365 = vmax.xlane.f32.xlu0 %v364
      %v366 = vpop.xlane.xlu0 %365
      %v367 = vsel %vm357, %v356, -inf
      %368 = vmax.xlane.f32.xlu0 %v367
      %v369 = vpop.xlane.xlu0 %368
      %v370 = vsub.f32 %v353, %v360
      %v371 = vsub.f32 %v354, %v363
      %v372 = vsub.f32 %v355, %v366
      %v373 = vsub.f32 %v356, %v369
      %v374 = vmul.f32 %v370, 1.442695
      %v375 = vpow.pop %v374
      %v376 = vmul.f32 %v371, 1.442695
      %v377 = vpow.pop %v376
      %v378 = vmul.f32 %v372, 1.442695
      %v379 = vpow.pop %v378
      %v380 = vmul.f32 %v373, 1.442695
      %v381 = vpow.pop %v380
      %v382 = vsel %vm357, %v375, 0.0
      %383 = vadd.xlane.f32.xlu0 %v382
      %v384 = vpop.xlane.xlu0 %383
      %v385 = vsel %vm357, %v377, 0.0
      %386 = vadd.xlane.f32.xlu0 %v385
      %v387 = vpop.xlane.xlu0 %386
      %v388 = vsel %vm357, %v379, 0.0
      %389 = vadd.xlane.f32.xlu0 %v388
      %v390 = vpop.xlane.xlu0 %389
      %v391 = vsel %vm357, %v381, 0.0
      %392 = vadd.xlane.f32.xlu0 %v391
      %v393 = vpop.xlane.xlu0 %392
      %v394 = vrcp.pop %v384
      %v395 = vrcp.pop %v387
      %v396 = vrcp.pop %v390
      %v397 = vrcp.pop %v393
      %v398 = vmul.f32 %v375, %v394
      %v399 = vmul.f32 %v377, %v395
      %v400 = vmul.f32 %v379, %v396
      %v401 = vmul.f32 %v381, %v397
      %v402 = vpack.c.bf16 %v399, %v398
      %v403 = vpack.c.bf16 %v401, %v400
      %v408 = vunpack.c.l.b16 %v259
      %v409 = vunpack.c.l.b16 %v260
      %v410 = vunpack.c.l.b16 %v261
      %v411 = vunpack.c.l.b16 %v262
      %v412 = vpack.c.b16 %v409, %v408
      %v413 = vpack.c.b16 %v411, %v410
      %v417 = vsel %vm357, %v402, 0
      %v420 = vsel %vm357, %v403, 0
      %422 = vmatprep.subr.bf16.mxu0 0
      %423 = vmatpush1.bf16.msra.mxu0 %v412
      %424 = vmatprep.subr.bf16.mxu0 0
      %425 = vmatpush1.bf16.msra.mxu0 %v413
      %426 = vmatprep.subr.bf16.mxu0 0
      %427 = vmatpush1.bf16.msra.mxu0 0
      %428 = vmatprep.subr.bf16.mxu0 0
      %429 = vmatpush1.bf16.msra.mxu0 0
      %430 = vmatprep.subr.bf16.mxu0 0
      %431 = vmatpush1.bf16.msra.mxu0 0
      %432 = vmatprep.subr.bf16.mxu0 0
      %433 = vmatpush1.bf16.msra.mxu0 0
      %434 = vmatprep.subr.bf16.mxu0 0
      %435 = vmatpush1.bf16.msra.mxu0 0
      %436 = vmatprep.subr.bf16.mxu0 0
      %437 = vmatpush1.bf16.msra.mxu0 0
      %438 = vmatprep.subr.bf16.mxu0 0
      %439 = vmatpush1.bf16.msra.mxu0 0
      %440 = vmatprep.subr.bf16.mxu0 0
      %441 = vmatpush1.bf16.msra.mxu0 0
      %442 = vmatprep.subr.bf16.mxu0 0
      %443 = vmatpush1.bf16.msra.mxu0 0
      %444 = vmatprep.subr.bf16.mxu0 0
      %445 = vmatpush1.bf16.msra.mxu0 0
      %446 = vmatprep.subr.bf16.mxu0 0
      %447 = vmatpush1.bf16.msra.mxu0 0
      %448 = vmatprep.subr.bf16.mxu0 0
      %449 = vmatpush1.bf16.msra.mxu0 0
      %450 = vmatprep.subr.bf16.mxu0 0
      %451 = vmatpush1.bf16.msra.mxu0 0
      %452 = vmatprep.subr.bf16.mxu0 0
      %453 = vmatpush1.bf16.msra.mxu0 0
      %454 = vmatprep.mubr.bf16.mxu0 0
      %455 = vmatmul.mubr.bf16.gmra.mrb[0].mxu0 %v417
      %v456 = vpop.f32.mrb[0].mxu0
      %v457 = vadd.f32 0.0, %v456
      %v458 = vpop.f32.mrb[0].mxu0
      %v459 = vpop.f32.mrb[0].mxu0
      %v460 = vadd.f32 0.0, %v459
      %v461 = vpop.f32.mrb[0].mxu0
      %462 = vmatprep.mubr.bf16.mxu0 0
      %463 = vmatmul.mubr.bf16.gmra.mrb[0].mxu0 %v420
      %v464 = vpop.f32.mrb[0].mxu0
      %v465 = vadd.f32 0.0, %v464
      %v466 = vpop.f32.mrb[0].mxu0
      %v467 = vpop.f32.mrb[0].mxu0
      %v468 = vadd.f32 0.0, %v467
      %v469 = vpop.f32.mrb[0].mxu0
      %470 = vdwg.mxu0
      %471 = vrot.lane.b32.xlu0 %v275, 112
      %v472 = vpop.permute.xlu0 %471
      %473 = vrot.lane.b32.xlu0 %v276, 112
      %v474 = vpop.permute.xlu0 %473
      %475 = vrot.lane.b32.xlu0 %v285, 112
      %v476 = vpop.permute.xlu0 %475
      %477 = vrot.lane.b32.xlu0 %v286, 112
      %v478 = vpop.permute.xlu0 %477
      %v480 = vsel %vm287, %v472, 0
      %v483 = vsel %vm287, %v474, 0
      %v486 = vsel %vm287, %v476, 0
      %v489 = vsel %vm287, %v478, 0
      %491 = vmatprep.subr.bf16.mxu0 0
      %492 = vmatpush1.bf16.xpose.msra.mxu0 %v486
      %493 = vmatprep.subr.bf16.mxu0 0
      %494 = vmatpush1.bf16.xpose.msra.mxu0 %v489
      %495 = vmatprep.subr.bf16.mxu0 0
      %496 = vmatpush1.bf16.xpose.msra.mxu0 0
      %497 = vmatprep.subr.bf16.mxu0 0
      %498 = vmatpush1.bf16.xpose.msra.mxu0 0
      %499 = vmatprep.subr.bf16.mxu0 0
      %500 = vmatpush1.bf16.xpose.msra.mxu0 0
      %501 = vmatprep.subr.bf16.mxu0 0
      %502 = vmatpush1.bf16.xpose.msra.mxu0 0
      %503 = vmatprep.subr.bf16.mxu0 0
      %504 = vmatpush1.bf16.xpose.msra.mxu0 0
      %505 = vmatprep.subr.bf16.mxu0 0
      %506 = vmatpush1.bf16.xpose.msra.mxu0 0
      %507 = vmatprep.subr.bf16.mxu0 0
      %508 = vmatpush1.bf16.xpose.msra.mxu0 0
      %509 = vmatprep.subr.bf16.mxu0 0
      %510 = vmatpush1.bf16.xpose.msra.mxu0 0
      %511 = vmatprep.subr.bf16.mxu0 0
      %512 = vmatpush1.bf16.xpose.msra.mxu0 0
      %513 = vmatprep.subr.bf16.mxu0 0
      %514 = vmatpush1.bf16.xpose.msra.mxu0 0
      %515 = vmatprep.subr.bf16.mxu0 0
      %516 = vmatpush1.bf16.xpose.msra.mxu0 0
      %517 = vmatprep.subr.bf16.mxu0 0
      %518 = vmatpush1.bf16.xpose.msra.mxu0 0
      %519 = vmatprep.subr.bf16.mxu0 0
      %520 = vmatpush1.bf16.xpose.msra.mxu0 0
      %521 = vmatprep.subr.bf16.mxu0 0
      %522 = vmatpush1.bf16.xpose.msra.mxu0 0
      %523 = vmatprep.mubr.bf16.mxu0 0
      %524 = vmatmul.mubr.bf16.gmra.mrb[0].mxu0 %v480
      %v525 = vpop.f32.mrb[0].mxu0
      %v526 = vadd.f32 0.0, %v525
      %v527 = vpop.f32.mrb[0].mxu0
      %v528 = vpop.f32.mrb[0].mxu0
      %v529 = vadd.f32 0.0, %v528
      %v530 = vpop.f32.mrb[0].mxu0
      %531 = vmatprep.mubr.bf16.mxu0 0
      %532 = vmatmul.mubr.bf16.gmra.mrb[0].mxu0 %v483
      %v533 = vpop.f32.mrb[0].mxu0
      %v534 = vadd.f32 0.0, %v533
      %v535 = vpop.f32.mrb[0].mxu0
      %v536 = vpop.f32.mrb[0].mxu0
      %v537 = vadd.f32 0.0, %v536
      %v538 = vpop.f32.mrb[0].mxu0
      %539 = vdwg.mxu0
      %v540 = vmul.f32 %v526, 0.25
      %v541 = vmul.f32 %v529, 0.25
      %v542 = vmul.f32 %v534, 0.25
      %v543 = vmul.f32 %v537, 0.25
      %v544 = vadd.f32 %v540, %v266
      %v545 = vadd.f32 %v541, %v266
      %v546 = vadd.f32 %v542, %v266
      %v547 = vadd.f32 %v543, %v266
      %v548 = vsel %vm357, %v544, -inf
      %549 = vmax.xlane.f32.xlu0 %v548
      %v550 = vpop.xlane.xlu0 %549
      %v551 = vsel %vm357, %v545, -inf
      %552 = vmax.xlane.f32.xlu0 %v551
      %v553 = vpop.xlane.xlu0 %552
      %v554 = vsel %vm357, %v546, -inf
      %555 = vmax.xlane.f32.xlu0 %v554
      %v556 = vpop.xlane.xlu0 %555
      %v557 = vsel %vm357, %v547, -inf
      %558 = vmax.xlane.f32.xlu0 %v557
      %v559 = vpop.xlane.xlu0 %558
      %v560 = vsub.f32 %v544, %v550
      %v561 = vsub.f32 %v545, %v553
      %v562 = vsub.f32 %v546, %v556
      %v563 = vsub.f32 %v547, %v559
      %v564 = vmul.f32 %v560, 1.442695
      %v565 = vpow.pop %v564
      %v566 = vmul.f32 %v561, 1.442695
      %v567 = vpow.pop %v566
      %v568 = vmul.f32 %v562, 1.442695
      %v569 = vpow.pop %v568
      %v570 = vmul.f32 %v563, 1.442695
      %v571 = vpow.pop %v570
      %v572 = vsel %vm357, %v565, 0.0
      %573 = vadd.xlane.f32.xlu0 %v572
      %v574 = vpop.xlane.xlu0 %573
      %v575 = vsel %vm357, %v567, 0.0
      %576 = vadd.xlane.f32.xlu0 %v575
      %v577 = vpop.xlane.xlu0 %576
      %v578 = vsel %vm357, %v569, 0.0
      %579 = vadd.xlane.f32.xlu0 %v578
      %v580 = vpop.xlane.xlu0 %579
      %v581 = vsel %vm357, %v571, 0.0
      %582 = vadd.xlane.f32.xlu0 %v581
      %v583 = vpop.xlane.xlu0 %582
      %v584 = vrcp.pop %v574
      %v585 = vrcp.pop %v577
      %v586 = vrcp.pop %v580
      %v587 = vrcp.pop %v583
      %v588 = vmul.f32 %v565, %v584
      %v589 = vmul.f32 %v567, %v585
      %v590 = vmul.f32 %v569, %v586
      %v591 = vmul.f32 %v571, %v587
      %v592 = vpack.c.bf16 %v589, %v588
      %v593 = vpack.c.bf16 %v591, %v590
      %594 = vrot.lane.b32.xlu0 %v412, 112
      %v595 = vpop.permute.xlu0 %594
      %596 = vrot.lane.b32.xlu0 %v413, 112
      %v597 = vpop.permute.xlu0 %596
      %v601 = vsel %vm357, %v592, 0
      %v604 = vsel %vm357, %v593, 0
      %606 = vmatprep.subr.bf16.mxu0 0
      %607 = vmatpush1.bf16.msra.mxu0 %v595
      %608 = vmatprep.subr.bf16.mxu0 0
      %609 = vmatpush1.bf16.msra.mxu0 %v597
      %610 = vmatprep.subr.bf16.mxu0 0
      %611 = vmatpush1.bf16.msra.mxu0 0
      %612 = vmatprep.subr.bf16.mxu0 0
      %613 = vmatpush1.bf16.msra.mxu0 0
      %614 = vmatprep.subr.bf16.mxu0 0
      %615 = vmatpush1.bf16.msra.mxu0 0
      %616 = vmatprep.subr.bf16.mxu0 0
      %617 = vmatpush1.bf16.msra.mxu0 0
      %618 = vmatprep.subr.bf16.mxu0 0
      %619 = vmatpush1.bf16.msra.mxu0 0
      %620 = vmatprep.subr.bf16.mxu0 0
      %621 = vmatpush1.bf16.msra.mxu0 0
      %622 = vmatprep.subr.bf16.mxu0 0
      %623 = vmatpush1.bf16.msra.mxu0 0
      %624 = vmatprep.subr.bf16.mxu0 0
      %625 = vmatpush1.bf16.msra.mxu0 0
      %626 = vmatprep.subr.bf16.mxu0 0
      %627 = vmatpush1.bf16.msra.mxu0 0
      %628 = vmatprep.subr.bf16.mxu0 0
      %629 = vmatpush1.bf16.msra.mxu0 0
      %630 = vmatprep.subr.bf16.mxu0 0
      %631 = vmatpush1.bf16.msra.mxu0 0
      %632 = vmatprep.subr.bf16.mxu0 0
      %633 = vmatpush1.bf16.msra.mxu0 0
      %634 = vmatprep.subr.bf16.mxu0 0
      %635 = vmatpush1.bf16.msra.mxu0 0
      %636 = vmatprep.subr.bf16.mxu0 0
      %637 = vmatpush1.bf16.msra.mxu0 0
      %638 = vmatprep.mubr.bf16.mxu0 0
      %639 = vmatmul.mubr.bf16.gmra.mrb[0].mxu0 %v601
      %v640 = vpop.f32.mrb[0].mxu0
      %v641 = vadd.f32 0.0, %v640
      %v642 = vpop.f32.mrb[0].mxu0
      %v643 = vpop.f32.mrb[0].mxu0
      %v644 = vadd.f32 0.0, %v643
      %v645 = vpop.f32.mrb[0].mxu0
      %646 = vmatprep.mubr.bf16.mxu0 0
      %647 = vmatmul.mubr.bf16.gmra.mrb[0].mxu0 %v604
      %v648 = vpop.f32.mrb[0].mxu0
      %v649 = vadd.f32 0.0, %v648
      %v650 = vpop.f32.mrb[0].mxu0
      %v651 = vpop.f32.mrb[0].mxu0
      %v652 = vadd.f32 0.0, %v651
      %v653 = vpop.f32.mrb[0].mxu0
      %654 = vdwg.mxu0
      %659 = vrot.lane.b32.xlu0 %v641, 16
      %v660 = vpop.permute.xlu0 %659
      %661 = vrot.lane.b32.xlu0 %v644, 16
      %v662 = vpop.permute.xlu0 %661
      %663 = vrot.lane.b32.xlu0 %v649, 16
      %v664 = vpop.permute.xlu0 %663
      %665 = vrot.lane.b32.xlu0 %v652, 16
      %v666 = vpop.permute.xlu0 %665
      %v671 = vsel %vm287, %v457, %v660
      %v672 = vsel %vm287, %v460, %v662
      %v673 = vsel %vm287, %v465, %v664
      %v674 = vsel %vm287, %v468, %v666
      %v675 = vpack.c.bf16 %v672, %v671
      %v676 = vpack.c.bf16 %v674, %v673
      %v679 = vunpack.c.l.b16 %v675
      %v680 = vunpack.c.h.b16 %v675
      %v681 = vunpack.c.l.b16 %v676
      %v682 = vunpack.c.h.b16 %v676
      %v683 = vpack.c.b16 %v679, %v679
      %v684 = vpack.c.b16 %v680, %v680
      %v685 = vpack.c.b16 %v681, %v681
      %v686 = vpack.c.b16 %v682, %v682
      %vm691 = vcmask 257024
      %692 = vst.msk [vmem:[%s248] sm:$0xf] %vm691, %v683
      %693 = vst.msk [vmem:[%s248 + $0x4] sm:$0xf] %vm691, %v684
      %694 = vst.msk [vmem:[%s248 + $0x8] sm:$0xf] %vm691, %v685
      %695 = vst.msk [vmem:[%s248 + $0xc] sm:$0xf] %vm691, %v686
      %s696 = smul.u32 4, %s19
      %p697 = scmp.lt.s32.totalorder %s18, 1
      %s698 = scalar_select %p697, %s18, 1
      %p699 = scmp.lt.s32.totalorder %s696, 3
      %s700 = scalar_select %p699, %s696, 3
      %s701 = smul.addr %s698, 4
      %s702 = sadd.s32 %s700, %s701
      %s703 = smul.addr %s702, 4
      %s704 = scalar_lea.vmem %s3, %s703
      // Predicated region
      $region33: #{img_vision_transformer_forward.22} parent=31 // pred_check
        %p705 = pneg %p126
      $region34: #{img_vision_transformer_forward.22} parent=31 // pred_check_branch
        %707 = sbr.rel (%p705) target = $region36
      $region35: #{img_vision_transformer_forward.22} parent=31 // pred_region
        %s708 = smul.u32 4, %s19
      $region36: #{img_vision_transformer_forward.22} parent=31 // pred_fallthru
        _
    $region32: #{img_vision_transformer_forward.22} parent=5 // pred_fallthru
      _
    %p709 = scmp.le.s32.totalorder 2, %s9
    // Predicated region
    $region37: #{img_vision_transformer_forward.22} parent=5 // pred_check
      %p710 = pneg %p709
    $region38: #{img_vision_transformer_forward.22} parent=5 // pred_check_branch
      %712 = sbr.rel (%p710) target = $region40
    $region39: #{img_vision_transformer_forward.22} parent=5 // pred_region
      %s713 = ssub.s32 %s9, 2
      // Predicated region
      $region41: #{img_vision_transformer_forward.22} parent=39 // pred_check
        %p714 = pneg %p132
      $region42: #{img_vision_transformer_forward.22} parent=39 // pred_check_branch
        %716 = sbr.rel (%p714) target = $region44
      $region43: #{img_vision_transformer_forward.22} parent=39 // pred_region
        %s717 = smul.u32 4, %s21
        %p718 = scmp.lt.s32.totalorder %s20, 1
        %s719 = scalar_select %p718, %s20, 1
        %p720 = scmp.lt.s32.totalorder %s717, 3
        %s721 = scalar_select %p720, %s717, 3
        %s722 = smul.addr %s719, 4
        %s723 = sadd.s32 %s721, %s722
        %s724 = smul.addr %s723, 4
        %s725 = scalar_lea.vmem %s3, %s724
      $region44: #{img_vision_transformer_forward.22} parent=39 // pred_fallthru
        _
    $region40: #{img_vision_transformer_forward.22} parent=5 // pred_fallthru
      _
  $region6: #{img_vision_transformer_forward.22} parent=0 // loop_footer
    %s13 = sadd.s32 1, %s9
  $region7: #{img_vision_transformer_forward.22} parent=0 // loop_footer_branch
    %8 = sbr.rel target = $region3
  $region8: #{img_vision_transformer_forward.22} parent=0 // loop_exit
    _

// kernel: img_vision_transformer_forward.25
$region0: #{img_vision_transformer_forward.25}
  #allocation0 [shape = 'u32[]', space=smem, size = 0x4, offset = 0x4, fixed_abs, tag = 'smem constant byte address 0x4 - core index']
  #allocation1 [shape = 'u32[144,128]{1,0:T(1,128)}', space=vmem, size = 0x12000, scoped, tag = 'internal scratch']
  #allocation2 [shape = 'f32[64,128]{1,0:T(8,128)}', space=vmem, size = 0x8000, scoped, tag = 'scratch operand']
  %s0 = inlined_call_operand.vmem [shape: bf16[64,32], index: 0, kind: input, shape index: {}]
  %s1 = inlined_call_operand.vmem [shape: bf16[32,128], index: 1, kind: input, shape index: {}]
  %s2 = inlined_call_operand.vmem [shape: f32[1,128], index: 2, kind: input, shape index: {}]
  %s3 = inlined_call_operand.vmem [shape: bf16[64,128], index: 3, kind: output, shape index: {}]
  %s4 = sld [smem:[#allocation0]]
  $region30: #{img_vision_transformer_forward.25} parent=0
    _
  %s6 = ssub.s32 1, %s4
  %s7 = scalar_select 0, %s6, %s4
  // Predicated region
  $region2: #{img_vision_transformer_forward.25} parent=0 // pred_check
    _
  $region3: #{img_vision_transformer_forward.25} parent=0 // pred_check_branch
    %9 = sbr.rel (0) target = $region5
  $region4: #{img_vision_transformer_forward.25} parent=0 // pred_region
    _
  $region5: #{img_vision_transformer_forward.25} parent=0 // pred_fallthru
    _
  // Predicated region
  $region6: #{img_vision_transformer_forward.25} parent=0 // pred_check
    _
  $region7: #{img_vision_transformer_forward.25} parent=0 // pred_check_branch
    %11 = sbr.rel (0) target = $region9
  $region8: #{img_vision_transformer_forward.25} parent=0 // pred_region
    _
  $region9: #{img_vision_transformer_forward.25} parent=0 // pred_fallthru
    _
  // Predicated region
  $region10: #{img_vision_transformer_forward.25} parent=0 // pred_check
    _
  $region11: #{img_vision_transformer_forward.25} parent=0 // pred_check_branch
    %13 = sbr.rel (0) target = $region13
  $region12: #{img_vision_transformer_forward.25} parent=0 // pred_region
    _
  $region13: #{img_vision_transformer_forward.25} parent=0 // pred_fallthru
    _
  %p15 = scmp.eq.s32.totalorder 0, 0
  // Predicated region
  $region14: #{img_vision_transformer_forward.25} parent=0 // pred_check
    %p16 = pneg %p15
  $region15: #{img_vision_transformer_forward.25} parent=0 // pred_check_branch
    %18 = sbr.rel (%p16) target = $region17
  $region16: #{img_vision_transformer_forward.25} parent=0 // pred_region
    %19 = vst [vmem:[#allocation2] sm:$0xff] 0.0
    %20 = vst [vmem:[#allocation2 + $0x8] sm:$0xff] 0.0
    %21 = vst [vmem:[#allocation2 + $0x10] sm:$0xff] 0.0
    %22 = vst [vmem:[#allocation2 + $0x18] sm:$0xff] 0.0
    %23 = vst [vmem:[#allocation2 + $0x20] sm:$0xff] 0.0
    %24 = vst [vmem:[#allocation2 + $0x28] sm:$0xff] 0.0
    %25 = vst [vmem:[#allocation2 + $0x30] sm:$0xff] 0.0
    %26 = vst [vmem:[#allocation2 + $0x38] sm:$0xff] 0.0
  $region17: #{img_vision_transformer_forward.25} parent=0 // pred_fallthru
    _
  %v27 = vld [vmem:[#allocation2] sm:$0xff]
  %v28 = vld [vmem:[#allocation2 + $0x8] sm:$0xff]
  %v29 = vld [vmem:[#allocation2 + $0x10] sm:$0xff]
  %v30 = vld [vmem:[#allocation2 + $0x18] sm:$0xff]
  %v31 = vld [vmem:[#allocation2 + $0x20] sm:$0xff]
  %v32 = vld [vmem:[#allocation2 + $0x28] sm:$0xff]
  %v33 = vld [vmem:[#allocation2 + $0x30] sm:$0xff]
  %v34 = vld [vmem:[#allocation2 + $0x38] sm:$0xff]
  %v35 = vld [vmem:[%s0] sm:$0xf]
  %v36 = vld [vmem:[%s0 + $0x4] sm:$0xf]
  %v37 = vld [vmem:[%s0 + $0x8] sm:$0xf]
  %v38 = vld [vmem:[%s0 + $0xc] sm:$0xf]
  %v39 = vld [vmem:[%s0 + $0x10] sm:$0xf]
  %v40 = vld [vmem:[%s0 + $0x14] sm:$0xf]
  %v41 = vld [vmem:[%s0 + $0x18] sm:$0xf]
  %v42 = vld [vmem:[%s0 + $0x1c] sm:$0xf]
  %v43 = vld [vmem:[%s1] sm:$0xf]
  %v44 = vld [vmem:[%s1 + $0x4] sm:$0xf]
  %v45 = vld [vmem:[%s1 + $0x8] sm:$0xf]
  %v46 = vld [vmem:[%s1 + $0xc] sm:$0xf]
  %v55 = vunpack.c.l.b16 %v35
  %v56 = vunpack.c.l.b16 %v36
  %v57 = vunpack.c.l.b16 %v37
  %v58 = vunpack.c.l.b16 %v38
  %v59 = vunpack.c.l.b16 %v39
  %v60 = vunpack.c.l.b16 %v40
  %v61 = vunpack.c.l.b16 %v41
  %v62 = vunpack.c.l.b16 %v42
  %v63 = vpack.c.b16 %v56, %v55
  %v64 = vpack.c.b16 %v58, %v57
  %v65 = vpack.c.b16 %v60, %v59
  %v66 = vpack.c.b16 %v62, %v61
  %v71 = vunpack.c.l.b16 %v43
  %v72 = vunpack.c.l.b16 %v44
  %v73 = vunpack.c.l.b16 %v45
  %v74 = vunpack.c.l.b16 %v46
  %v75 = vpack.c.b16 %v72, %v71
  %v76 = vpack.c.b16 %v74, %v73
  %vm79 = vcmask 261120
  %v81 = vsel %vm79, %v63, 0
  %v84 = vsel %vm79, %v64, 0
  %v87 = vsel %vm79, %v65, 0
  %v90 = vsel %vm79, %v66, 0
  %92 = vmatprep.subr.bf16.mxu0 0
  %93 = vmatpush1.bf16.msra.mxu0 %v75
  %94 = vmatprep.subr.bf16.mxu0 0
  %95 = vmatpush1.bf16.msra.mxu0 %v76
  %96 = vmatprep.subr.bf16.mxu0 0
  %97 = vmatpush1.bf16.msra.mxu0 0
  %98 = vmatprep.subr.bf16.mxu0 0
  %99 = vmatpush1.bf16.msra.mxu0 0
  %100 = vmatprep.subr.bf16.mxu0 0
  %101 = vmatpush1.bf16.msra.mxu0 0
  %102 = vmatprep.subr.bf16.mxu0 0
  %103 = vmatpush1.bf16.msra.mxu0 0
  %104 = vmatprep.subr.bf16.mxu0 0
  %105 = vmatpush1.bf16.msra.mxu0 0
  %106 = vmatprep.subr.bf16.mxu0 0
  %107 = vmatpush1.bf16.msra.mxu0 0
  %108 = vmatprep.subr.bf16.mxu0 0
  %109 = vmatpush1.bf16.msra.mxu0 0
  %110 = vmatprep.subr.bf16.mxu0 0
  %111 = vmatpush1.bf16.msra.mxu0 0
  %112 = vmatprep.subr.bf16.mxu0 0
  %113 = vmatpush1.bf16.msra.mxu0 0
  %114 = vmatprep.subr.bf16.mxu0 0
  %115 = vmatpush1.bf16.msra.mxu0 0
  %116 = vmatprep.subr.bf16.mxu0 0
  %117 = vmatpush1.bf16.msra.mxu0 0
  %118 = vmatprep.subr.bf16.mxu0 0
  %119 = vmatpush1.bf16.msra.mxu0 0
  %120 = vmatprep.subr.bf16.mxu0 0
  %121 = vmatpush1.bf16.msra.mxu0 0
  %122 = vmatprep.subr.bf16.mxu0 0
  %123 = vmatpush1.bf16.msra.mxu0 0
  %124 = vmatprep.mubr.bf16.mxu0 0
  %125 = vmatmul.mubr.bf16.gmra.mrb[0].mxu0 %v81
  %v126 = vpop.f32.mrb[0].mxu0
  %v127 = vadd.f32 0.0, %v126
  %v128 = vpop.f32.mrb[0].mxu0
  %v129 = vpop.f32.mrb[0].mxu0
  %v130 = vadd.f32 0.0, %v129
  %v131 = vpop.f32.mrb[0].mxu0
  %132 = vmatprep.mubr.bf16.mxu0 0
  %133 = vmatmul.mubr.bf16.gmra.mrb[0].mxu0 %v84
  %v134 = vpop.f32.mrb[0].mxu0
  %v135 = vadd.f32 0.0, %v134
  %v136 = vpop.f32.mrb[0].mxu0
  %v137 = vpop.f32.mrb[0].mxu0
  %v138 = vadd.f32 0.0, %v137
  %v139 = vpop.f32.mrb[0].mxu0
  %140 = vmatprep.mubr.bf16.mxu0 0
  %141 = vmatmul.mubr.bf16.gmra.mrb[0].mxu0 %v87
  %v142 = vpop.f32.mrb[0].mxu0
  %v143 = vadd.f32 0.0, %v142
  %v144 = vpop.f32.mrb[0].mxu0
  %v145 = vpop.f32.mrb[0].mxu0
  %v146 = vadd.f32 0.0, %v145
  %v147 = vpop.f32.mrb[0].mxu0
  %148 = vmatprep.mubr.bf16.mxu0 0
  %149 = vmatmul.mubr.bf16.gmra.mrb[0].mxu0 %v90
  %v150 = vpop.f32.mrb[0].mxu0
  %v151 = vadd.f32 0.0, %v150
  %v152 = vpop.f32.mrb[0].mxu0
  %v153 = vpop.f32.mrb[0].mxu0
  %v154 = vadd.f32 0.0, %v153
  %v155 = vpop.f32.mrb[0].mxu0
  %156 = vdwg.mxu0
  %v157 = vadd.f32 %v27, %v127
  %v158 = vadd.f32 %v28, %v130
  %v159 = vadd.f32 %v29, %v135
  %v160 = vadd.f32 %v30, %v138
  %v161 = vadd.f32 %v31, %v143
  %v162 = vadd.f32 %v32, %v146
  %v163 = vadd.f32 %v33, %v151
  %v164 = vadd.f32 %v34, %v154
  %165 = vst [vmem:[#allocation2] sm:$0xff] %v157
  %166 = vst [vmem:[#allocation2 + $0x8] sm:$0xff] %v158
  %167 = vst [vmem:[#allocation2 + $0x10] sm:$0xff] %v159
  %168 = vst [vmem:[#allocation2 + $0x18] sm:$0xff] %v160
  %169 = vst [vmem:[#allocation2 + $0x20] sm:$0xff] %v161
  %170 = vst [vmem:[#allocation2 + $0x28] sm:$0xff] %v162
  %171 = vst [vmem:[#allocation2 + $0x30] sm:$0xff] %v163
  %172 = vst [vmem:[#allocation2 + $0x38] sm:$0xff] %v164
  // Predicated region
  $region18: #{img_vision_transformer_forward.25} parent=0 // pred_check
    %p173 = pneg %p15
  $region19: #{img_vision_transformer_forward.25} parent=0 // pred_check_branch
    %175 = sbr.rel (%p173) target = $region21
  $region20: #{img_vision_transformer_forward.25} parent=0 // pred_region
    %v176 = vld [vmem:[#allocation2] sm:$0xff]
    %v177 = vld [vmem:[#allocation2 + $0x8] sm:$0xff]
    %v178 = vld [vmem:[#allocation2 + $0x10] sm:$0xff]
    %v179 = vld [vmem:[#allocation2 + $0x18] sm:$0xff]
    %v180 = vld [vmem:[#allocation2 + $0x20] sm:$0xff]
    %v181 = vld [vmem:[#allocation2 + $0x28] sm:$0xff]
    %v182 = vld [vmem:[#allocation2 + $0x30] sm:$0xff]
    %v183 = vld [vmem:[#allocation2 + $0x38] sm:$0xff]
    %v184 = vld [vmem:[%s2] sm:$0x1]
    %v186 = vlaneseq
    %v187 = vshrl.u32 %v186, 7
    %v188 = vsub.s32 0, %v187
    %v189 = vrot.slane %v184, %v188
    %v191 = vadd.f32 %v176, %v189
    %v192 = vadd.f32 %v177, %v189
    %v193 = vadd.f32 %v178, %v189
    %v194 = vadd.f32 %v179, %v189
    %v195 = vadd.f32 %v180, %v189
    %v196 = vadd.f32 %v181, %v189
    %v197 = vadd.f32 %v182, %v189
    %v198 = vadd.f32 %v183, %v189
    %v199 = vmul.f32 %v191, 1.702
    %v200 = vmul.f32 %v192, 1.702
    %v201 = vmul.f32 %v193, 1.702
    %v202 = vmul.f32 %v194, 1.702
    %v203 = vmul.f32 %v195, 1.702
    %v204 = vmul.f32 %v196, 1.702
    %v205 = vmul.f32 %v197, 1.702
    %v206 = vmul.f32 %v198, 1.702
    %v207 = vxor.u32 %v199, 2147483648
    %v208 = vxor.u32 %v200, 2147483648
    %v209 = vxor.u32 %v201, 2147483648
    %v210 = vxor.u32 %v202, 2147483648
    %v211 = vxor.u32 %v203, 2147483648
    %v212 = vxor.u32 %v204, 2147483648
    %v213 = vxor.u32 %v205, 2147483648
    %v214 = vxor.u32 %v206, 2147483648
    %v215 = vmul.f32 %v207, 1.442695
    %v216 = vpow.pop %v215
    %v217 = vmul.f32 %v208, 1.442695
    %v218 = vpow.pop %v217
    %v219 = vmul.f32 %v209, 1.442695
    %v220 = vpow.pop %v219
    %v221 = vmul.f32 %v210, 1.442695
    %v222 = vpow.pop %v221
    %v223 = vmul.f32 %v211, 1.442695
    %v224 = vpow.pop %v223
    %v225 = vmul.f32 %v212, 1.442695
    %v226 = vpow.pop %v225
    %v227 = vmul.f32 %v213, 1.442695
    %v228 = vpow.pop %v227
    %v229 = vmul.f32 %v214, 1.442695
    %v230 = vpow.pop %v229
    %v231 = vadd.f32 %v216, 1.0
    %v232 = vadd.f32 %v218, 1.0
    %v233 = vadd.f32 %v220, 1.0
    %v234 = vadd.f32 %v222, 1.0
    %v235 = vadd.f32 %v224, 1.0
    %v236 = vadd.f32 %v226, 1.0
    %v237 = vadd.f32 %v228, 1.0
    %v238 = vadd.f32 %v230, 1.0
    %v239 = vrcp.pop %v231
    %v240 = vmul.f32 1.0, %v239
    %v241 = vrcp.pop %v232
    %v242 = vmul.f32 1.0, %v241
    %v243 = vrcp.pop %v233
    %v244 = vmul.f32 1.0, %v243
    %v245 = vrcp.pop %v234
    %v246 = vmul.f32 1.0, %v245
    %v247 = vrcp.pop %v235
    %v248 = vmul.f32 1.0, %v247
    %v249 = vrcp.pop %v236
    %v250 = vmul.f32 1.0, %v249
    %v251 = vrcp.pop %v237
    %v252 = vmul.f32 1.0, %v251
    %v253 = vrcp.pop %v238
    %v254 = vmul.f32 1.0, %v253
    %v255 = vmul.f32 %v191, %v240
    %v256 = vmul.f32 %v192, %v242
    %v257 = vmul.f32 %v193, %v244
    %v258 = vmul.f32 %v194, %v246
    %v259 = vmul.f32 %v195, %v248
    %v260 = vmul.f32 %v196, %v250
    %v261 = vmul.f32 %v197, %v252
    %v262 = vmul.f32 %v198, %v254
    %v263 = vpack.c.bf16 %v256, %v255
    %v264 = vpack.c.bf16 %v258, %v257
    %v265 = vpack.c.bf16 %v260, %v259
    %v266 = vpack.c.bf16 %v262, %v261
    %v271 = vunpack.c.l.b16 %v263
    %v272 = vunpack.c.h.b16 %v263
    %v273 = vunpack.c.l.b16 %v264
    %v274 = vunpack.c.h.b16 %v264
    %v275 = vunpack.c.l.b16 %v265
    %v276 = vunpack.c.h.b16 %v265
    %v277 = vunpack.c.l.b16 %v266
    %v278 = vunpack.c.h.b16 %v266
    %v279 = vpack.c.b16 %v271, %v271
    %v280 = vpack.c.b16 %v272, %v272
    %v281 = vpack.c.b16 %v273, %v273
    %v282 = vpack.c.b16 %v274, %v274
    %v283 = vpack.c.b16 %v275, %v275
    %v284 = vpack.c.b16 %v276, %v276
    %v285 = vpack.c.b16 %v277, %v277
    %v286 = vpack.c.b16 %v278, %v278
    %295 = vst [vmem:[%s3] sm:$0xf] %v279
    %296 = vst [vmem:[%s3 + $0x4] sm:$0xf] %v280
    %297 = vst [vmem:[%s3 + $0x8] sm:$0xf] %v281
    %298 = vst [vmem:[%s3 + $0xc] sm:$0xf] %v282
    %299 = vst [vmem:[%s3 + $0x10] sm:$0xf] %v283
    %300 = vst [vmem:[%s3 + $0x14] sm:$0xf] %v284
    %301 = vst [vmem:[%s3 + $0x18] sm:$0xf] %v285
    %302 = vst [vmem:[%s3 + $0x1c] sm:$0xf] %v286
  $region21: #{img_vision_transformer_forward.25} parent=0 // pred_fallthru
    _
  // Predicated region
  $region22: #{img_vision_transformer_forward.25} parent=0 // pred_check
    _
  $region23: #{img_vision_transformer_forward.25} parent=0 // pred_check_branch
    %304 = sbr.rel (0) target = $region25
  $region24: #{img_vision_transformer_forward.25} parent=0 // pred_region
    _
  $region25: #{img_vision_transformer_forward.25} parent=0 // pred_fallthru
    _
  // Predicated region
  $region26: #{img_vision_transformer_forward.25} parent=0 // pred_check
    _
  $region27: #{img_vision_transformer_forward.25} parent=0 // pred_check_branch
    %306 = sbr.rel (0) target = $region29
  $region28: #{img_vision_transformer_forward.25} parent=0 // pred_region
    _
  $region29: #{img_vision_transformer_forward.25} parent=0 // pred_fallthru
    _

// kernel: img_vision_transformer_forward.26
$region0: #{img_vision_transformer_forward.26}
  #allocation0 [shape = 'u32[]', space=smem, size = 0x4, offset = 0x4, fixed_abs, tag = 'smem constant byte address 0x4 - core index']
  #allocation1 [shape = 'u32[144,128]{1,0:T(1,128)}', space=vmem, size = 0x12000, scoped, tag = 'internal scratch']
  #allocation2 [shape = 'f32[64,32]{1,0:T(8,128)}', space=vmem, size = 0x8000, scoped, tag = 'scratch operand']
  %s0 = inlined_call_operand.vmem [shape: bf16[64,128], index: 0, kind: input, shape index: {}]
  %s1 = inlined_call_operand.vmem [shape: bf16[128,32], index: 1, kind: input, shape index: {}]
  %s2 = inlined_call_operand.vmem [shape: f32[1,32], index: 2, kind: input, shape index: {}]
  %s3 = inlined_call_operand.vmem [shape: bf16[64,32], index: 3, kind: input, shape index: {}]
  %s4 = inlined_call_operand.vmem [shape: bf16[64,32], index: 4, kind: output, shape index: {}]
  %s5 = sld [smem:[#allocation0]]
  $region34: #{img_vision_transformer_forward.26} parent=0
    _
  %s7 = ssub.s32 1, %s5
  %s8 = scalar_select 0, %s7, %s5
  // Predicated region
  $region2: #{img_vision_transformer_forward.26} parent=0 // pred_check
    _
  $region3: #{img_vision_transformer_forward.26} parent=0 // pred_check_branch
    %10 = sbr.rel (0) target = $region5
  $region4: #{img_vision_transformer_forward.26} parent=0 // pred_region
    _
  $region5: #{img_vision_transformer_forward.26} parent=0 // pred_fallthru
    _
  // Predicated region
  $region6: #{img_vision_transformer_forward.26} parent=0 // pred_check
    _
  $region7: #{img_vision_transformer_forward.26} parent=0 // pred_check_branch
    %12 = sbr.rel (0) target = $region9
  $region8: #{img_vision_transformer_forward.26} parent=0 // pred_region
    _
  $region9: #{img_vision_transformer_forward.26} parent=0 // pred_fallthru
    _
  // Predicated region
  $region10: #{img_vision_transformer_forward.26} parent=0 // pred_check
    _
  $region11: #{img_vision_transformer_forward.26} parent=0 // pred_check_branch
    %14 = sbr.rel (0) target = $region13
  $region12: #{img_vision_transformer_forward.26} parent=0 // pred_region
    _
  $region13: #{img_vision_transformer_forward.26} parent=0 // pred_fallthru
    _
  // Predicated region
  $region14: #{img_vision_transformer_forward.26} parent=0 // pred_check
    _
  $region15: #{img_vision_transformer_forward.26} parent=0 // pred_check_branch
    %16 = sbr.rel (0) target = $region17
  $region16: #{img_vision_transformer_forward.26} parent=0 // pred_region
    _
  $region17: #{img_vision_transformer_forward.26} parent=0 // pred_fallthru
    _
  %p18 = scmp.eq.s32.totalorder 0, 0
  // Predicated region
  $region18: #{img_vision_transformer_forward.26} parent=0 // pred_check
    %p19 = pneg %p18
  $region19: #{img_vision_transformer_forward.26} parent=0 // pred_check_branch
    %21 = sbr.rel (%p19) target = $region21
  $region20: #{img_vision_transformer_forward.26} parent=0 // pred_region
    %vm22 = vcmask 261120
    %23 = vst.msk [vmem:[#allocation2] sm:$0xff] %vm22, 0.0
    %24 = vst.msk [vmem:[#allocation2 + $0x8] sm:$0xff] %vm22, 0.0
    %25 = vst.msk [vmem:[#allocation2 + $0x10] sm:$0xff] %vm22, 0.0
    %26 = vst.msk [vmem:[#allocation2 + $0x18] sm:$0xff] %vm22, 0.0
    %27 = vst.msk [vmem:[#allocation2 + $0x20] sm:$0xff] %vm22, 0.0
    %28 = vst.msk [vmem:[#allocation2 + $0x28] sm:$0xff] %vm22, 0.0
    %29 = vst.msk [vmem:[#allocation2 + $0x30] sm:$0xff] %vm22, 0.0
    %30 = vst.msk [vmem:[#allocation2 + $0x38] sm:$0xff] %vm22, 0.0
  $region21: #{img_vision_transformer_forward.26} parent=0 // pred_fallthru
    _
  %v31 = vld [vmem:[#allocation2] sm:$0xff]
  %v32 = vld [vmem:[#allocation2 + $0x8] sm:$0xff]
  %v33 = vld [vmem:[#allocation2 + $0x10] sm:$0xff]
  %v34 = vld [vmem:[#allocation2 + $0x18] sm:$0xff]
  %v35 = vld [vmem:[#allocation2 + $0x20] sm:$0xff]
  %v36 = vld [vmem:[#allocation2 + $0x28] sm:$0xff]
  %v37 = vld [vmem:[#allocation2 + $0x30] sm:$0xff]
  %v38 = vld [vmem:[#allocation2 + $0x38] sm:$0xff]
  %v39 = vld [vmem:[%s0] sm:$0xf]
  %v40 = vld [vmem:[%s0 + $0x4] sm:$0xf]
  %v41 = vld [vmem:[%s0 + $0x8] sm:$0xf]
  %v42 = vld [vmem:[%s0 + $0xc] sm:$0xf]
  %v43 = vld [vmem:[%s0 + $0x10] sm:$0xf]
  %v44 = vld [vmem:[%s0 + $0x14] sm:$0xf]
  %v45 = vld [vmem:[%s0 + $0x18] sm:$0xf]
  %v46 = vld [vmem:[%s0 + $0x1c] sm:$0xf]
  %v47 = vld [vmem:[%s1] sm:$0xf]
  %v48 = vld [vmem:[%s1 + $0x4] sm:$0xf]
  %v49 = vld [vmem:[%s1 + $0x8] sm:$0xf]
  %v50 = vld [vmem:[%s1 + $0xc] sm:$0xf]
  %v51 = vld [vmem:[%s1 + $0x10] sm:$0xf]
  %v52 = vld [vmem:[%s1 + $0x14] sm:$0xf]
  %v53 = vld [vmem:[%s1 + $0x18] sm:$0xf]
  %v54 = vld [vmem:[%s1 + $0x1c] sm:$0xf]
  %v55 = vld [vmem:[%s1 + $0x20] sm:$0xf]
  %v56 = vld [vmem:[%s1 + $0x24] sm:$0xf]
  %v57 = vld [vmem:[%s1 + $0x28] sm:$0xf]
  %v58 = vld [vmem:[%s1 + $0x2c] sm:$0xf]
  %v59 = vld [vmem:[%s1 + $0x30] sm:$0xf]
  %v60 = vld [vmem:[%s1 + $0x34] sm:$0xf]
  %v61 = vld [vmem:[%s1 + $0x38] sm:$0xf]
  %v62 = vld [vmem:[%s1 + $0x3c] sm:$0xf]
  %v71 = vunpack.c.l.b16 %v39
  %v72 = vunpack.c.l.b16 %v40
  %v73 = vunpack.c.l.b16 %v41
  %v74 = vunpack.c.l.b16 %v42
  %v75 = vunpack.c.l.b16 %v43
  %v76 = vunpack.c.l.b16 %v44
  %v77 = vunpack.c.l.b16 %v45
  %v78 = vunpack.c.l.b16 %v46
  %v79 = vpack.c.b16 %v72, %v71
  %v80 = vpack.c.b16 %v74, %v73
  %v81 = vpack.c.b16 %v76, %v75
  %v82 = vpack.c.b16 %v78, %v77
  %v103 = vunpack.c.l.b16 %v47
  %v104 = vunpack.c.l.b16 %v48
  %v105 = vunpack.c.l.b16 %v49
  %v106 = vunpack.c.l.b16 %v50
  %v107 = vunpack.c.l.b16 %v51
  %v108 = vunpack.c.l.b16 %v52
  %v109 = vunpack.c.l.b16 %v53
  %v110 = vunpack.c.l.b16 %v54
  %v111 = vunpack.c.l.b16 %v55
  %v112 = vunpack.c.l.b16 %v56
  %v113 = vunpack.c.l.b16 %v57
  %v114 = vunpack.c.l.b16 %v58
  %v115 = vunpack.c.l.b16 %v59
  %v116 = vunpack.c.l.b16 %v60
  %v117 = vunpack.c.l.b16 %v61
  %v118 = vunpack.c.l.b16 %v62
  %v119 = vpack.c.b16 %v104, %v103
  %v120 = vpack.c.b16 %v106, %v105
  %v121 = vpack.c.b16 %v108, %v107
  %v122 = vpack.c.b16 %v110, %v109
  %v123 = vpack.c.b16 %v112, %v111
  %v124 = vpack.c.b16 %v114, %v113
  %v125 = vpack.c.b16 %v116, %v115
  %v126 = vpack.c.b16 %v118, %v117
  %135 = vmatprep.subr.bf16.mxu0 0
  %136 = vmatpush1.bf16.msra.mxu0 %v119
  %137 = vmatprep.subr.bf16.mxu0 0
  %138 = vmatpush1.bf16.msra.mxu0 %v120
  %139 = vmatprep.subr.bf16.mxu0 0
  %140 = vmatpush1.bf16.msra.mxu0 %v121
  %141 = vmatprep.subr.bf16.mxu0 0
  %142 = vmatpush1.bf16.msra.mxu0 %v122
  %143 = vmatprep.subr.bf16.mxu0 0
  %144 = vmatpush1.bf16.msra.mxu0 %v123
  %145 = vmatprep.subr.bf16.mxu0 0
  %146 = vmatpush1.bf16.msra.mxu0 %v124
  %147 = vmatprep.subr.bf16.mxu0 0
  %148 = vmatpush1.bf16.msra.mxu0 %v125
  %149 = vmatprep.subr.bf16.mxu0 0
  %150 = vmatpush1.bf16.msra.mxu0 %v126
  %151 = vmatprep.subr.bf16.mxu0 0
  %152 = vmatpush1.bf16.msra.mxu0 0
  %153 = vmatprep.subr.bf16.mxu0 0
  %154 = vmatpush1.bf16.msra.mxu0 0
  %155 = vmatprep.subr.bf16.mxu0 0
  %156 = vmatpush1.bf16.msra.mxu0 0
  %157 = vmatprep.subr.bf16.mxu0 0
  %158 = vmatpush1.bf16.msra.mxu0 0
  %159 = vmatprep.subr.bf16.mxu0 0
  %160 = vmatpush1.bf16.msra.mxu0 0
  %161 = vmatprep.subr.bf16.mxu0 0
  %162 = vmatpush1.bf16.msra.mxu0 0
  %163 = vmatprep.subr.bf16.mxu0 0
  %164 = vmatpush1.bf16.msra.mxu0 0
  %165 = vmatprep.subr.bf16.mxu0 0
  %166 = vmatpush1.bf16.msra.mxu0 0
  %167 = vmatprep.mubr.bf16.mxu0 0
  %168 = vmatmul.mubr.bf16.gmra.mrb[0].mxu0 %v79
  %v169 = vpop.f32.mrb[0].mxu0
  %v170 = vadd.f32 0.0, %v169
  %v171 = vpop.f32.mrb[0].mxu0
  %v172 = vpop.f32.mrb[0].mxu0
  %v173 = vadd.f32 0.0, %v172
  %v174 = vpop.f32.mrb[0].mxu0
  %175 = vmatprep.mubr.bf16.mxu0 0
  %176 = vmatmul.mubr.bf16.gmra.mrb[0].mxu0 %v80
  %v177 = vpop.f32.mrb[0].mxu0
  %v178 = vadd.f32 0.0, %v177
  %v179 = vpop.f32.mrb[0].mxu0
  %v180 = vpop.f32.mrb[0].mxu0
  %v181 = vadd.f32 0.0, %v180
  %v182 = vpop.f32.mrb[0].mxu0
  %183 = vmatprep.mubr.bf16.mxu0 0
  %184 = vmatmul.mubr.bf16.gmra.mrb[0].mxu0 %v81
  %v185 = vpop.f32.mrb[0].mxu0
  %v186 = vadd.f32 0.0, %v185
  %v187 = vpop.f32.mrb[0].mxu0
  %v188 = vpop.f32.mrb[0].mxu0
  %v189 = vadd.f32 0.0, %v188
  %v190 = vpop.f32.mrb[0].mxu0
  %191 = vmatprep.mubr.bf16.mxu0 0
  %192 = vmatmul.mubr.bf16.gmra.mrb[0].mxu0 %v82
  %v193 = vpop.f32.mrb[0].mxu0
  %v194 = vadd.f32 0.0, %v193
  %v195 = vpop.f32.mrb[0].mxu0
  %v196 = vpop.f32.mrb[0].mxu0
  %v197 = vadd.f32 0.0, %v196
  %v198 = vpop.f32.mrb[0].mxu0
  %199 = vdwg.mxu0
  %v200 = vadd.f32 %v31, %v170
  %v201 = vadd.f32 %v32, %v173
  %v202 = vadd.f32 %v33, %v178
  %v203 = vadd.f32 %v34, %v181
  %v204 = vadd.f32 %v35, %v186
  %v205 = vadd.f32 %v36, %v189
  %v206 = vadd.f32 %v37, %v194
  %v207 = vadd.f32 %v38, %v197
  %vm208 = vcmask 261120
  %209 = vst.msk [vmem:[#allocation2] sm:$0xff] %vm208, %v200
  %210 = vst.msk [vmem:[#allocation2 + $0x8] sm:$0xff] %vm208, %v201
  %211 = vst.msk [vmem:[#allocation2 + $0x10] sm:$0xff] %vm208, %v202
  %212 = vst.msk [vmem:[#allocation2 + $0x18] sm:$0xff] %vm208, %v203
  %213 = vst.msk [vmem:[#allocation2 + $0x20] sm:$0xff] %vm208, %v204
  %214 = vst.msk [vmem:[#allocation2 + $0x28] sm:$0xff] %vm208, %v205
  %215 = vst.msk [vmem:[#allocation2 + $0x30] sm:$0xff] %vm208, %v206
  %216 = vst.msk [vmem:[#allocation2 + $0x38] sm:$0xff] %vm208, %v207
  // Predicated region
  $region22: #{img_vision_transformer_forward.26} parent=0 // pred_check
    %p217 = pneg %p18
  $region23: #{img_vision_transformer_forward.26} parent=0 // pred_check_branch
    %219 = sbr.rel (%p217) target = $region25
  $region24: #{img_vision_transformer_forward.26} parent=0 // pred_region
    %v220 = vld [vmem:[#allocation2] sm:$0xff]
    %v221 = vld [vmem:[#allocation2 + $0x8] sm:$0xff]
    %v222 = vld [vmem:[#allocation2 + $0x10] sm:$0xff]
    %v223 = vld [vmem:[#allocation2 + $0x18] sm:$0xff]
    %v224 = vld [vmem:[#allocation2 + $0x20] sm:$0xff]
    %v225 = vld [vmem:[#allocation2 + $0x28] sm:$0xff]
    %v226 = vld [vmem:[#allocation2 + $0x30] sm:$0xff]
    %v227 = vld [vmem:[#allocation2 + $0x38] sm:$0xff]
    %v228 = vld [vmem:[%s2] sm:$0x1]
    %v230 = vlaneseq
    %v231 = vshrl.u32 %v230, 7
    %v232 = vsub.s32 0, %v231
    %v233 = vrot.slane %v228, %v232
    %v235 = vadd.f32 %v220, %v233
    %v236 = vadd.f32 %v221, %v233
    %v237 = vadd.f32 %v222, %v233
    %v238 = vadd.f32 %v223, %v233
    %v239 = vadd.f32 %v224, %v233
    %v240 = vadd.f32 %v225, %v233
    %v241 = vadd.f32 %v226, %v233
    %v242 = vadd.f32 %v227, %v233
    %v243 = vld [vmem:[%s3] sm:$0xf]
    %v244 = vld [vmem:[%s3 + $0x4] sm:$0xf]
    %v245 = vld [vmem:[%s3 + $0x8] sm:$0xf]
    %v246 = vld [vmem:[%s3 + $0xc] sm:$0xf]
    %v247 = vld [vmem:[%s3 + $0x10] sm:$0xf]
    %v248 = vld [vmem:[%s3 + $0x14] sm:$0xf]
    %v249 = vld [vmem:[%s3 + $0x18] sm:$0xf]
    %v250 = vld [vmem:[%s3 + $0x1c] sm:$0xf]
    %v251 = vunpack.c.l.bf16 %v243
    %v252 = vunpack.c.l.bf16 %v244
    %v253 = vunpack.c.l.bf16 %v245
    %v254 = vunpack.c.l.bf16 %v246
    %v255 = vunpack.c.l.bf16 %v247
    %v256 = vunpack.c.l.bf16 %v248
    %v257 = vunpack.c.l.bf16 %v249
    %v258 = vunpack.c.l.bf16 %v250
    %v259 = vadd.f32 %v235, %v251
    %v260 = vadd.f32 %v236, %v252
    %v261 = vadd.f32 %v237, %v253
    %v262 = vadd.f32 %v238, %v254
    %v263 = vadd.f32 %v239, %v255
    %v264 = vadd.f32 %v240, %v256
    %v265 = vadd.f32 %v241, %v257
    %v266 = vadd.f32 %v242, %v258
    %v267 = vpack.c.bf16 %v260, %v259
    %v268 = vpack.c.bf16 %v262, %v261
    %v269 = vpack.c.bf16 %v264, %v263
    %v270 = vpack.c.bf16 %v266, %v265
    %v275 = vunpack.c.l.b16 %v267
    %v276 = vunpack.c.h.b16 %v267
    %v277 = vunpack.c.l.b16 %v268
    %v278 = vunpack.c.h.b16 %v268
    %v279 = vunpack.c.l.b16 %v269
    %v280 = vunpack.c.h.b16 %v269
    %v281 = vunpack.c.l.b16 %v270
    %v282 = vunpack.c.h.b16 %v270
    %v283 = vpack.c.b16 %v275, %v275
    %v284 = vpack.c.b16 %v276, %v276
    %v285 = vpack.c.b16 %v277, %v277
    %v286 = vpack.c.b16 %v278, %v278
    %v287 = vpack.c.b16 %v279, %v279
    %v288 = vpack.c.b16 %v280, %v280
    %v289 = vpack.c.b16 %v281, %v281
    %v290 = vpack.c.b16 %v282, %v282
    %vm299 = vcmask 257024
    %300 = vst.msk [vmem:[%s4] sm:$0xf] %vm299, %v283
    %301 = vst.msk [vmem:[%s4 + $0x4] sm:$0xf] %vm299, %v284
    %302 = vst.msk [vmem:[%s4 + $0x8] sm:$0xf] %vm299, %v285
    %303 = vst.msk [vmem:[%s4 + $0xc] sm:$0xf] %vm299, %v286
    %304 = vst.msk [vmem:[%s4 + $0x10] sm:$0xf] %vm299, %v287
    %305 = vst.msk [vmem:[%s4 + $0x14] sm:$0xf] %vm299, %v288
    %306 = vst.msk [vmem:[%s4 + $0x18] sm:$0xf] %vm299, %v289
    %307 = vst.msk [vmem:[%s4 + $0x1c] sm:$0xf] %vm299, %v290
  $region25: #{img_vision_transformer_forward.26} parent=0 // pred_fallthru
    _
  // Predicated region
  $region26: #{img_vision_transformer_forward.26} parent=0 // pred_check
    _
  $region27: #{img_vision_transformer_forward.26} parent=0 // pred_check_branch
    %309 = sbr.rel (0) target = $region29
  $region28: #{img_vision_transformer_forward.26} parent=0 // pred_region
    _
  $region29: #{img_vision_transformer_forward.26} parent=0 // pred_fallthru
    _
  // Predicated region
  $region30: #{img_vision_transformer_forward.26} parent=0 // pred_check
    _
  $region31: #{img_vision_transformer_forward.26} parent=0 // pred_check_branch
    %311 = sbr.rel (0) target = $region33
  $region32: #{img_vision_transformer_forward.26} parent=0 // pred_region
    _
  $region33: #{img_vision_transformer_forward.26} parent=0 // pred_fallthru
    _

// kernel: img_vision_transformer_forward.35
$region0: #{img_vision_transformer_forward.35}
  #allocation0 [shape = 'u32[]', space=smem, size = 0x4, offset = 0x4, fixed_abs, tag = 'smem constant byte address 0x4 - core index']
  #allocation1 [shape = 'u32[144,128]{1,0:T(1,128)}', space=vmem, size = 0x12000, scoped, tag = 'internal scratch']
  #allocation2 [shape = 'f32[2,32]{1,0:T(2,128)}', space=vmem, size = 0x400, scoped, tag = 'scratch operand']
  %s0 = inlined_call_operand.vmem [shape: bf16[2,32], index: 0, kind: input, shape index: {}]
  %s1 = inlined_call_operand.vmem [shape: bf16[32,32], index: 1, kind: input, shape index: {}]
  %s2 = inlined_call_operand.vmem [shape: f32[1,32], index: 2, kind: input, shape index: {}]
  %s3 = inlined_call_operand.hbm [shape: f32[2,32], index: 3, kind: output, shape index: {}]
  %s4 = sld [smem:[#allocation0]]
  $region30: #{img_vision_transformer_forward.35} parent=0
    _
  %s6 = ssub.s32 1, %s4
  %s7 = scalar_select 0, %s6, %s4
  $region1: #{img_vision_transformer_forward.35} parent=0
    #allocation3 [shape = 'u8[1024]{0}', space=vmem, size = 0x400, scoped, tag = 'output window, operand 0, single buffered']
    #allocation4 [shape = 's32[1]{0}', space=sflag, size = 0x4, scoped, tag = 'scoped memory for img_vision_transformer_forward.35']
    %8 = vsyncpa [#allocation4], 0
    // Predicated region
    $region2: #{img_vision_transformer_forward.35} parent=1 // pred_check
      _
    $region3: #{img_vision_transformer_forward.35} parent=1 // pred_check_branch
      %10 = sbr.rel (0) target = $region5
    $region4: #{img_vision_transformer_forward.35} parent=1 // pred_region
      _
    $region5: #{img_vision_transformer_forward.35} parent=1 // pred_fallthru
      _
    // Predicated region
    $region6: #{img_vision_transformer_forward.35} parent=1 // pred_check
      _
    $region7: #{img_vision_transformer_forward.35} parent=1 // pred_check_branch
      %12 = sbr.rel (0) target = $region9
    $region8: #{img_vision_transformer_forward.35} parent=1 // pred_region
      _
    $region9: #{img_vision_transformer_forward.35} parent=1 // pred_fallthru
      _
    // Predicated region
    $region10: #{img_vision_transformer_forward.35} parent=1 // pred_check
      _
    $region11: #{img_vision_transformer_forward.35} parent=1 // pred_check_branch
      %14 = sbr.rel (0) target = $region13
    $region12: #{img_vision_transformer_forward.35} parent=1 // pred_region
      _
    $region13: #{img_vision_transformer_forward.35} parent=1 // pred_fallthru
      _
    %p16 = scmp.eq.s32.totalorder 0, 0
    // Predicated region
    $region14: #{img_vision_transformer_forward.35} parent=1 // pred_check
      %p17 = pneg %p16
    $region15: #{img_vision_transformer_forward.35} parent=1 // pred_check_branch
      %19 = sbr.rel (%p17) target = $region17
    $region16: #{img_vision_transformer_forward.35} parent=1 // pred_region
      %vm20 = vcmask 254976
      %21 = vst.msk [vmem:[#allocation2] sm:$0x3] %vm20, 0.0
    $region17: #{img_vision_transformer_forward.35} parent=1 // pred_fallthru
      _
    %v22 = vld [vmem:[#allocation2] sm:$0x3]
    %v23 = vld [vmem:[%s0] sm:$0x1]
    %v24 = vld [vmem:[%s1] sm:$0xf]
    %v25 = vld [vmem:[%s1 + $0x4] sm:$0xf]
    %v26 = vld [vmem:[%s1 + $0x8] sm:$0xf]
    %v27 = vld [vmem:[%s1 + $0xc] sm:$0xf]
    %v32 = vunpack.c.l.b16 %v24
    %v33 = vunpack.c.l.b16 %v25
    %v34 = vunpack.c.l.b16 %v26
    %v35 = vunpack.c.l.b16 %v27
    %v36 = vpack.c.b16 %v33, %v32
    %v37 = vpack.c.b16 %v35, %v34
    %vm40 = vcmask 261120
    %v42 = vsel %vm40, %v23, 0
    %44 = vmatprep.subr.bf16.mxu0 0
    %45 = vmatpush1.bf16.msra.mxu0 %v36
    %46 = vmatprep.subr.bf16.mxu0 0
    %47 = vmatpush1.bf16.msra.mxu0 %v37
    %48 = vmatprep.subr.bf16.mxu0 0
    %49 = vmatpush1.bf16.msra.mxu0 0
    %50 = vmatprep.subr.bf16.mxu0 0
    %51 = vmatpush1.bf16.msra.mxu0 0
    %52 = vmatprep.subr.bf16.mxu0 0
    %53 = vmatpush1.bf16.msra.mxu0 0
    %54 = vmatprep.subr.bf16.mxu0 0
    %55 = vmatpush1.bf16.msra.mxu0 0
    %56 = vmatprep.subr.bf16.mxu0 0
    %57 = vmatpush1.bf16.msra.mxu0 0
    %58 = vmatprep.subr.bf16.mxu0 0
    %59 = vmatpush1.bf16.msra.mxu0 0
    %60 = vmatprep.subr.bf16.mxu0 0
    %61 = vmatpush1.bf16.msra.mxu0 0
    %62 = vmatprep.subr.bf16.mxu0 0
    %63 = vmatpush1.bf16.msra.mxu0 0
    %64 = vmatprep.subr.bf16.mxu0 0
    %65 = vmatpush1.bf16.msra.mxu0 0
    %66 = vmatprep.subr.bf16.mxu0 0
    %67 = vmatpush1.bf16.msra.mxu0 0
    %68 = vmatprep.subr.bf16.mxu0 0
    %69 = vmatpush1.bf16.msra.mxu0 0
    %70 = vmatprep.subr.bf16.mxu0 0
    %71 = vmatpush1.bf16.msra.mxu0 0
    %72 = vmatprep.subr.bf16.mxu0 0
    %73 = vmatpush1.bf16.msra.mxu0 0
    %74 = vmatprep.subr.bf16.mxu0 0
    %75 = vmatpush1.bf16.msra.mxu0 0
    %76 = vmatprep.mubr.bf16.mxu0 0
    %77 = vmatmul.mubr.bf16.gmra.mrb[0].mxu0 %v42
    %v78 = vpop.f32.mrb[0].mxu0
    %v79 = vadd.f32 0.0, %v78
    %v80 = vpop.f32.mrb[0].mxu0
    %v81 = vpop.f32.mrb[0].mxu0
    %v82 = vpop.f32.mrb[0].mxu0
    %83 = vdwg.mxu0
    %v84 = vadd.f32 %v22, %v79
    %vm85 = vcmask 254976
    %86 = vst.msk [vmem:[#allocation2] sm:$0x3] %vm85, %v84
    // Predicated region
    $region18: #{img_vision_transformer_forward.35} parent=1 // pred_check
      %p87 = pneg %p16
    $region19: #{img_vision_transformer_forward.35} parent=1 // pred_check_branch
      %89 = sbr.rel (%p87) target = $region21
    $region20: #{img_vision_transformer_forward.35} parent=1 // pred_region
      %v90 = vld [vmem:[#allocation2] sm:$0x3]
      %v91 = vld [vmem:[%s2] sm:$0x1]
      %v93 = vlaneseq
      %v94 = vshrl.u32 %v93, 7
      %v95 = vsub.s32 0, %v94
      %v96 = vrot.slane %v91, %v95
      %v98 = vadd.f32 %v90, %v96
      %99 = vst.msk [vmem:[#allocation3] sm:$0x3] %vm85, %v98
    $region21: #{img_vision_transformer_forward.35} parent=1 // pred_fallthru
      _
    // Predicated region
    $region22: #{img_vision_transformer_forward.35} parent=1 // pred_check
      _
    $region23: #{img_vision_transformer_forward.35} parent=1 // pred_check_branch
      %101 = sbr.rel (0) target = $region25
    $region24: #{img_vision_transformer_forward.35} parent=1 // pred_region
      %s103 = ssub.s32 32, 32
      %104 = vsyncadd [#allocation4], %s103
      %s106 = sshll.u32 [#allocation3], 4
      %s107 = int_to_ptr.vmem [resolvable:$true] %s106
      %109 = dma.vmem_to_hbm [thread:$0]  %s107, 32, %s3, [#allocation4]
    $region25: #{img_vision_transformer_forward.35} parent=1 // pred_fallthru
      _
    // Predicated region
    $region26: #{img_vision_transformer_forward.35} parent=1 // pred_check
      _
    $region27: #{img_vision_transformer_forward.35} parent=1 // pred_check_branch
      %111 = sbr.rel (0) target = $region29
    $region28: #{img_vision_transformer_forward.35} parent=1 // pred_region
      %112 = dma.done [#allocation4], 32
    $region29: #{img_vision_transformer_forward.35} parent=1 // pred_fallthru
      _
    %113 = vsyncpa [#allocation4], 1

// kernel: img_vision_transformer_forward.34
$region0: #{img_vision_transformer_forward.34}
  #allocation0 [shape = 'u32[]', space=smem, size = 0x4, offset = 0x4, fixed_abs, tag = 'smem constant byte address 0x4 - core index']
  #allocation1 [shape = 'u32[144,128]{1,0:T(1,128)}', space=vmem, size = 0x12000, scoped, tag = 'internal scratch']
  %s0 = inlined_call_operand.vmem [shape: bf16[2,32], index: 0, kind: input, shape index: {}]
  %s1 = inlined_call_operand.vmem [shape: f32[1,32], index: 1, kind: input, shape index: {}]
  %s2 = inlined_call_operand.vmem [shape: f32[1,32], index: 2, kind: input, shape index: {}]
  %s3 = inlined_call_operand.vmem [shape: bf16[2,32], index: 3, kind: output, shape index: {}]
  %s4 = sld [smem:[#allocation0]]
  $region22: #{img_vision_transformer_forward.34} parent=0
    _
  %s6 = ssub.s32 1, %s4
  %s7 = scalar_select 0, %s6, %s4
  // Predicated region
  $region2: #{img_vision_transformer_forward.34} parent=0 // pred_check
    _
  $region3: #{img_vision_transformer_forward.34} parent=0 // pred_check_branch
    %9 = sbr.rel (0) target = $region5
  $region4: #{img_vision_transformer_forward.34} parent=0 // pred_region
    _
  $region5: #{img_vision_transformer_forward.34} parent=0 // pred_fallthru
    _
  // Predicated region
  $region6: #{img_vision_transformer_forward.34} parent=0 // pred_check
    _
  $region7: #{img_vision_transformer_forward.34} parent=0 // pred_check_branch
    %11 = sbr.rel (0) target = $region9
  $region8: #{img_vision_transformer_forward.34} parent=0 // pred_region
    _
  $region9: #{img_vision_transformer_forward.34} parent=0 // pred_fallthru
    _
  // Predicated region
  $region10: #{img_vision_transformer_forward.34} parent=0 // pred_check
    _
  $region11: #{img_vision_transformer_forward.34} parent=0 // pred_check_branch
    %13 = sbr.rel (0) target = $region13
  $region12: #{img_vision_transformer_forward.34} parent=0 // pred_region
    _
  $region13: #{img_vision_transformer_forward.34} parent=0 // pred_fallthru
    _
  %v14 = vld [vmem:[%s0] sm:$0x1]
  %v15 = vunpack.c.l.bf16 %v14
  %vm16 = vcmask 254976
  %v17 = vsel %vm16, %v15, 0.0
  %18 = vadd.xlane.f32.xlu0 %v17
  %v19 = vpop.xlane.xlu0 %18
  %v20 = vrcp.pop 32.0
  %v21 = vmul.f32 %v19, %v20
  %v22 = vsub.f32 %v15, %v21
  %v23 = vmul.f32 %v22, %v22
  %v24 = vsel %vm16, %v23, 0.0
  %25 = vadd.xlane.f32.xlu0 %v24
  %v26 = vpop.xlane.xlu0 %25
  %v27 = vmul.f32 %v26, %v20
  %v28 = vadd.f32 %v27, 1e-05
  %v29 = vrsqrt.pop %v28
  %v30 = vmul.f32 %v22, %v29
  %v31 = vld [vmem:[%s1] sm:$0x1]
  %v33 = vlaneseq
  %v34 = vshrl.u32 %v33, 7
  %v35 = vsub.s32 0, %v34
  %v36 = vrot.slane %v31, %v35
  %v38 = vmul.f32 %v30, %v36
  %v39 = vld [vmem:[%s2] sm:$0x1]
  %v41 = vlaneseq
  %v42 = vshrl.u32 %v41, 7
  %v43 = vsub.s32 0, %v42
  %v44 = vrot.slane %v39, %v43
  %v46 = vadd.f32 %v38, %v44
  %v47 = vpack.c.bf16 %v46, %v46
  %vm48 = vcmask 253952
  %49 = vst.msk [vmem:[%s3] sm:$0x1] %vm48, %v47
  // Predicated region
  $region14: #{img_vision_transformer_forward.34} parent=0 // pred_check
    _
  $region15: #{img_vision_transformer_forward.34} parent=0 // pred_check_branch
    %51 = sbr.rel (0) target = $region17
  $region16: #{img_vision_transformer_forward.34} parent=0 // pred_region
    _
  $region17: #{img_vision_transformer_forward.34} parent=0 // pred_fallthru
    _
  // Predicated region
  $region18: #{img_vision_transformer_forward.34} parent=0 // pred_check
    _
  $region19: #{img_vision_transformer_forward.34} parent=0 // pred_check_branch
    %53 = sbr.rel (0) target = $region21
  $region20: #{img_vision_transformer_forward.34} parent=0 // pred_region
    _
  $region21: #{img_vision_transformer_forward.34} parent=0 // pred_fallthru
    _

</llo_original>
